<compile_context>
chip_gen: v7x
topology: tpu7x:2x2x1
jax: 0.10.0
libtpu: 0.0.40
codegen_flags: <defaults>
</compile_context>

<pallas_src>
from functools import partial

import jax
import jax.numpy as jnp
from jax.experimental import pallas as pl
from jax.experimental.pallas import tpu as pltpu


# ------------------------------------------------------------------
# Generation-aware budgets (v7x: 64 MiB VMEM, 2 TensorCores per chip)
# ------------------------------------------------------------------
def _derive_tpu_budgets():
    vmem_cap = None
    try:
        vmem_cap = int(pltpu.get_tpu_info().vmem_capacity_bytes)
    except Exception:
        vmem_cap = None
    if vmem_cap is None:
        try:
            kind = jax.devices()[0].device_kind.lower()
        except Exception:
            kind = ""
        vmem_cap = (64 * 1024 * 1024 if ("v7" in kind or "7x" in kind)
                    else 128 * 1024 * 1024)
    # Never request the full physical VMEM (starves double-buffering on v7x).
    vmem_limit = min(64 * 1024 * 1024, (vmem_cap * 3) // 4)
    small_vmem = vmem_cap <= 96 * 1024 * 1024        # v7x-like part
    tm_cap = 512 if small_vmem else 1024
    return vmem_limit, tm_cap, small_vmem


_VMEM_LIMIT, _TM_CAP, _SMALL_VMEM = _derive_tpu_budgets()


def _compiler_params(semantics):
    return pltpu.CompilerParams(dimension_semantics=semantics,
                                vmem_limit_bytes=_VMEM_LIMIT)


def _probe_single_buffer():
    # pl.Buffered(1) on constant-index operands saves VMEM (no double-buffer
    # for weights); probe once so unsupported versions fall back cleanly.
    try:
        def k(x_ref, o_ref):
            o_ref[...] = x_ref[...] + 1.0

        f = pl.pallas_call(
            k,
            out_shape=jax.ShapeDtypeStruct((8, 128), jnp.float32),
            grid=(2,),
            in_specs=[pl.BlockSpec((8, 128), lambda i: (0, 0),
                                   pipeline_mode=pl.Buffered(1))],
            out_specs=pl.BlockSpec((8, 128), lambda i: (0, 0)),
        )
        jax.block_until_ready(f(jnp.zeros((8, 128), jnp.float32)))
        return True
    except Exception:
        return False


_USE_SINGLE_BUF = _probe_single_buffer()


def _const_spec(shape):
    # Constant-index operand (weights / bias): single-buffered when supported.
    idx = lambda *_: (0,) * len(shape)   # noqa: E731
    if _USE_SINGLE_BUF:
        return pl.BlockSpec(shape, idx, pipeline_mode=pl.Buffered(1))
    return pl.BlockSpec(shape, idx)


# ------------------------------------------------------------------
# Tile-size helpers
# ------------------------------------------------------------------
def _cdiv(a, b):
    return (a + b - 1) // b


def _pick_tm(M, cap, min_tiles=1):
    # Lane tile for the flattened-spatial axis: full extent or a multiple of
    # 128.  `min_tiles` forces >=2 grid steps so both v7x TensorCores get work.
    if min_tiles > 1 and M > 128:
        cap = min(cap, max(128, _cdiv(_cdiv(M, min_tiles), 128) * 128))
    if M <= cap:
        return M
    t = (cap // 128) * 128
    while t >= 128:
        if M % t == 0:
            return t
        t -= 128
    return (cap // 128) * 128


def _pick_tc(C, cap=128):
    # Channel tile for the SPP kernel (bounds VMEM for wide layers).
    if C <= cap:
        return C
    for t in (cap, 64, 32, 16, 8):
        if C % t == 0:
            return t
    return cap


# ------------------------------------------------------------------
# Fused (multi-input) 1x1 conv + bias + ReLU kernel
#   out(Cout, tm) = relu( sum_g  W_g(Cout, Cin_g) @ x_g(Cin_g, tm)  + b )
# BN scale already folded into W_g; the channel-concat of the x_g is fused
# into the accumulation (no HBM concat).
# ------------------------------------------------------------------
def _make_conv1x1_kernel(n_in):
    def kernel(*refs):
        x_refs = refs[:n_in]
        w_refs = refs[n_in:2 * n_in]
        b_ref = refs[2 * n_in]
        o_ref = refs[2 * n_in + 1]
        acc = jnp.dot(w_refs[0][...], x_refs[0][0],
                      preferred_element_type=jnp.float32)
        for g in range(1, n_in):
            acc = acc + jnp.dot(w_refs[g][...], x_refs[g][0],
                                preferred_element_type=jnp.float32)
        o_ref[0] = jnp.maximum(acc + b_ref[...], 0.0).astype(o_ref.dtype)
    return kernel


def conv1x1_bn_relu(xs, ws, bias):
    # xs: list of (N, Cin_g, M) bf16; ws: list of (Cout, Cin_g) bf16;
    # bias: (Cout, 1) f32.  Returns (N, Cout, M) bf16.
    N, _, M = xs[0].shape
    Cout = ws[0].shape[0]
    min_tiles = 2 if (_SMALL_VMEM and N == 1) else 1
    tm = _pick_tm(M, _TM_CAP, min_tiles)

    in_specs = []
    for x in xs:
        cin_g = x.shape[1]
        in_specs.append(pl.BlockSpec((1, cin_g, tm), lambda n, m: (n, 0, m)))
    for w in ws:
        in_specs.append(_const_spec(w.shape))
    in_specs.append(_const_spec(bias.shape))

    return pl.pallas_call(
        _make_conv1x1_kernel(len(xs)),
        out_shape=jax.ShapeDtypeStruct((N, Cout, M), jnp.bfloat16),
        grid=(N, pl.cdiv(M, tm)),
        in_specs=in_specs,
        out_specs=pl.BlockSpec((1, Cout, tm), lambda n, m: (n, 0, m)),
        compiler_params=_compiler_params(("parallel", "parallel")),
    )(*xs, *ws, bias)


# ------------------------------------------------------------------
# 3x3 conv + bias + ReLU with in-kernel taps (no im2col in HBM).
# Input is zero-padded ((1,2) rows, (1,1) cols) and flattened; tap (dy,dx)
# is a static lane-shift by dy*Wp+dx, accumulated over 9 MXU dots.
# ------------------------------------------------------------------
def _conv3x3_kernel(xp_ref, w_ref, b_ref, o_ref, *, Wp, Mo):
    x = xp_ref[0]                                    # (Cin, Mp)
    acc = jnp.dot(w_ref[0], x[:, 0:Mo], preferred_element_type=jnp.float32)
    for t in range(1, 9):
        dy, dx = divmod(t, 3)
        off = dy * Wp + dx
        acc = acc + jnp.dot(w_ref[t], x[:, off:off + Mo],
                            preferred_element_type=jnp.float32)
    o_ref[0] = jnp.maximum(acc + b_ref[...], 0.0).astype(o_ref.dtype)


def conv3x3_bn_relu(x, w_taps, bias, H, W):
    # x: (N, Cin, H*W) bf16; w_taps: (9, Cout, Cin) bf16; bias (Cout, 1) f32.
    N, Cin, _ = x.shape
    Cout = w_taps.shape[1]
    Wp = W + 2
    Mp = (H + 3) * Wp        # extra bottom pad row keeps every tap slice in range
    Mo = H * Wp
    xp = jnp.pad(x.reshape(N, Cin, H, W),
                 ((0, 0), (0, 0), (1, 2), (1, 1))).reshape(N, Cin, Mp)

    out = pl.pallas_call(
        partial(_conv3x3_kernel, Wp=Wp, Mo=Mo),
        out_shape=jax.ShapeDtypeStruct((N, Cout, Mo), jnp.bfloat16),
        grid=(N,),
        in_specs=[pl.BlockSpec((1, Cin, Mp), lambda n: (n, 0, 0)),
                  _const_spec(w_taps.shape),
                  _const_spec(bias.shape)],
        out_specs=pl.BlockSpec((1, Cout, Mo), lambda n: (n, 0, 0)),
        compiler_params=_compiler_params(("parallel",)),
    )(xp, w_taps, bias)
    # Strip the 2 wrap-around garbage columns per row (lane-dense store kept).
    return out.reshape(N, Cout, H, Wp)[:, :, :, :W].reshape(N, Cout, H * W)


# ------------------------------------------------------------------
# Fused SPP kernel on the flattened -inf padded layout.
#   input block : (1, tc, L)         L = (H+2p+1)*(W+2p)
#   output block: (1, 1+len(ksizes), tc, H*Wp)   [identity, mp5, mp9, mp13]
# Stride-1 max pools compose (mp9 = mp5(mp5), mp13 = mp5(mp5(mp5))), so the
# cascade reads x once; every shift is a static lane-dim slice, and every
# store has a >=128-lane minor dim.  The Wp-W garbage columns per row are
# stripped by the wrapper.
# ------------------------------------------------------------------
def _spp_kernel(xp_ref, o_ref, *, H, W, p, ksizes):
    Wp = W + 2 * p
    Mo = H * Wp
    x = xp_ref[0]                                     # (tc, L)
    o_ref[0, 0] = x[:, p * (Wp + 1): p * (Wp + 1) + Mo]    # identity branch
    cur = x
    prev_k = 1
    for j, k in enumerate(ksizes):
        w = k - prev_k + 1                            # incremental window
        n_h = cur.shape[1] - (w - 1)
        h = cur[:, 0:n_h]
        for d in range(1, w):                         # horizontal max
            h = jnp.maximum(h, cur[:, d:d + n_h])
        n_v = n_h - (w - 1) * Wp
        v = h[:, 0:n_v]
        for d in range(1, w):                         # vertical max
            v = jnp.maximum(v, h[:, d * Wp: d * Wp + n_v])
        cur = v
        prev_k = k
        off = (p - (k - 1) // 2) * (Wp + 1)
        o_ref[0, 1 + j] = cur[:, off: off + Mo]


def spp_concat(x, H, W, ksizes=(5, 9, 13)):
    # x: (N, C, H*W) -> (N, (1+len(ksizes))*C, H*W), channel order matching
    # torch.cat([x] + [MaxPool2d(k,1,(k-1)//2)(x) for k in ksizes], dim=1).
    assert all(k % 2 == 1 for k in ksizes)
    assert list(ksizes) == sorted(ksizes)
    N, C, _ = x.shape
    p = (max(ksizes) - 1) // 2
    Wp = W + 2 * p
    Hp = H + 2 * p + 1            # +1 bottom pad row keeps every slice in range
    L = Hp * Wp
    Mo = H * Wp
    xp = jnp.pad(x.reshape(N, C, H, W),
                 ((0, 0), (0, 0), (p, p + 1), (p, p)),
                 constant_values=-jnp.inf).reshape(N, C, L)
    tc = _pick_tc(C)
    n_out = 1 + len(ksizes)

    out = pl.pallas_call(
        partial(_spp_kernel, H=H, W=W, p=p, ksizes=tuple(ksizes)),
        out_shape=jax.ShapeDtypeStruct((N, n_out, C, Mo), x.dtype),
        grid=(N, pl.cdiv(C, tc)),
        in_specs=[pl.BlockSpec((1, tc, L), lambda n, c: (n, c, 0))],
        out_specs=pl.BlockSpec((1, n_out, tc, Mo), lambda n, c: (n, 0, c, 0)),
        compiler_params=_compiler_params(("parallel", "parallel")),
    )(xp)
    # Strip the Wp-W garbage columns per row; channel order is branch-major.
    out = out.reshape(N, n_out * C, H, Wp)[:, :, :, :W]
    return out.reshape(N, n_out * C, H * W)


# ------------------------------------------------------------------
# Parameter construction (deterministic; BN scale folded into bf16 weights,
# f32 bias kept separate; optional column split for the concat-fused cv4).
# ------------------------------------------------------------------
def make_cbs_params(key, cin, cout, ksize, split=None):
    kw, kg, kb, km, kv = jax.random.split(key, 5)
    ntap = 9 if ksize == 3 else 1
    kin = ntap * cin
    w = jax.random.normal(kw, (cout, kin), jnp.float32) * (kin ** -0.5)
    gamma = 1.0 + 0.1 * jax.random.normal(kg, (cout,), jnp.float32)
    beta = 0.1 * jax.random.normal(kb, (cout,), jnp.float32)
    mean = 0.1 * jax.random.normal(km, (cout,), jnp.float32)
    var = jax.random.uniform(kv, (cout,), jnp.float32, 0.5, 1.5)
    scale = gamma / jnp.sqrt(var + 1e-5)
    bias = (beta - mean * scale).reshape(cout, 1)
    w = w * scale[:, None]              # fold BN scale -> epilogue = +b, ReLU
    if ksize == 3:
        w = w.reshape(cout, 9, cin).transpose(1, 0, 2)    # (9, Cout, Cin)
        return ([w.astype(jnp.bfloat16)], bias)
    if split is None:
        ws = [w.astype(jnp.bfloat16)]
    else:
        ws, off = [], 0
        for s in split:
            ws.append(w[:, off:off + s].astype(jnp.bfloat16))
            off += s
    return (ws, bias)


# ------------------------------------------------------------------
# SPPCSPC forward (NCHW in / NCHW out, no transposes needed)
# ------------------------------------------------------------------
def sppcspc_forward(x_nchw, params, ksizes=(5, 9, 13)):
    N, Cin, H, W = x_nchw.shape
    x = x_nchw.reshape(N, Cin, H * W).astype(jnp.bfloat16)

    def cbs1(xs_list, prm):
        ws, b = prm
        return conv1x1_bn_relu(xs_list, ws, b)

    def cbs3(y, prm):
        ws, b = prm
        return conv3x3_bn_relu(y, ws[0], b, H, W)

    # cv1 = 1x1 -> 3x3 -> 1x1
    x1 = cbs1([x], params['cv1_0'])
    x1 = cbs3(x1, params['cv1_1'])
    x1 = cbs1([x1], params['cv1_2'])
    # SPP: single kernel -> channel-concatenated [x1, mp5, mp9, mp13]
    x1 = spp_concat(x1, H, W, ksizes)
    # cv2 = 1x1 -> 3x3
    x1 = cbs1([x1], params['cv2_0'])
    x1 = cbs3(x1, params['cv2_1'])
    # cv3 branch
    x2 = cbs1([x], params['cv3'])
    # CSP concat fused into cv4 (two weight column blocks, two inputs)
    y = cbs1([x1, x2], params['cv4'])
    return y.reshape(N, -1, H, W).astype(jnp.float32)


# ------------------------------------------------------------------
if __name__ == "__main__":
    in_ch, out_ch = 4, 8
    expand_ratio = 0.5
    mid = int(2 * out_ch * expand_ratio)        # = 8

    x = jax.random.normal(jax.random.PRNGKey(0), (2, in_ch, 16, 16),
                          jnp.float32)

    keys = jax.random.split(jax.random.PRNGKey(42), 7)
    params = {
        'cv1_0': make_cbs_params(keys[0], in_ch, mid, 1),
        'cv1_1': make_cbs_params(keys[1], mid, mid, 3),
        'cv1_2': make_cbs_params(keys[2], mid, mid, 1),
        'cv2_0': make_cbs_params(keys[3], 4 * mid, mid, 1),
        'cv2_1': make_cbs_params(keys[4], mid, mid, 3),
        'cv3':   make_cbs_params(keys[5], in_ch, mid, 1),
        'cv4':   make_cbs_params(keys[6], 2 * mid, out_ch, 1,
                                 split=(mid, mid)),
    }

    y = jax.jit(sppcspc_forward)(x, params)
    jax.block_until_ready(y)
    assert y.shape == (2, out_ch, 16, 16), y.shape
    assert bool(jnp.all(jnp.isfinite(y)))
    print("KERNEL_OK")
</pallas_src>

<mosaic_0001>
module attributes {stable_mosaic.version = 11 : i64} {
  func.func @k(%arg0: i32, %arg1: memref<8x128xf32, #tpu.memory_space<vmem>>, %arg2: memref<8x128xf32, #tpu.memory_space<vmem>>) attributes {dimension_semantics = [#tpu.dimension_semantics<arbitrary>], iteration_bounds = array<i64: 2>, scalar_prefetch = 0 : i64, scratch_operands = 0 : i64, tpu.core_type = #tpu.core_type<tc>, window_params = [{pipeline_mode = #tpu.pipeline_mode<synchronous>, transform_indices = @transform_0, window_bounds = array<i64: 8, 128>}, {pipeline_mode = #tpu.pipeline_mode<synchronous>, transform_indices = @transform_1, window_bounds = array<i64: 8, 128>}]} {
    %c0 = arith.constant 0 : index
    %c0_0 = arith.constant 0 : index
    %0 = vector.load %arg1[%c0, %c0_0] : memref<8x128xf32, #tpu.memory_space<vmem>>, vector<8x128xf32>
    %cst = arith.constant 1.000000e+00 : f32
    %1 = vector.broadcast %cst : f32 to vector<8x128xf32>
    %2 = arith.addf %0, %1 : vector<8x128xf32>
    %c0_1 = arith.constant 0 : index
    %c0_2 = arith.constant 0 : index
    %3 = vector.load %arg2[%c0_1, %c0_2] : memref<8x128xf32, #tpu.memory_space<vmem>>, vector<8x128xf32>
    tpu.vector_store %arg2[%c0_1, %c0_2], %2 {strides = array<i32>} : memref<8x128xf32, #tpu.memory_space<vmem>>, vector<8x128xf32>,
    return
  }
  func.func @transform_0(%arg0: i32) -> (i32, i32) {
    %c0_i32 = arith.constant 0 : i32
    %c0_i32_0 = arith.constant 0 : i32
    %c0_i32_1 = arith.constant 0 : i32
    return %c0_i32, %c0_i32_0 : i32, i32
  }
  func.func @transform_1(%arg0: i32) -> (i32, i32) {
    %c0_i32 = arith.constant 0 : i32
    %c0_i32_0 = arith.constant 0 : i32
    %c0_i32_1 = arith.constant 0 : i32
    return %c0_i32, %c0_i32_0 : i32, i32
  }
}

module attributes {stable_mosaic.version = 11 : i64} {
  func.func @kernel(%arg0: i32, %arg1: i32, %arg2: memref<1x4x256xbf16, #tpu.memory_space<vmem>>, %arg3: memref<8x4xbf16, #tpu.memory_space<vmem>>, %arg4: memref<8x1xf32, #tpu.memory_space<vmem>>, %arg5: memref<1x8x256xbf16, #tpu.memory_space<vmem>>) attributes {dimension_semantics = [#tpu.dimension_semantics<parallel>, #tpu.dimension_semantics<parallel>], iteration_bounds = array<i64: 2, 1>, scalar_prefetch = 0 : i64, scratch_operands = 0 : i64, tpu.core_type = #tpu.core_type<tc>, window_params = [{transform_indices = @transform_0, window_bounds = array<i64: 1, 4, 256>}, {pipeline_mode = #tpu.pipeline_mode<synchronous>, transform_indices = @transform_1, window_bounds = array<i64: 8, 4>}, {pipeline_mode = #tpu.pipeline_mode<synchronous>, transform_indices = @transform_2, window_bounds = array<i64: 8, 1>}, {transform_indices = @transform_3, window_bounds = array<i64: 1, 8, 256>}]} {
    %c0 = arith.constant 0 : index
    %c0_0 = arith.constant 0 : index
    %0 = vector.load %arg3[%c0, %c0_0] : memref<8x4xbf16, #tpu.memory_space<vmem>>, vector<8x4xbf16>
    %c0_1 = arith.constant 0 : index
    %c0_2 = arith.constant 0 : index
    %c0_3 = arith.constant 0 : index
    %1 = vector.load %arg2[%c0_1, %c0_2, %c0_3] : memref<1x4x256xbf16, #tpu.memory_space<vmem>>, vector<1x4x256xbf16>
    %2 = vector.shape_cast %1 : vector<1x4x256xbf16> to vector<4x256xbf16>
    %cst = arith.constant dense<0.000000e+00> : vector<8x256xf32>
    %3 = tpu.matmul %0, %2, %cst {dimension_numbers = #tpu.dot_dimension_numbers<[1], [0], [0], [1], [0, 0, 1, 1], [], []>} : vector<8x4xbf16>, vector<4x256xbf16>, vector<8x256xf32> -> vector<8x256xf32>
    %c0_4 = arith.constant 0 : index
    %c0_5 = arith.constant 0 : index
    %4 = vector.load %arg4[%c0_4, %c0_5] : memref<8x1xf32, #tpu.memory_space<vmem>>, vector<8x1xf32>
    %5 = vector.broadcast %4 : vector<8x1xf32> to vector<8x256xf32>
    %6 = arith.addf %3, %5 : vector<8x256xf32>
    %cst_6 = arith.constant 0.000000e+00 : f32
    %7 = vector.broadcast %cst_6 : f32 to vector<8x256xf32>
    %8 = arith.maximumf %6, %7 : vector<8x256xf32>
    %9 = arith.truncf %8 : vector<8x256xf32> to vector<8x256xbf16>
    %c0_7 = arith.constant 0 : index
    %c0_8 = arith.constant 0 : index
    %c0_9 = arith.constant 0 : index
    %10 = vector.load %arg5[%c0_7, %c0_8, %c0_9] : memref<1x8x256xbf16, #tpu.memory_space<vmem>>, vector<1x8x256xbf16>
    %11 = vector.shape_cast %10 : vector<1x8x256xbf16> to vector<8x256xbf16>
    %12 = vector.shape_cast %9 : vector<8x256xbf16> to vector<1x8x256xbf16>
    tpu.vector_store %arg5[%c0_7, %c0_8, %c0_9], %12 {strides = array<i32>} : memref<1x8x256xbf16, #tpu.memory_space<vmem>>, vector<1x8x256xbf16>,
    return
  }
  func.func @transform_0(%arg0: i32, %arg1: i32) -> (i32, i32, i32) {
    %c0_i32 = arith.constant 0 : i32
    %c0_i32_0 = arith.constant 0 : i32
    return %arg0, %c0_i32, %arg1 : i32, i32, i32
  }
  func.func @transform_1(%arg0: i32, %arg1: i32) -> (i32, i32) {
    %c0_i32 = arith.constant 0 : i32
    %c0_i32_0 = arith.constant 0 : i32
    %c0_i32_1 = arith.constant 0 : i32
    return %c0_i32, %c0_i32_0 : i32, i32
  }
  func.func @transform_2(%arg0: i32, %arg1: i32) -> (i32, i32) {
    %c0_i32 = arith.constant 0 : i32
    %c0_i32_0 = arith.constant 0 : i32
    %c0_i32_1 = arith.constant 0 : i32
    return %c0_i32, %c0_i32_0 : i32, i32
  }
  func.func @transform_3(%arg0: i32, %arg1: i32) -> (i32, i32, i32) {
    %c0_i32 = arith.constant 0 : i32
    %c0_i32_0 = arith.constant 0 : i32
    return %arg0, %c0_i32, %arg1 : i32, i32, i32
  }
}

module attributes {stable_mosaic.version = 11 : i64} {
  func.func @kernel(%arg0: i32, %arg1: i32, %arg2: memref<1x8x256xbf16, #tpu.memory_space<vmem>>, %arg3: memref<8x8xbf16, #tpu.memory_space<vmem>>, %arg4: memref<8x1xf32, #tpu.memory_space<vmem>>, %arg5: memref<1x8x256xbf16, #tpu.memory_space<vmem>>) attributes {dimension_semantics = [#tpu.dimension_semantics<parallel>, #tpu.dimension_semantics<parallel>], iteration_bounds = array<i64: 2, 1>, scalar_prefetch = 0 : i64, scratch_operands = 0 : i64, tpu.core_type = #tpu.core_type<tc>, window_params = [{transform_indices = @transform_0, window_bounds = array<i64: 1, 8, 256>}, {pipeline_mode = #tpu.pipeline_mode<synchronous>, transform_indices = @transform_1, window_bounds = array<i64: 8, 8>}, {pipeline_mode = #tpu.pipeline_mode<synchronous>, transform_indices = @transform_2, window_bounds = array<i64: 8, 1>}, {transform_indices = @transform_3, window_bounds = array<i64: 1, 8, 256>}]} {
    %c0 = arith.constant 0 : index
    %c0_0 = arith.constant 0 : index
    %0 = vector.load %arg3[%c0, %c0_0] : memref<8x8xbf16, #tpu.memory_space<vmem>>, vector<8x8xbf16>
    %c0_1 = arith.constant 0 : index
    %c0_2 = arith.constant 0 : index
    %c0_3 = arith.constant 0 : index
    %1 = vector.load %arg2[%c0_1, %c0_2, %c0_3] : memref<1x8x256xbf16, #tpu.memory_space<vmem>>, vector<1x8x256xbf16>
    %2 = vector.shape_cast %1 : vector<1x8x256xbf16> to vector<8x256xbf16>
    %cst = arith.constant dense<0.000000e+00> : vector<8x256xf32>
    %3 = tpu.matmul %0, %2, %cst {dimension_numbers = #tpu.dot_dimension_numbers<[1], [0], [0], [1], [0, 0, 1, 1], [], []>} : vector<8x8xbf16>, vector<8x256xbf16>, vector<8x256xf32> -> vector<8x256xf32>
    %c0_4 = arith.constant 0 : index
    %c0_5 = arith.constant 0 : index
    %4 = vector.load %arg4[%c0_4, %c0_5] : memref<8x1xf32, #tpu.memory_space<vmem>>, vector<8x1xf32>
    %5 = vector.broadcast %4 : vector<8x1xf32> to vector<8x256xf32>
    %6 = arith.addf %3, %5 : vector<8x256xf32>
    %cst_6 = arith.constant 0.000000e+00 : f32
    %7 = vector.broadcast %cst_6 : f32 to vector<8x256xf32>
    %8 = arith.maximumf %6, %7 : vector<8x256xf32>
    %9 = arith.truncf %8 : vector<8x256xf32> to vector<8x256xbf16>
    %c0_7 = arith.constant 0 : index
    %c0_8 = arith.constant 0 : index
    %c0_9 = arith.constant 0 : index
    %10 = vector.load %arg5[%c0_7, %c0_8, %c0_9] : memref<1x8x256xbf16, #tpu.memory_space<vmem>>, vector<1x8x256xbf16>
    %11 = vector.shape_cast %10 : vector<1x8x256xbf16> to vector<8x256xbf16>
    %12 = vector.shape_cast %9 : vector<8x256xbf16> to vector<1x8x256xbf16>
    tpu.vector_store %arg5[%c0_7, %c0_8, %c0_9], %12 {strides = array<i32>} : memref<1x8x256xbf16, #tpu.memory_space<vmem>>, vector<1x8x256xbf16>,
    return
  }
  func.func @transform_0(%arg0: i32, %arg1: i32) -> (i32, i32, i32) {
    %c0_i32 = arith.constant 0 : i32
    %c0_i32_0 = arith.constant 0 : i32
    return %arg0, %c0_i32, %arg1 : i32, i32, i32
  }
  func.func @transform_1(%arg0: i32, %arg1: i32) -> (i32, i32) {
    %c0_i32 = arith.constant 0 : i32
    %c0_i32_0 = arith.constant 0 : i32
    %c0_i32_1 = arith.constant 0 : i32
    return %c0_i32, %c0_i32_0 : i32, i32
  }
  func.func @transform_2(%arg0: i32, %arg1: i32) -> (i32, i32) {
    %c0_i32 = arith.constant 0 : i32
    %c0_i32_0 = arith.constant 0 : i32
    %c0_i32_1 = arith.constant 0 : i32
    return %c0_i32, %c0_i32_0 : i32, i32
  }
  func.func @transform_3(%arg0: i32, %arg1: i32) -> (i32, i32, i32) {
    %c0_i32 = arith.constant 0 : i32
    %c0_i32_0 = arith.constant 0 : i32
    return %arg0, %c0_i32, %arg1 : i32, i32, i32
  }
}

module attributes {stable_mosaic.version = 11 : i64} {
  func.func @_conv3x3_kernel(%arg0: i32, %arg1: memref<1x8x342xbf16, #tpu.memory_space<vmem>>, %arg2: memref<9x8x8xbf16, #tpu.memory_space<vmem>>, %arg3: memref<8x1xf32, #tpu.memory_space<vmem>>, %arg4: memref<1x8x288xbf16, #tpu.memory_space<vmem>>) attributes {dimension_semantics = [#tpu.dimension_semantics<parallel>], iteration_bounds = array<i64: 2>, scalar_prefetch = 0 : i64, scratch_operands = 0 : i64, tpu.core_type = #tpu.core_type<tc>, window_params = [{transform_indices = @transform_0, window_bounds = array<i64: 1, 8, 342>}, {pipeline_mode = #tpu.pipeline_mode<synchronous>, transform_indices = @transform_1, window_bounds = array<i64: 9, 8, 8>}, {pipeline_mode = #tpu.pipeline_mode<synchronous>, transform_indices = @transform_2, window_bounds = array<i64: 8, 1>}, {transform_indices = @transform_3, window_bounds = array<i64: 1, 8, 288>}]} {
    %c0 = arith.constant 0 : index
    %c0_0 = arith.constant 0 : index
    %c0_1 = arith.constant 0 : index
    %0 = vector.load %arg1[%c0, %c0_0, %c0_1] : memref<1x8x342xbf16, #tpu.memory_space<vmem>>, vector<1x8x342xbf16>
    %1 = vector.shape_cast %0 : vector<1x8x342xbf16> to vector<8x342xbf16>
    %c0_2 = arith.constant 0 : index
    %c0_3 = arith.constant 0 : index
    %c0_4 = arith.constant 0 : index
    %2 = vector.load %arg2[%c0_2, %c0_3, %c0_4] : memref<9x8x8xbf16, #tpu.memory_space<vmem>>, vector<1x8x8xbf16>
    %3 = vector.shape_cast %2 : vector<1x8x8xbf16> to vector<8x8xbf16>
    %4 = vector.extract_strided_slice %1 {offsets = [0, 0], sizes = [8, 288], strides = [1, 1]} : vector<8x342xbf16> to vector<8x288xbf16>
    %cst = arith.constant dense<0.000000e+00> : vector<8x288xf32>
    %5 = tpu.matmul %3, %4, %cst {dimension_numbers = #tpu.dot_dimension_numbers<[1], [0], [0], [1], [0, 0, 1, 1], [], []>} : vector<8x8xbf16>, vector<8x288xbf16>, vector<8x288xf32> -> vector<8x288xf32>
    %c1 = arith.constant 1 : index
    %c0_5 = arith.constant 0 : index
    %c0_6 = arith.constant 0 : index
    %6 = vector.load %arg2[%c1, %c0_5, %c0_6] : memref<9x8x8xbf16, #tpu.memory_space<vmem>>, vector<1x8x8xbf16>
    %7 = vector.shape_cast %6 : vector<1x8x8xbf16> to vector<8x8xbf16>
    %8 = vector.extract_strided_slice %1 {offsets = [0, 1], sizes = [8, 288], strides = [1, 1]} : vector<8x342xbf16> to vector<8x288xbf16>
    %cst_7 = arith.constant dense<0.000000e+00> : vector<8x288xf32>
    %9 = tpu.matmul %7, %8, %cst_7 {dimension_numbers = #tpu.dot_dimension_numbers<[1], [0], [0], [1], [0, 0, 1, 1], [], []>} : vector<8x8xbf16>, vector<8x288xbf16>, vector<8x288xf32> -> vector<8x288xf32>
    %10 = arith.addf %5, %9 : vector<8x288xf32>
    %c2 = arith.constant 2 : index
    %c0_8 = arith.constant 0 : index
    %c0_9 = arith.constant 0 : index
    %11 = vector.load %arg2[%c2, %c0_8, %c0_9] : memref<9x8x8xbf16, #tpu.memory_space<vmem>>, vector<1x8x8xbf16>
    %12 = vector.shape_cast %11 : vector<1x8x8xbf16> to vector<8x8xbf16>
    %13 = vector.extract_strided_slice %1 {offsets = [0, 2], sizes = [8, 288], strides = [1, 1]} : vector<8x342xbf16> to vector<8x288xbf16>
    %cst_10 = arith.constant dense<0.000000e+00> : vector<8x288xf32>
    %14 = tpu.matmul %12, %13, %cst_10 {dimension_numbers = #tpu.dot_dimension_numbers<[1], [0], [0], [1], [0, 0, 1, 1], [], []>} : vector<8x8xbf16>, vector<8x288xbf16>, vector<8x288xf32> -> vector<8x288xf32>
    %15 = arith.addf %10, %14 : vector<8x288xf32>
    %c3 = arith.constant 3 : index
    %c0_11 = arith.constant 0 : index
    %c0_12 = arith.constant 0 : index
    %16 = vector.load %arg2[%c3, %c0_11, %c0_12] : memref<9x8x8xbf16, #tpu.memory_space<vmem>>, vector<1x8x8xbf16>
    %17 = vector.shape_cast %16 : vector<1x8x8xbf16> to vector<8x8xbf16>
    %18 = vector.extract_strided_slice %1 {offsets = [0, 18], sizes = [8, 288], strides = [1, 1]} : vector<8x342xbf16> to vector<8x288xbf16>
    %cst_13 = arith.constant dense<0.000000e+00> : vector<8x288xf32>
    %19 = tpu.matmul %17, %18, %cst_13 {dimension_numbers = #tpu.dot_dimension_numbers<[1], [0], [0], [1], [0, 0, 1, 1], [], []>} : vector<8x8xbf16>, vector<8x288xbf16>, vector<8x288xf32> -> vector<8x288xf32>
    %20 = arith.addf %15, %19 : vector<8x288xf32>
    %c4 = arith.constant 4 : index
    %c0_14 = arith.constant 0 : index
    %c0_15 = arith.constant 0 : index
    %21 = vector.load %arg2[%c4, %c0_14, %c0_15] : memref<9x8x8xbf16, #tpu.memory_space<vmem>>, vector<1x8x8xbf16>
    %22 = vector.shape_cast %21 : vector<1x8x8xbf16> to vector<8x8xbf16>
    %23 = vector.extract_strided_slice %1 {offsets = [0, 19], sizes = [8, 288], strides = [1, 1]} : vector<8x342xbf16> to vector<8x288xbf16>
    %cst_16 = arith.constant dense<0.000000e+00> : vector<8x288xf32>
    %24 = tpu.matmul %22, %23, %cst_16 {dimension_numbers = #tpu.dot_dimension_numbers<[1], [0], [0], [1], [0, 0, 1, 1], [], []>} : vector<8x8xbf16>, vector<8x288xbf16>, vector<8x288xf32> -> vector<8x288xf32>
    %25 = arith.addf %20, %24 : vector<8x288xf32>
    %c5 = arith.constant 5 : index
    %c0_17 = arith.constant 0 : index
    %c0_18 = arith.constant 0 : index
    %26 = vector.load %arg2[%c5, %c0_17, %c0_18] : memref<9x8x8xbf16, #tpu.memory_space<vmem>>, vector<1x8x8xbf16>
    %27 = vector.shape_cast %26 : vector<1x8x8xbf16> to vector<8x8xbf16>
    %28 = vector.extract_strided_slice %1 {offsets = [0, 20], sizes = [8, 288], strides = [1, 1]} : vector<8x342xbf16> to vector<8x288xbf16>
    %cst_19 = arith.constant dense<0.000000e+00> : vector<8x288xf32>
    %29 = tpu.matmul %27, %28, %cst_19 {dimension_numbers = #tpu.dot_dimension_numbers<[1], [0], [0], [1], [0, 0, 1, 1], [], []>} : vector<8x8xbf16>, vector<8x288xbf16>, vector<8x288xf32> -> vector<8x288xf32>
    %30 = arith.addf %25, %29 : vector<8x288xf32>
    %c6 = arith.constant 6 : index
    %c0_20 = arith.constant 0 : index
    %c0_21 = arith.constant 0 : index
    %31 = vector.load %arg2[%c6, %c0_20, %c0_21] : memref<9x8x8xbf16, #tpu.memory_space<vmem>>, vector<1x8x8xbf16>
    %32 = vector.shape_cast %31 : vector<1x8x8xbf16> to vector<8x8xbf16>
    %33 = vector.extract_strided_slice %1 {offsets = [0, 36], sizes = [8, 288], strides = [1, 1]} : vector<8x342xbf16> to vector<8x288xbf16>
    %cst_22 = arith.constant dense<0.000000e+00> : vector<8x288xf32>
    %34 = tpu.matmul %32, %33, %cst_22 {dimension_numbers = #tpu.dot_dimension_numbers<[1], [0], [0], [1], [0, 0, 1, 1], [], []>} : vector<8x8xbf16>, vector<8x288xbf16>, vector<8x288xf32> -> vector<8x288xf32>
    %35 = arith.addf %30, %34 : vector<8x288xf32>
    %c7 = arith.constant 7 : index
    %c0_23 = arith.constant 0 : index
    %c0_24 = arith.constant 0 : index
    %36 = vector.load %arg2[%c7, %c0_23, %c0_24] : memref<9x8x8xbf16, #tpu.memory_space<vmem>>, vector<1x8x8xbf16>
    %37 = vector.shape_cast %36 : vector<1x8x8xbf16> to vector<8x8xbf16>
    %38 = vector.extract_strided_slice %1 {offsets = [0, 37], sizes = [8, 288], strides = [1, 1]} : vector<8x342xbf16> to vector<8x288xbf16>
    %cst_25 = arith.constant dense<0.000000e+00> : vector<8x288xf32>
    %39 = tpu.matmul %37, %38, %cst_25 {dimension_numbers = #tpu.dot_dimension_numbers<[1], [0], [0], [1], [0, 0, 1, 1], [], []>} : vector<8x8xbf16>, vector<8x288xbf16>, vector<8x288xf32> -> vector<8x288xf32>
    %40 = arith.addf %35, %39 : vector<8x288xf32>
    %c8 = arith.constant 8 : index
    %c0_26 = arith.constant 0 : index
    %c0_27 = arith.constant 0 : index
    %41 = vector.load %arg2[%c8, %c0_26, %c0_27] : memref<9x8x8xbf16, #tpu.memory_space<vmem>>, vector<1x8x8xbf16>
    %42 = vector.shape_cast %41 : vector<1x8x8xbf16> to vector<8x8xbf16>
    %43 = vector.extract_strided_slice %1 {offsets = [0, 38], sizes = [8, 288], strides = [1, 1]} : vector<8x342xbf16> to vector<8x288xbf16>
    %cst_28 = arith.constant dense<0.000000e+00> : vector<8x288xf32>
    %44 = tpu.matmul %42, %43, %cst_28 {dimension_numbers = #tpu.dot_dimension_numbers<[1], [0], [0], [1], [0, 0, 1, 1], [], []>} : vector<8x8xbf16>, vector<8x288xbf16>, vector<8x288xf32> -> vector<8x288xf32>
    %45 = arith.addf %40, %44 : vector<8x288xf32>
    %c0_29 = arith.constant 0 : index
    %c0_30 = arith.constant 0 : index
    %46 = vector.load %arg3[%c0_29, %c0_30] : memref<8x1xf32, #tpu.memory_space<vmem>>, vector<8x1xf32>
    %47 = vector.broadcast %46 : vector<8x1xf32> to vector<8x288xf32>
    %48 = arith.addf %45, %47 : vector<8x288xf32>
    %cst_31 = arith.constant 0.000000e+00 : f32
    %49 = vector.broadcast %cst_31 : f32 to vector<8x288xf32>
    %50 = arith.maximumf %48, %49 : vector<8x288xf32>
    %51 = arith.truncf %50 : vector<8x288xf32> to vector<8x288xbf16>
    %c0_32 = arith.constant 0 : index
    %c0_33 = arith.constant 0 : index
    %c0_34 = arith.constant 0 : index
    %52 = vector.load %arg4[%c0_32, %c0_33, %c0_34] : memref<1x8x288xbf16, #tpu.memory_space<vmem>>, vector<1x8x288xbf16>
    %53 = vector.shape_cast %52 : vector<1x8x288xbf16> to vector<8x288xbf16>
    %54 = vector.shape_cast %51 : vector<8x288xbf16> to vector<1x8x288xbf16>
    tpu.vector_store %arg4[%c0_32, %c0_33, %c0_34], %54 {strides = array<i32>} : memref<1x8x288xbf16, #tpu.memory_space<vmem>>, vector<1x8x288xbf16>,
    return
  }
  func.func @transform_0(%arg0: i32) -> (i32, i32, i32) {
    %c0_i32 = arith.constant 0 : i32
    %c0_i32_0 = arith.constant 0 : i32
    %c0_i32_1 = arith.constant 0 : i32
    return %arg0, %c0_i32, %c0_i32_0 : i32, i32, i32
  }
  func.func @transform_1(%arg0: i32) -> (i32, i32, i32) {
    %c0_i32 = arith.constant 0 : i32
    %c0_i32_0 = arith.constant 0 : i32
    %c0_i32_1 = arith.constant 0 : i32
    %c0_i32_2 = arith.constant 0 : i32
    return %c0_i32, %c0_i32_0, %c0_i32_1 : i32, i32, i32
  }
  func.func @transform_2(%arg0: i32) -> (i32, i32) {
    %c0_i32 = arith.constant 0 : i32
    %c0_i32_0 = arith.constant 0 : i32
    %c0_i32_1 = arith.constant 0 : i32
    return %c0_i32, %c0_i32_0 : i32, i32
  }
  func.func @transform_3(%arg0: i32) -> (i32, i32, i32) {
    %c0_i32 = arith.constant 0 : i32
    %c0_i32_0 = arith.constant 0 : i32
    %c0_i32_1 = arith.constant 0 : i32
    return %arg0, %c0_i32, %c0_i32_0 : i32, i32, i32
  }
}

module attributes {stable_mosaic.version = 11 : i64} {
  func.func @_spp_kernel(%arg0: i32, %arg1: i32, %arg2: memref<1x8x812xbf16, #tpu.memory_space<vmem>>, %arg3: memref<1x4x8x448xbf16, #tpu.memory_space<vmem>>) attributes {dimension_semantics = [#tpu.dimension_semantics<parallel>, #tpu.dimension_semantics<parallel>], iteration_bounds = array<i64: 2, 1>, scalar_prefetch = 0 : i64, scratch_operands = 0 : i64, tpu.core_type = #tpu.core_type<tc>, window_params = [{transform_indices = @transform_0, window_bounds = array<i64: 1, 8, 812>}, {transform_indices = @transform_1, window_bounds = array<i64: 1, 4, 8, 448>}]} {
    %c0 = arith.constant 0 : index
    %c0_0 = arith.constant 0 : index
    %c0_1 = arith.constant 0 : index
    %0 = vector.load %arg2[%c0, %c0_0, %c0_1] : memref<1x8x812xbf16, #tpu.memory_space<vmem>>, vector<1x8x812xbf16>
    %1 = vector.shape_cast %0 : vector<1x8x812xbf16> to vector<8x812xbf16>
    %2 = vector.extract_strided_slice %1 {offsets = [0, 174], sizes = [8, 448], strides = [1, 1]} : vector<8x812xbf16> to vector<8x448xbf16>
    %c0_2 = arith.constant 0 : index
    %c0_3 = arith.constant 0 : index
    %c0_4 = arith.constant 0 : index
    %c0_5 = arith.constant 0 : index
    %3 = vector.load %arg3[%c0_2, %c0_3, %c0_4, %c0_5] : memref<1x4x8x448xbf16, #tpu.memory_space<vmem>>, vector<1x1x8x448xbf16>
    %4 = vector.shape_cast %3 : vector<1x1x8x448xbf16> to vector<8x448xbf16>
    %5 = vector.shape_cast %2 : vector<8x448xbf16> to vector<1x1x8x448xbf16>
    tpu.vector_store %arg3[%c0_2, %c0_3, %c0_4, %c0_5], %5 {strides = array<i32>} : memref<1x4x8x448xbf16, #tpu.memory_space<vmem>>, vector<1x1x8x448xbf16>,
    %6 = vector.extract_strided_slice %1 {offsets = [0, 0], sizes = [8, 808], strides = [1, 1]} : vector<8x812xbf16> to vector<8x808xbf16>
    %7 = vector.extract_strided_slice %1 {offsets = [0, 1], sizes = [8, 808], strides = [1, 1]} : vector<8x812xbf16> to vector<8x808xbf16>
    %8 = arith.maximumf %6, %7 : vector<8x808xbf16>
    %9 = vector.extract_strided_slice %1 {offsets = [0, 2], sizes = [8, 808], strides = [1, 1]} : vector<8x812xbf16> to vector<8x808xbf16>
    %10 = arith.maximumf %8, %9 : vector<8x808xbf16>
    %11 = vector.extract_strided_slice %1 {offsets = [0, 3], sizes = [8, 808], strides = [1, 1]} : vector<8x812xbf16> to vector<8x808xbf16>
    %12 = arith.maximumf %10, %11 : vector<8x808xbf16>
    %13 = vector.extract_strided_slice %1 {offsets = [0, 4], sizes = [8, 808], strides = [1, 1]} : vector<8x812xbf16> to vector<8x808xbf16>
    %14 = arith.maximumf %12, %13 : vector<8x808xbf16>
    %15 = vector.extract_strided_slice %14 {offsets = [0, 0], sizes = [8, 696], strides = [1, 1]} : vector<8x808xbf16> to vector<8x696xbf16>
    %16 = vector.extract_strided_slice %14 {offsets = [0, 28], sizes = [8, 696], strides = [1, 1]} : vector<8x808xbf16> to vector<8x696xbf16>
    %17 = arith.maximumf %15, %16 : vector<8x696xbf16>
    %18 = vector.extract_strided_slice %14 {offsets = [0, 56], sizes = [8, 696], strides = [1, 1]} : vector<8x808xbf16> to vector<8x696xbf16>
    %19 = arith.maximumf %17, %18 : vector<8x696xbf16>
    %20 = vector.extract_strided_slice %14 {offsets = [0, 84], sizes = [8, 696], strides = [1, 1]} : vector<8x808xbf16> to vector<8x696xbf16>
    %21 = arith.maximumf %19, %20 : vector<8x696xbf16>
    %22 = vector.extract_strided_slice %14 {offsets = [0, 112], sizes = [8, 696], strides = [1, 1]} : vector<8x808xbf16> to vector<8x696xbf16>
    %23 = arith.maximumf %21, %22 : vector<8x696xbf16>
    %24 = vector.extract_strided_slice %23 {offsets = [0, 116], sizes = [8, 448], strides = [1, 1]} : vector<8x696xbf16> to vector<8x448xbf16>
    %c0_6 = arith.constant 0 : index
    %c1 = arith.constant 1 : index
    %c0_7 = arith.constant 0 : index
    %c0_8 = arith.constant 0 : index
    %25 = vector.load %arg3[%c0_6, %c1, %c0_7, %c0_8] : memref<1x4x8x448xbf16, #tpu.memory_space<vmem>>, vector<1x1x8x448xbf16>
    %26 = vector.shape_cast %25 : vector<1x1x8x448xbf16> to vector<8x448xbf16>
    %27 = vector.shape_cast %24 : vector<8x448xbf16> to vector<1x1x8x448xbf16>
    tpu.vector_store %arg3[%c0_6, %c1, %c0_7, %c0_8], %27 {strides = array<i32>} : memref<1x4x8x448xbf16, #tpu.memory_space<vmem>>, vector<1x1x8x448xbf16>,
    %28 = vector.extract_strided_slice %23 {offsets = [0, 0], sizes = [8, 692], strides = [1, 1]} : vector<8x696xbf16> to vector<8x692xbf16>
    %29 = vector.extract_strided_slice %23 {offsets = [0, 1], sizes = [8, 692], strides = [1, 1]} : vector<8x696xbf16> to vector<8x692xbf16>
    %30 = arith.maximumf %28, %29 : vector<8x692xbf16>
    %31 = vector.extract_strided_slice %23 {offsets = [0, 2], sizes = [8, 692], strides = [1, 1]} : vector<8x696xbf16> to vector<8x692xbf16>
    %32 = arith.maximumf %30, %31 : vector<8x692xbf16>
    %33 = vector.extract_strided_slice %23 {offsets = [0, 3], sizes = [8, 692], strides = [1, 1]} : vector<8x696xbf16> to vector<8x692xbf16>
    %34 = arith.maximumf %32, %33 : vector<8x692xbf16>
    %35 = vector.extract_strided_slice %23 {offsets = [0, 4], sizes = [8, 692], strides = [1, 1]} : vector<8x696xbf16> to vector<8x692xbf16>
    %36 = arith.maximumf %34, %35 : vector<8x692xbf16>
    %37 = vector.extract_strided_slice %36 {offsets = [0, 0], sizes = [8, 580], strides = [1, 1]} : vector<8x692xbf16> to vector<8x580xbf16>
    %38 = vector.extract_strided_slice %36 {offsets = [0, 28], sizes = [8, 580], strides = [1, 1]} : vector<8x692xbf16> to vector<8x580xbf16>
    %39 = arith.maximumf %37, %38 : vector<8x580xbf16>
    %40 = vector.extract_strided_slice %36 {offsets = [0, 56], sizes = [8, 580], strides = [1, 1]} : vector<8x692xbf16> to vector<8x580xbf16>
    %41 = arith.maximumf %39, %40 : vector<8x580xbf16>
    %42 = vector.extract_strided_slice %36 {offsets = [0, 84], sizes = [8, 580], strides = [1, 1]} : vector<8x692xbf16> to vector<8x580xbf16>
    %43 = arith.maximumf %41, %42 : vector<8x580xbf16>
    %44 = vector.extract_strided_slice %36 {offsets = [0, 112], sizes = [8, 580], strides = [1, 1]} : vector<8x692xbf16> to vector<8x580xbf16>
    %45 = arith.maximumf %43, %44 : vector<8x580xbf16>
    %46 = vector.extract_strided_slice %45 {offsets = [0, 58], sizes = [8, 448], strides = [1, 1]} : vector<8x580xbf16> to vector<8x448xbf16>
    %c0_9 = arith.constant 0 : index
    %c2 = arith.constant 2 : index
    %c0_10 = arith.constant 0 : index
    %c0_11 = arith.constant 0 : index
    %47 = vector.load %arg3[%c0_9, %c2, %c0_10, %c0_11] : memref<1x4x8x448xbf16, #tpu.memory_space<vmem>>, vector<1x1x8x448xbf16>
    %48 = vector.shape_cast %47 : vector<1x1x8x448xbf16> to vector<8x448xbf16>
    %49 = vector.shape_cast %46 : vector<8x448xbf16> to vector<1x1x8x448xbf16>
    tpu.vector_store %arg3[%c0_9, %c2, %c0_10, %c0_11], %49 {strides = array<i32>} : memref<1x4x8x448xbf16, #tpu.memory_space<vmem>>, vector<1x1x8x448xbf16>,
    %50 = vector.extract_strided_slice %45 {offsets = [0, 0], sizes = [8, 576], strides = [1, 1]} : vector<8x580xbf16> to vector<8x576xbf16>
    %51 = vector.extract_strided_slice %45 {offsets = [0, 1], sizes = [8, 576], strides = [1, 1]} : vector<8x580xbf16> to vector<8x576xbf16>
    %52 = arith.maximumf %50, %51 : vector<8x576xbf16>
    %53 = vector.extract_strided_slice %45 {offsets = [0, 2], sizes = [8, 576], strides = [1, 1]} : vector<8x580xbf16> to vector<8x576xbf16>
    %54 = arith.maximumf %52, %53 : vector<8x576xbf16>
    %55 = vector.extract_strided_slice %45 {offsets = [0, 3], sizes = [8, 576], strides = [1, 1]} : vector<8x580xbf16> to vector<8x576xbf16>
    %56 = arith.maximumf %54, %55 : vector<8x576xbf16>
    %57 = vector.extract_strided_slice %45 {offsets = [0, 4], sizes = [8, 576], strides = [1, 1]} : vector<8x580xbf16> to vector<8x576xbf16>
    %58 = arith.maximumf %56, %57 : vector<8x576xbf16>
    %59 = vector.extract_strided_slice %58 {offsets = [0, 0], sizes = [8, 464], strides = [1, 1]} : vector<8x576xbf16> to vector<8x464xbf16>
    %60 = vector.extract_strided_slice %58 {offsets = [0, 28], sizes = [8, 464], strides = [1, 1]} : vector<8x576xbf16> to vector<8x464xbf16>
    %61 = arith.maximumf %59, %60 : vector<8x464xbf16>
    %62 = vector.extract_strided_slice %58 {offsets = [0, 56], sizes = [8, 464], strides = [1, 1]} : vector<8x576xbf16> to vector<8x464xbf16>
    %63 = arith.maximumf %61, %62 : vector<8x464xbf16>
    %64 = vector.extract_strided_slice %58 {offsets = [0, 84], sizes = [8, 464], strides = [1, 1]} : vector<8x576xbf16> to vector<8x464xbf16>
    %65 = arith.maximumf %63, %64 : vector<8x464xbf16>
    %66 = vector.extract_strided_slice %58 {offsets = [0, 112], sizes = [8, 464], strides = [1, 1]} : vector<8x576xbf16> to vector<8x464xbf16>
    %67 = arith.maximumf %65, %66 : vector<8x464xbf16>
    %68 = vector.extract_strided_slice %67 {offsets = [0, 0], sizes = [8, 448], strides = [1, 1]} : vector<8x464xbf16> to vector<8x448xbf16>
    %c0_12 = arith.constant 0 : index
    %c3 = arith.constant 3 : index
    %c0_13 = arith.constant 0 : index
    %c0_14 = arith.constant 0 : index
    %69 = vector.load %arg3[%c0_12, %c3, %c0_13, %c0_14] : memref<1x4x8x448xbf16, #tpu.memory_space<vmem>>, vector<1x1x8x448xbf16>
    %70 = vector.shape_cast %69 : vector<1x1x8x448xbf16> to vector<8x448xbf16>
    %71 = vector.shape_cast %68 : vector<8x448xbf16> to vector<1x1x8x448xbf16>
    tpu.vector_store %arg3[%c0_12, %c3, %c0_13, %c0_14], %71 {strides = array<i32>} : memref<1x4x8x448xbf16, #tpu.memory_space<vmem>>, vector<1x1x8x448xbf16>,
    return
  }
  func.func @transform_0(%arg0: i32, %arg1: i32) -> (i32, i32, i32) {
    %c0_i32 = arith.constant 0 : i32
    %c0_i32_0 = arith.constant 0 : i32
    return %arg0, %arg1, %c0_i32 : i32, i32, i32
  }
  func.func @transform_1(%arg0: i32, %arg1: i32) -> (i32, i32, i32, i32) {
    %c0_i32 = arith.constant 0 : i32
    %c0_i32_0 = arith.constant 0 : i32
    %c0_i32_1 = arith.constant 0 : i32
    return %arg0, %c0_i32, %arg1, %c0_i32_0 : i32, i32, i32, i32
  }
}

module attributes {stable_mosaic.version = 11 : i64} {
  func.func @kernel(%arg0: i32, %arg1: i32, %arg2: memref<1x32x256xbf16, #tpu.memory_space<vmem>>, %arg3: memref<8x32xbf16, #tpu.memory_space<vmem>>, %arg4: memref<8x1xf32, #tpu.memory_space<vmem>>, %arg5: memref<1x8x256xbf16, #tpu.memory_space<vmem>>) attributes {dimension_semantics = [#tpu.dimension_semantics<parallel>, #tpu.dimension_semantics<parallel>], iteration_bounds = array<i64: 2, 1>, scalar_prefetch = 0 : i64, scratch_operands = 0 : i64, tpu.core_type = #tpu.core_type<tc>, window_params = [{transform_indices = @transform_0, window_bounds = array<i64: 1, 32, 256>}, {pipeline_mode = #tpu.pipeline_mode<synchronous>, transform_indices = @transform_1, window_bounds = array<i64: 8, 32>}, {pipeline_mode = #tpu.pipeline_mode<synchronous>, transform_indices = @transform_2, window_bounds = array<i64: 8, 1>}, {transform_indices = @transform_3, window_bounds = array<i64: 1, 8, 256>}]} {
    %c0 = arith.constant 0 : index
    %c0_0 = arith.constant 0 : index
    %0 = vector.load %arg3[%c0, %c0_0] : memref<8x32xbf16, #tpu.memory_space<vmem>>, vector<8x32xbf16>
    %c0_1 = arith.constant 0 : index
    %c0_2 = arith.constant 0 : index
    %c0_3 = arith.constant 0 : index
    %1 = vector.load %arg2[%c0_1, %c0_2, %c0_3] : memref<1x32x256xbf16, #tpu.memory_space<vmem>>, vector<1x32x256xbf16>
    %2 = vector.shape_cast %1 : vector<1x32x256xbf16> to vector<32x256xbf16>
    %cst = arith.constant dense<0.000000e+00> : vector<8x256xf32>
    %3 = tpu.matmul %0, %2, %cst {dimension_numbers = #tpu.dot_dimension_numbers<[1], [0], [0], [1], [0, 0, 1, 1], [], []>} : vector<8x32xbf16>, vector<32x256xbf16>, vector<8x256xf32> -> vector<8x256xf32>
    %c0_4 = arith.constant 0 : index
    %c0_5 = arith.constant 0 : index
    %4 = vector.load %arg4[%c0_4, %c0_5] : memref<8x1xf32, #tpu.memory_space<vmem>>, vector<8x1xf32>
    %5 = vector.broadcast %4 : vector<8x1xf32> to vector<8x256xf32>
    %6 = arith.addf %3, %5 : vector<8x256xf32>
    %cst_6 = arith.constant 0.000000e+00 : f32
    %7 = vector.broadcast %cst_6 : f32 to vector<8x256xf32>
    %8 = arith.maximumf %6, %7 : vector<8x256xf32>
    %9 = arith.truncf %8 : vector<8x256xf32> to vector<8x256xbf16>
    %c0_7 = arith.constant 0 : index
    %c0_8 = arith.constant 0 : index
    %c0_9 = arith.constant 0 : index
    %10 = vector.load %arg5[%c0_7, %c0_8, %c0_9] : memref<1x8x256xbf16, #tpu.memory_space<vmem>>, vector<1x8x256xbf16>
    %11 = vector.shape_cast %10 : vector<1x8x256xbf16> to vector<8x256xbf16>
    %12 = vector.shape_cast %9 : vector<8x256xbf16> to vector<1x8x256xbf16>
    tpu.vector_store %arg5[%c0_7, %c0_8, %c0_9], %12 {strides = array<i32>} : memref<1x8x256xbf16, #tpu.memory_space<vmem>>, vector<1x8x256xbf16>,
    return
  }
  func.func @transform_0(%arg0: i32, %arg1: i32) -> (i32, i32, i32) {
    %c0_i32 = arith.constant 0 : i32
    %c0_i32_0 = arith.constant 0 : i32
    return %arg0, %c0_i32, %arg1 : i32, i32, i32
  }
  func.func @transform_1(%arg0: i32, %arg1: i32) -> (i32, i32) {
    %c0_i32 = arith.constant 0 : i32
    %c0_i32_0 = arith.constant 0 : i32
    %c0_i32_1 = arith.constant 0 : i32
    return %c0_i32, %c0_i32_0 : i32, i32
  }
  func.func @transform_2(%arg0: i32, %arg1: i32) -> (i32, i32) {
    %c0_i32 = arith.constant 0 : i32
    %c0_i32_0 = arith.constant 0 : i32
    %c0_i32_1 = arith.constant 0 : i32
    return %c0_i32, %c0_i32_0 : i32, i32
  }
  func.func @transform_3(%arg0: i32, %arg1: i32) -> (i32, i32, i32) {
    %c0_i32 = arith.constant 0 : i32
    %c0_i32_0 = arith.constant 0 : i32
    return %arg0, %c0_i32, %arg1 : i32, i32, i32
  }
}

module attributes {stable_mosaic.version = 11 : i64} {
  func.func @kernel(%arg0: i32, %arg1: i32, %arg2: memref<1x8x256xbf16, #tpu.memory_space<vmem>>, %arg3: memref<1x8x256xbf16, #tpu.memory_space<vmem>>, %arg4: memref<8x8xbf16, #tpu.memory_space<vmem>>, %arg5: memref<8x8xbf16, #tpu.memory_space<vmem>>, %arg6: memref<8x1xf32, #tpu.memory_space<vmem>>, %arg7: memref<1x8x256xbf16, #tpu.memory_space<vmem>>) attributes {dimension_semantics = [#tpu.dimension_semantics<parallel>, #tpu.dimension_semantics<parallel>], iteration_bounds = array<i64: 2, 1>, scalar_prefetch = 0 : i64, scratch_operands = 0 : i64, tpu.core_type = #tpu.core_type<tc>, window_params = [{transform_indices = @transform_0, window_bounds = array<i64: 1, 8, 256>}, {transform_indices = @transform_1, window_bounds = array<i64: 1, 8, 256>}, {pipeline_mode = #tpu.pipeline_mode<synchronous>, transform_indices = @transform_2, window_bounds = array<i64: 8, 8>}, {pipeline_mode = #tpu.pipeline_mode<synchronous>, transform_indices = @transform_3, window_bounds = array<i64: 8, 8>}, {pipeline_mode = #tpu.pipeline_mode<synchronous>, transform_indices = @transform_4, window_bounds = array<i64: 8, 1>}, {transform_indices = @transform_5, window_bounds = array<i64: 1, 8, 256>}]} {
    %c0 = arith.constant 0 : index
    %c0_0 = arith.constant 0 : index
    %0 = vector.load %arg4[%c0, %c0_0] : memref<8x8xbf16, #tpu.memory_space<vmem>>, vector<8x8xbf16>
    %c0_1 = arith.constant 0 : index
    %c0_2 = arith.constant 0 : index
    %c0_3 = arith.constant 0 : index
    %1 = vector.load %arg2[%c0_1, %c0_2, %c0_3] : memref<1x8x256xbf16, #tpu.memory_space<vmem>>, vector<1x8x256xbf16>
    %2 = vector.shape_cast %1 : vector<1x8x256xbf16> to vector<8x256xbf16>
    %cst = arith.constant dense<0.000000e+00> : vector<8x256xf32>
    %3 = tpu.matmul %0, %2, %cst {dimension_numbers = #tpu.dot_dimension_numbers<[1], [0], [0], [1], [0, 0, 1, 1], [], []>} : vector<8x8xbf16>, vector<8x256xbf16>, vector<8x256xf32> -> vector<8x256xf32>
    %c0_4 = arith.constant 0 : index
    %c0_5 = arith.constant 0 : index
    %4 = vector.load %arg5[%c0_4, %c0_5] : memref<8x8xbf16, #tpu.memory_space<vmem>>, vector<8x8xbf16>
    %c0_6 = arith.constant 0 : index
    %c0_7 = arith.constant 0 : index
    %c0_8 = arith.constant 0 : index
    %5 = vector.load %arg3[%c0_6, %c0_7, %c0_8] : memref<1x8x256xbf16, #tpu.memory_space<vmem>>, vector<1x8x256xbf16>
    %6 = vector.shape_cast %5 : vector<1x8x256xbf16> to vector<8x256xbf16>
    %cst_9 = arith.constant dense<0.000000e+00> : vector<8x256xf32>
    %7 = tpu.matmul %4, %6, %cst_9 {dimension_numbers = #tpu.dot_dimension_numbers<[1], [0], [0], [1], [0, 0, 1, 1], [], []>} : vector<8x8xbf16>, vector<8x256xbf16>, vector<8x256xf32> -> vector<8x256xf32>
    %8 = arith.addf %3, %7 : vector<8x256xf32>
    %c0_10 = arith.constant 0 : index
    %c0_11 = arith.constant 0 : index
    %9 = vector.load %arg6[%c0_10, %c0_11] : memref<8x1xf32, #tpu.memory_space<vmem>>, vector<8x1xf32>
    %10 = vector.broadcast %9 : vector<8x1xf32> to vector<8x256xf32>
    %11 = arith.addf %8, %10 : vector<8x256xf32>
    %cst_12 = arith.constant 0.000000e+00 : f32
    %12 = vector.broadcast %cst_12 : f32 to vector<8x256xf32>
    %13 = arith.maximumf %11, %12 : vector<8x256xf32>
    %14 = arith.truncf %13 : vector<8x256xf32> to vector<8x256xbf16>
    %c0_13 = arith.constant 0 : index
    %c0_14 = arith.constant 0 : index
    %c0_15 = arith.constant 0 : index
    %15 = vector.load %arg7[%c0_13, %c0_14, %c0_15] : memref<1x8x256xbf16, #tpu.memory_space<vmem>>, vector<1x8x256xbf16>
    %16 = vector.shape_cast %15 : vector<1x8x256xbf16> to vector<8x256xbf16>
    %17 = vector.shape_cast %14 : vector<8x256xbf16> to vector<1x8x256xbf16>
    tpu.vector_store %arg7[%c0_13, %c0_14, %c0_15], %17 {strides = array<i32>} : memref<1x8x256xbf16, #tpu.memory_space<vmem>>, vector<1x8x256xbf16>,
    return
  }
  func.func @transform_0(%arg0: i32, %arg1: i32) -> (i32, i32, i32) {
    %c0_i32 = arith.constant 0 : i32
    %c0_i32_0 = arith.constant 0 : i32
    return %arg0, %c0_i32, %arg1 : i32, i32, i32
  }
  func.func @transform_1(%arg0: i32, %arg1: i32) -> (i32, i32, i32) {
    %c0_i32 = arith.constant 0 : i32
    %c0_i32_0 = arith.constant 0 : i32
    return %arg0, %c0_i32, %arg1 : i32, i32, i32
  }
  func.func @transform_2(%arg0: i32, %arg1: i32) -> (i32, i32) {
    %c0_i32 = arith.constant 0 : i32
    %c0_i32_0 = arith.constant 0 : i32
    %c0_i32_1 = arith.constant 0 : i32
    return %c0_i32, %c0_i32_0 : i32, i32
  }
  func.func @transform_3(%arg0: i32, %arg1: i32) -> (i32, i32) {
    %c0_i32 = arith.constant 0 : i32
    %c0_i32_0 = arith.constant 0 : i32
    %c0_i32_1 = arith.constant 0 : i32
    return %c0_i32, %c0_i32_0 : i32, i32
  }
  func.func @transform_4(%arg0: i32, %arg1: i32) -> (i32, i32) {
    %c0_i32 = arith.constant 0 : i32
    %c0_i32_0 = arith.constant 0 : i32
    %c0_i32_1 = arith.constant 0 : i32
    return %c0_i32, %c0_i32_0 : i32, i32
  }
  func.func @transform_5(%arg0: i32, %arg1: i32) -> (i32, i32, i32) {
    %c0_i32 = arith.constant 0 : i32
    %c0_i32_0 = arith.constant 0 : i32
    return %arg0, %c0_i32, %arg1 : i32, i32, i32
  }
}

</mosaic_0001>

<llo_original>
// kernel: tpu_custom_call.1
$region0: #{tpu_custom_call.1}
  #allocation0 [shape = 'u32[]', space=smem, size = 0x4, offset = 0x4, fixed_abs, tag = 'smem constant byte address 0x4 - core index']
  #allocation1 [shape = 'u32[144,128]{1,0:T(1,128)}', space=vmem, size = 0x12000, scoped, tag = 'internal scratch']
  %s0 = inlined_call_operand.hbm [shape: f32[8,128], index: 0, kind: input, shape index: {}]
  %s1 = inlined_call_operand.hbm [shape: f32[8,128], index: 1, kind: output, shape index: {}]
  %s2 = sld [smem:[#allocation0]]
  $region41: #{tpu_custom_call.1} parent=0
    _
  %s4 = ssub.s32 1, %s2
  %s5 = scalar_select 0, %s4, %s2
  $region1: #{tpu_custom_call.1} parent=0
    #allocation2 [shape = 'u8[4096]{0}', space=vmem, size = 0x1000, scoped, tag = 'input window, operand 0, single buffered']
    #allocation3 [shape = 's32[2]{0}', space=sflag, size = 0x8, scoped, tag = 'scoped memory for tpu_custom_call.1']
    #allocation4 [shape = 's32[2]{0}', space=sflag, size = 0x8, scoped, tag = 'scoped memory for tpu_custom_call.1']
    #allocation5 [shape = 'u8[4096]{0}', space=vmem, size = 0x1000, scoped, tag = 'output window, operand 0, single buffered']
    %6 = vsyncpa [#allocation3], 0
    %7 = vsyncpa [#allocation4], 0
    loop: start=0, step=1, limit=4
    $region2: #{tpu_custom_call.1} parent=1 // loop_pre_header
      _
    $region3: #{tpu_custom_call.1} parent=1 // loop_header
      %s9 = sphi 0, %s13
      %p10 = scmp.ge.s32.totalorder %s9, 4
      %s17 = sphi 0, %s17
      %s19 = sphi 0, %s17
      %s20 = sphi 0, %s19
      %s34 = sphi 0, %s20
      %s38 = sphi 0, %s38
      %s40 = sphi 0, %s38
      %s41 = sphi 0, %s40
      %s55 = sphi 0, %s41
    $region4: #{tpu_custom_call.1} parent=1 // loop_header_branch
      %12 = sbr.rel (%p10) target = $region8
    $region5: #{tpu_custom_call.1} parent=1 // loop_body
      %s14 = ssub.s32 %s9, 1
      %s15 = ssub.s32 %s9, 2
      %s16 = sadd.s32 %s9, 1
      %s18 = sadd.s32 %s17, 1
      %p21 = scmp.eq.s32.totalorder %s9, 1
      %p22 = scmp.ne.s32.totalorder %s17, %s19
      %p23 = scmp.eq.s32.totalorder %s9, 0
      %p24 = por %p22, %p23
      %p25 = scmp.ne.s32.totalorder %s17, %s19
      %p26 = scmp.eq.s32.totalorder %s14, 1
      %p27 = por %p25, %p26
      %p28 = scmp.ne.s32.totalorder %s19, %s20
      %p29 = scmp.eq.s32.totalorder %s14, 0
      %p30 = por %p28, %p29
      %p31 = scmp.ne.s32.totalorder %s19, %s20
      %p32 = scmp.eq.s32.totalorder %s15, 1
      %p33 = por %p31, %p32
      %p35 = scmp.ne.s32.totalorder %s20, %s34
      %p36 = scmp.eq.s32.totalorder %s15, 0
      %p37 = por %p35, %p36
      %s39 = sadd.s32 %s38, 1
      %p42 = scmp.eq.s32.totalorder %s9, 1
      %p43 = scmp.ne.s32.totalorder %s38, %s40
      %p44 = scmp.eq.s32.totalorder %s9, 0
      %p45 = por %p43, %p44
      %p46 = scmp.ne.s32.totalorder %s38, %s40
      %p47 = scmp.eq.s32.totalorder %s14, 1
      %p48 = por %p46, %p47
      %p49 = scmp.ne.s32.totalorder %s40, %s41
      %p50 = scmp.eq.s32.totalorder %s14, 0
      %p51 = por %p49, %p50
      %p52 = scmp.ne.s32.totalorder %s40, %s41
      %p53 = scmp.eq.s32.totalorder %s15, 1
      %p54 = por %p52, %p53
      %p56 = scmp.ne.s32.totalorder %s41, %s55
      %p57 = scmp.eq.s32.totalorder %s15, 0
      %p58 = por %p56, %p57
      %p59 = scmp.le.s32.totalorder 1, %s9
      %p60 = scmp.lt.s32.totalorder %s9, 3
      %p61 = pnand %p59, %p60
      %p62 = pneg %p61
      // Predicated region
      $region9: #{tpu_custom_call.1} parent=5 // pred_check
        _
      $region10: #{tpu_custom_call.1} parent=5 // pred_check_branch
        %64 = sbr.rel (%p61) target = $region12
      $region11: #{tpu_custom_call.1} parent=5 // pred_region
        %s65 = ssub.s32 %s9, 1
        // Predicated region
        $region13: #{tpu_custom_call.1} parent=11 // pred_check
          %p66 = pneg %p30
        $region14: #{tpu_custom_call.1} parent=11 // pred_check_branch
          %68 = sbr.rel (%p66) target = $region16
        $region15: #{tpu_custom_call.1} parent=11 // pred_region
          %s70 = ssub.s32 128, 128
          %71 = vsyncadd [#allocation3], %s70
          %s73 = sshll.u32 [#allocation2], 4
          %s74 = int_to_ptr.vmem [resolvable:$true] %s73
          %76 = dma.hbm_to_vmem [thread:$0]  %s0, 128, %s74, [#allocation3]
        $region16: #{tpu_custom_call.1} parent=11 // pred_fallthru
          _
      $region12: #{tpu_custom_call.1} parent=5 // pred_fallthru
        _
      %p77 = scmp.lt.s32.totalorder %s9, 2
      // Predicated region
      $region17: #{tpu_custom_call.1} parent=5 // pred_check
        %p78 = pneg %p77
      $region18: #{tpu_custom_call.1} parent=5 // pred_check_branch
        %80 = sbr.rel (%p78) target = $region20
      $region19: #{tpu_custom_call.1} parent=5 // pred_region
        _
      $region20: #{tpu_custom_call.1} parent=5 // pred_fallthru
        _
      %p81 = scmp.le.s32.totalorder 1, %s9
      %p82 = scmp.lt.s32.totalorder %s9, 3
      %p83 = pnand %p81, %p82
      %p84 = pneg %p83
      // Predicated region
      $region21: #{tpu_custom_call.1} parent=5 // pred_check
        _
      $region22: #{tpu_custom_call.1} parent=5 // pred_check_branch
        %86 = sbr.rel (%p83) target = $region24
      $region23: #{tpu_custom_call.1} parent=5 // pred_region
        %s87 = ssub.s32 %s9, 1
        // Predicated region
        $region25: #{tpu_custom_call.1} parent=23 // pred_check
          %p88 = pneg %p30
        $region26: #{tpu_custom_call.1} parent=23 // pred_check_branch
          %90 = sbr.rel (%p88) target = $region28
        $region27: #{tpu_custom_call.1} parent=23 // pred_region
          %91 = dma.done [#allocation3], 128
        $region28: #{tpu_custom_call.1} parent=23 // pred_fallthru
          _
        %p92 = pneg %p30
        %p93 = pneg %p27
        %p94 = pneg %p51
        %p95 = pneg %p48
        %v96 = vld [vmem:[#allocation2] sm:$0xff]
        %v97 = vadd.f32 %v96, 1.0
        %98 = vst [vmem:[#allocation5] sm:$0xff] %v97
        // Predicated region
        $region29: #{tpu_custom_call.1} parent=23 // pred_check
          %p99 = pneg %p48
        $region30: #{tpu_custom_call.1} parent=23 // pred_check_branch
          %101 = sbr.rel (%p99) target = $region32
        $region31: #{tpu_custom_call.1} parent=23 // pred_region
          %s103 = ssub.s32 128, 128
          %104 = vsyncadd [#allocation4], %s103
          %s106 = sshll.u32 [#allocation5], 4
          %s107 = int_to_ptr.vmem [resolvable:$true] %s106
          %109 = dma.vmem_to_hbm [thread:$0]  %s107, 128, %s1, [#allocation4]
        $region32: #{tpu_custom_call.1} parent=23 // pred_fallthru
          _
        // Predicated region
        $region33: #{tpu_custom_call.1} parent=23 // pred_check
          %p110 = pneg %p48
        $region34: #{tpu_custom_call.1} parent=23 // pred_check_branch
          %112 = sbr.rel (%p110) target = $region36
        $region35: #{tpu_custom_call.1} parent=23 // pred_region
          %113 = dma.done [#allocation4], 128
        $region36: #{tpu_custom_call.1} parent=23 // pred_fallthru
          _
      $region24: #{tpu_custom_call.1} parent=5 // pred_fallthru
        _
      %p114 = scmp.le.s32.totalorder 2, %s9
      // Predicated region
      $region37: #{tpu_custom_call.1} parent=5 // pred_check
        %p115 = pneg %p114
      $region38: #{tpu_custom_call.1} parent=5 // pred_check_branch
        %117 = sbr.rel (%p115) target = $region40
      $region39: #{tpu_custom_call.1} parent=5 // pred_region
        %s118 = ssub.s32 %s9, 2
      $region40: #{tpu_custom_call.1} parent=5 // pred_fallthru
        _
    $region6: #{tpu_custom_call.1} parent=1 // loop_footer
      %s13 = sadd.s32 1, %s9
    $region7: #{tpu_custom_call.1} parent=1 // loop_footer_branch
      %8 = sbr.rel target = $region3
    $region8: #{tpu_custom_call.1} parent=1 // loop_exit
      _
    %119 = vsyncpa [#allocation3], 1
    %s120 = scalar_lea.sflag [#allocation3], 1
    %121 = vsyncpa %s120, 1
    %122 = vsyncpa [#allocation4], 1
    %s123 = scalar_lea.sflag [#allocation4], 1
    %124 = vsyncpa %s123, 1

// kernel: sppcspc_forward.8
$region0: #{sppcspc_forward.8}
  #allocation0 [shape = 'u32[]', space=smem, size = 0x4, offset = 0x4, fixed_abs, tag = 'smem constant byte address 0x4 - core index']
  #allocation1 [shape = 'u32[144,128]{1,0:T(1,128)}', space=vmem, size = 0x12000, scoped, tag = 'internal scratch']
  %s0 = inlined_call_operand.hbm [shape: bf16[2,4,256], index: 0, kind: input, shape index: {}]
  %s1 = inlined_call_operand.hbm [shape: bf16[8,4], index: 1, kind: input, shape index: {}]
  %s2 = inlined_call_operand.hbm [shape: f32[8,1], index: 2, kind: input, shape index: {}]
  %s3 = inlined_call_operand.hbm [shape: bf16[2,8,256], index: 3, kind: output, shape index: {}]
  %s4 = sld [smem:[#allocation0]]
  $region57: #{sppcspc_forward.8} parent=0
    _
  %s6 = ssub.s32 1, %s4
  %s7 = scalar_select 0, %s6, %s4
  $region1: #{sppcspc_forward.8} parent=0
    #allocation2 [shape = 'u8[4096]{0}', space=vmem, size = 0x1000, scoped, tag = 'input window, operand 0']
    #allocation3 [shape = 's32[2]{0}', space=sflag, size = 0x8, scoped, tag = 'scoped memory for sppcspc_forward.8']
    #allocation4 [shape = 's32[2]{0}', space=sflag, size = 0x8, scoped, tag = 'scoped memory for sppcspc_forward.8']
    #allocation5 [shape = 'u8[2048]{0}', space=vmem, size = 0x800, scoped, tag = 'input window, operand 1, single buffered']
    #allocation6 [shape = 's32[1]{0}', space=sflag, size = 0x4, scoped, tag = 'scoped memory for sppcspc_forward.8']
    #allocation7 [shape = 'u8[4096]{0}', space=vmem, size = 0x1000, scoped, tag = 'input window, operand 2, single buffered']
    #allocation8 [shape = 'u8[8192]{0}', space=vmem, size = 0x2000, scoped, tag = 'output window, operand 0']
    %8 = vsyncpa [#allocation3], 0
    %s9 = scalar_lea.sflag [#allocation3], 1
    %10 = vsyncpa %s9, 0
    %11 = vsyncpa [#allocation6], 0
    %12 = vsyncpa [#allocation4], 0
    %s13 = scalar_lea.sflag [#allocation4], 1
    %14 = vsyncpa %s13, 0
    loop: start=0, step=1, limit=4
    $region2: #{sppcspc_forward.8} parent=1 // loop_pre_header
      _
    $region3: #{sppcspc_forward.8} parent=1 // loop_header
      %s16 = sphi 0, %s20
      %p17 = scmp.ge.s32.totalorder %s16, 4
      %s23 = sphi 0, %s35
      %s24 = sphi 0, %s31
      %s25 = sphi 0, %s23
      %s26 = sphi 0, %s24
      %s27 = sphi 0, %s25
      %s28 = sphi 0, %s26
      %s40 = sphi 0, %s42
      %s43 = sphi 0, %s40
      %s44 = sphi 0, %s43
      %s60 = sphi 0, %s44
      %s64 = sphi 0, %s64
      %s66 = sphi 0, %s64
      %s67 = sphi 0, %s66
      %s81 = sphi 0, %s67
      %s85 = sphi 0, %s85
      %s87 = sphi 0, %s85
      %s88 = sphi 0, %s87
      %s102 = sphi 0, %s88
      %s110 = sphi 0, %s112
      %s113 = sphi 0, %s110
      %s114 = sphi 0, %s113
      %s130 = sphi 0, %s114
    $region4: #{sppcspc_forward.8} parent=1 // loop_header_branch
      %19 = sbr.rel (%p17) target = $region8
    $region5: #{sppcspc_forward.8} parent=1 // loop_body
      %s21 = ssub.s32 %s16, 1
      %s22 = ssub.s32 %s16, 2
      %s29 = sadd.s32 1, %s24
      %p30 = scmp.ge.s32.totalorder %s29, 1
      %s31 = scalar_select %p30, 0, %s29
      %s32 = sadd.s32 1, %s23
      %s33 = scalar_select %p30, %s32, %s23
      %p34 = scmp.ge.s32.totalorder %s33, 2
      %s35 = scalar_select %p34, 0, %s33
      %s36 = ssub.s32 %s23, %s35
      %s37 = ssub.s32 %s24, %s31
      %s38 = sor.u32 %s36, %s37
      %p39 = scmp.eq.s32.totalorder %s38, 0
      %s41 = sadd.s32 %s40, 1
      %s42 = scalar_select %p39, %s40, %s41
      %p45 = pneg %p39
      %p46 = scmp.eq.s32.totalorder %s16, 1
      %p47 = por %p45, %p46
      %p48 = scmp.ne.s32.totalorder %s40, %s43
      %p49 = scmp.eq.s32.totalorder %s16, 0
      %p50 = por %p48, %p49
      %p51 = scmp.ne.s32.totalorder %s40, %s43
      %p52 = scmp.eq.s32.totalorder %s21, 1
      %p53 = por %p51, %p52
      %p54 = scmp.ne.s32.totalorder %s43, %s44
      %p55 = scmp.eq.s32.totalorder %s21, 0
      %p56 = por %p54, %p55
      %p57 = scmp.ne.s32.totalorder %s43, %s44
      %p58 = scmp.eq.s32.totalorder %s22, 1
      %p59 = por %p57, %p58
      %p61 = scmp.ne.s32.totalorder %s44, %s60
      %p62 = scmp.eq.s32.totalorder %s22, 0
      %p63 = por %p61, %p62
      %s65 = sadd.s32 %s64, 1
      %p68 = scmp.eq.s32.totalorder %s16, 1
      %p69 = scmp.ne.s32.totalorder %s64, %s66
      %p70 = scmp.eq.s32.totalorder %s16, 0
      %p71 = por %p69, %p70
      %p72 = scmp.ne.s32.totalorder %s64, %s66
      %p73 = scmp.eq.s32.totalorder %s21, 1
      %p74 = por %p72, %p73
      %p75 = scmp.ne.s32.totalorder %s66, %s67
      %p76 = scmp.eq.s32.totalorder %s21, 0
      %p77 = por %p75, %p76
      %p78 = scmp.ne.s32.totalorder %s66, %s67
      %p79 = scmp.eq.s32.totalorder %s22, 1
      %p80 = por %p78, %p79
      %p82 = scmp.ne.s32.totalorder %s67, %s81
      %p83 = scmp.eq.s32.totalorder %s22, 0
      %p84 = por %p82, %p83
      %s86 = sadd.s32 %s85, 1
      %p89 = scmp.eq.s32.totalorder %s16, 1
      %p90 = scmp.ne.s32.totalorder %s85, %s87
      %p91 = scmp.eq.s32.totalorder %s16, 0
      %p92 = por %p90, %p91
      %p93 = scmp.ne.s32.totalorder %s85, %s87
      %p94 = scmp.eq.s32.totalorder %s21, 1
      %p95 = por %p93, %p94
      %p96 = scmp.ne.s32.totalorder %s87, %s88
      %p97 = scmp.eq.s32.totalorder %s21, 0
      %p98 = por %p96, %p97
      %p99 = scmp.ne.s32.totalorder %s87, %s88
      %p100 = scmp.eq.s32.totalorder %s22, 1
      %p101 = por %p99, %p100
      %p103 = scmp.ne.s32.totalorder %s88, %s102
      %p104 = scmp.eq.s32.totalorder %s22, 0
      %p105 = por %p103, %p104
      %s106 = ssub.s32 %s23, %s35
      %s107 = ssub.s32 %s24, %s31
      %s108 = sor.u32 %s106, %s107
      %p109 = scmp.eq.s32.totalorder %s108, 0
      %s111 = sadd.s32 %s110, 1
      %s112 = scalar_select %p109, %s110, %s111
      %p115 = pneg %p109
      %p116 = scmp.eq.s32.totalorder %s16, 1
      %p117 = por %p115, %p116
      %p118 = scmp.ne.s32.totalorder %s110, %s113
      %p119 = scmp.eq.s32.totalorder %s16, 0
      %p120 = por %p118, %p119
      %p121 = scmp.ne.s32.totalorder %s110, %s113
      %p122 = scmp.eq.s32.totalorder %s21, 1
      %p123 = por %p121, %p122
      %p124 = scmp.ne.s32.totalorder %s113, %s114
      %p125 = scmp.eq.s32.totalorder %s21, 0
      %p126 = por %p124, %p125
      %p127 = scmp.ne.s32.totalorder %s113, %s114
      %p128 = scmp.eq.s32.totalorder %s22, 1
      %p129 = por %p127, %p128
      %p131 = scmp.ne.s32.totalorder %s114, %s130
      %p132 = scmp.eq.s32.totalorder %s22, 0
      %p133 = por %p131, %p132
      %p134 = scmp.le.s32.totalorder 1, %s16
      %p135 = scmp.lt.s32.totalorder %s16, 3
      %p136 = pnand %p134, %p135
      %p137 = pneg %p136
      // Predicated region
      $region9: #{sppcspc_forward.8} parent=5 // pred_check
        _
      $region10: #{sppcspc_forward.8} parent=5 // pred_check_branch
        %139 = sbr.rel (%p136) target = $region12
      $region11: #{sppcspc_forward.8} parent=5 // pred_region
        %s140 = ssub.s32 %s16, 1
        // Predicated region
        $region13: #{sppcspc_forward.8} parent=11 // pred_check
          %p141 = pneg %p77
        $region14: #{sppcspc_forward.8} parent=11 // pred_check_branch
          %143 = sbr.rel (%p141) target = $region16
        $region15: #{sppcspc_forward.8} parent=11 // pred_region
          %s145 = ssub.s32 64, 64
          %146 = vsyncadd [#allocation6], %s145
          %s148 = sshll.u32 [#allocation5], 4
          %s149 = int_to_ptr.vmem [resolvable:$true] %s148
          %151 = dma.hbm_to_vmem [thread:$0]  %s1, 64, %s149, [#allocation6]
        $region16: #{sppcspc_forward.8} parent=11 // pred_fallthru
          _
        // Predicated region
        $region17: #{sppcspc_forward.8} parent=11 // pred_check
          %p152 = pneg %p98
        $region18: #{sppcspc_forward.8} parent=11 // pred_check_branch
          %154 = sbr.rel (%p152) target = $region20
        $region19: #{sppcspc_forward.8} parent=11 // pred_region
          %s156 = ssub.s32 128, 128
          %157 = vsyncadd [#allocation6], %s156
          %s159 = sshll.u32 [#allocation7], 4
          %s160 = int_to_ptr.vmem [resolvable:$true] %s159
          %162 = dma.hbm_to_vmem [thread:$0]  %s2, 128, %s160, [#allocation6]
        $region20: #{sppcspc_forward.8} parent=11 // pred_fallthru
          _
      $region12: #{sppcspc_forward.8} parent=5 // pred_fallthru
        _
      %p163 = scmp.lt.s32.totalorder %s16, 2
      // Predicated region
      $region21: #{sppcspc_forward.8} parent=5 // pred_check
        %p164 = pneg %p163
      $region22: #{sppcspc_forward.8} parent=5 // pred_check_branch
        %166 = sbr.rel (%p164) target = $region24
      $region23: #{sppcspc_forward.8} parent=5 // pred_region
        // Predicated region
        $region25: #{sppcspc_forward.8} parent=23 // pred_check
          %p167 = pneg %p50
        $region26: #{sppcspc_forward.8} parent=23 // pred_check_branch
          %169 = sbr.rel (%p167) target = $region28
        $region27: #{sppcspc_forward.8} parent=23 // pred_region
          %s170 = sand.u32 %s40, 1
          %s171 = scalar_lea.sflag [#allocation3], %s170
          %s172 = sand.u32 %s40, 1
          %s173 = smul.addr %s172, 4
          %s174 = scalar_lea.vmem [#allocation2], %s173
          %s175 = smul.u32 2, %s24
          %s177 = ssub.s32 64, 64
          %178 = vsyncadd %s171, %s177
          %s179 = smul.addr %s23, 2
          %s180 = sadd.s32 %s175, %s179
          %s181 = smul.addr %s180, 32
          %s182 = scalar_lea.hbm %s0, %s181
          %s184 = sshll.u32 %s174, 4
          %s185 = int_to_ptr.vmem [resolvable:$true] %s184
          %187 = dma.hbm_to_vmem [thread:$0]  %s182, 64, %s185, %s171
        $region28: #{sppcspc_forward.8} parent=23 // pred_fallthru
          _
      $region24: #{sppcspc_forward.8} parent=5 // pred_fallthru
        _
      %p188 = scmp.le.s32.totalorder 1, %s16
      %p189 = scmp.lt.s32.totalorder %s16, 3
      %p190 = pnand %p188, %p189
      %p191 = pneg %p190
      // Predicated region
      $region29: #{sppcspc_forward.8} parent=5 // pred_check
        _
      $region30: #{sppcspc_forward.8} parent=5 // pred_check_branch
        %193 = sbr.rel (%p190) target = $region32
      $region31: #{sppcspc_forward.8} parent=5 // pred_region
        %s194 = ssub.s32 %s16, 1
        %s195 = sand.u32 %s43, 1
        %s196 = scalar_lea.sflag [#allocation3], %s195
        %s197 = sand.u32 %s43, 1
        %s198 = smul.addr %s197, 4
        %s199 = scalar_lea.vmem [#allocation2], %s198
        // Predicated region
        $region33: #{sppcspc_forward.8} parent=31 // pred_check
          %p200 = pneg %p56
        $region34: #{sppcspc_forward.8} parent=31 // pred_check_branch
          %202 = sbr.rel (%p200) target = $region36
        $region35: #{sppcspc_forward.8} parent=31 // pred_region
          %203 = dma.done %s196, 64
        $region36: #{sppcspc_forward.8} parent=31 // pred_fallthru
          _
        // Predicated region
        $region37: #{sppcspc_forward.8} parent=31 // pred_check
          %p204 = pneg %p77
        $region38: #{sppcspc_forward.8} parent=31 // pred_check_branch
          %206 = sbr.rel (%p204) target = $region40
        $region39: #{sppcspc_forward.8} parent=31 // pred_region
          %207 = dma.done [#allocation6], 64
        $region40: #{sppcspc_forward.8} parent=31 // pred_fallthru
          _
        // Predicated region
        $region41: #{sppcspc_forward.8} parent=31 // pred_check
          %p208 = pneg %p98
        $region42: #{sppcspc_forward.8} parent=31 // pred_check_branch
          %210 = sbr.rel (%p208) target = $region44
        $region43: #{sppcspc_forward.8} parent=31 // pred_region
          %211 = dma.done [#allocation6], 128
        $region44: #{sppcspc_forward.8} parent=31 // pred_fallthru
          _
        %s212 = sand.u32 %s43, 1
        %s213 = scalar_lea.sflag [#allocation3], %s212
        %s214 = sand.u32 %s43, 1
        %s215 = smul.addr %s214, 4
        %s216 = scalar_lea.vmem [#allocation2], %s215
        %p217 = pneg %p56
        %p218 = pneg %p53
        %p219 = pneg %p77
        %p220 = pneg %p74
        %p221 = pneg %p98
        %p222 = pneg %p95
        %p223 = pneg %p126
        %p224 = pneg %p123
        %s225 = sand.u32 %s113, 1
        %s226 = scalar_lea.sflag [#allocation4], %s225
        %s227 = sand.u32 %s113, 1
        %s228 = smul.addr %s227, 8
        %s229 = scalar_lea.vmem [#allocation8], %s228
        %s230 = smul.u32 2, %s26
        %s231 = smul.u32 2, %s26
        %v233 = vld [vmem:[#allocation5] sm:$0xf]
        %v234 = vld [vmem:[%s199] sm:$0xf]
        %v235 = vld [vmem:[#allocation7] sm:$0xff]
        %237 = vset.pattern.permute.xlu0 0
        %238 = vperm.xlu0 %237, %v235
        %v239 = vpop.permute.xlu0 %238
        %v243 = vunpack.c.l.s4 1983009808
        %v244 = vunpack.c.0.s8 %v243
        %v245 = vlaneseq
        %v246 = vshrl.u32 %v245, 7
        %v247 = vsub.s32 %v244, %v246
        %v248 = vrot.slane %v234, %v247
        %v249 = vcombine.high %v248, %v248
        %vm250 = vcmask 31744
        %v252 = vsel %vm250, %v233, 0
        %vm254 = vcmask 1041408
        %v256 = vsel %vm254, %v248, 0
        %v259 = vsel %vm254, %v249, 0
        %261 = vmatprep.subr.bf16.mxu0 %v259
        %262 = vmatpush1.bf16.msra.mxu0 %v256
        %263 = vmatprep.subr.bf16.mxu0 0
        %264 = vmatpush1.bf16.msra.mxu0 0
        %265 = vmatprep.subr.bf16.mxu0 0
        %266 = vmatpush1.bf16.msra.mxu0 0
        %267 = vmatprep.subr.bf16.mxu0 0
        %268 = vmatpush1.bf16.msra.mxu0 0
        %269 = vmatprep.subr.bf16.mxu0 0
        %270 = vmatpush1.bf16.msra.mxu0 0
        %271 = vmatprep.subr.bf16.mxu0 0
        %272 = vmatpush1.bf16.msra.mxu0 0
        %273 = vmatprep.subr.bf16.mxu0 0
        %274 = vmatpush1.bf16.msra.mxu0 0
        %275 = vmatprep.subr.bf16.mxu0 0
        %276 = vmatpush1.bf16.msra.mxu0 0
        %277 = vmatprep.subr.bf16.mxu0 0
        %278 = vmatpush1.bf16.msra.mxu0 0
        %279 = vmatprep.subr.bf16.mxu0 0
        %280 = vmatpush1.bf16.msra.mxu0 0
        %281 = vmatprep.subr.bf16.mxu0 0
        %282 = vmatpush1.bf16.msra.mxu0 0
        %283 = vmatprep.subr.bf16.mxu0 0
        %284 = vmatpush1.bf16.msra.mxu0 0
        %285 = vmatprep.subr.bf16.mxu0 0
        %286 = vmatpush1.bf16.msra.mxu0 0
        %287 = vmatprep.subr.bf16.mxu0 0
        %288 = vmatpush1.bf16.msra.mxu0 0
        %289 = vmatprep.subr.bf16.mxu0 0
        %290 = vmatpush1.bf16.msra.mxu0 0
        %291 = vmatprep.subr.bf16.mxu0 0
        %292 = vmatpush1.bf16.msra.mxu0 0
        %293 = vmatprep.mubr.bf16.mxu0 0
        %294 = vmatmul.mubr.bf16.gmra.mrb[0].mxu0 %v252
        %v295 = vpop.f32.mrb[0].mxu0
        %v296 = vadd.f32 %v239, %v295
        %v297 = vpop.f32.mrb[0].mxu0
        %v298 = vadd.f32 %v239, %v297
        %v299 = vpop.f32.mrb[0].mxu0
        %v300 = vpop.f32.mrb[0].mxu0
        %301 = vdwg.mxu0
        %v302 = vmax.f32 %v296, 0.0
        %v303 = vmax.f32 %v298, 0.0
        %v304 = vpack.c.bf16 %v302, %v302
        %v305 = vpack.c.bf16 %v303, %v303
        %v308 = vunpack.c.l.b16 %v304
        %v309 = vunpack.c.l.b16 %v305
        %v310 = vpack.c.b16 %v309, %v308
        %312 = vst [vmem:[%s229] sm:$0xff] %v310
        %s313 = sand.u32 %s113, 1
        %s314 = scalar_lea.sflag [#allocation4], %s313
        %s315 = sand.u32 %s113, 1
        %s316 = smul.addr %s315, 8
        %s317 = scalar_lea.vmem [#allocation8], %s316
        // Predicated region
        $region45: #{sppcspc_forward.8} parent=31 // pred_check
          %p318 = pneg %p123
        $region46: #{sppcspc_forward.8} parent=31 // pred_check_branch
          %320 = sbr.rel (%p318) target = $region48
        $region47: #{sppcspc_forward.8} parent=31 // pred_region
          %s321 = smul.u32 2, %s26
          %s323 = ssub.s32 128, 128
          %324 = vsyncadd %s314, %s323
          %s325 = smul.addr %s25, 2
          %s326 = sadd.s32 %s321, %s325
          %s327 = smul.addr %s326, 64
          %s328 = scalar_lea.hbm %s3, %s327
          %s330 = sshll.u32 %s317, 4
          %s331 = int_to_ptr.vmem [resolvable:$true] %s330
          %333 = dma.vmem_to_hbm [thread:$0]  %s331, 128, %s328, %s314
        $region48: #{sppcspc_forward.8} parent=31 // pred_fallthru
          _
      $region32: #{sppcspc_forward.8} parent=5 // pred_fallthru
        _
      %p334 = scmp.le.s32.totalorder 2, %s16
      // Predicated region
      $region49: #{sppcspc_forward.8} parent=5 // pred_check
        %p335 = pneg %p334
      $region50: #{sppcspc_forward.8} parent=5 // pred_check_branch
        %337 = sbr.rel (%p335) target = $region52
      $region51: #{sppcspc_forward.8} parent=5 // pred_region
        %s338 = ssub.s32 %s16, 2
        // Predicated region
        $region53: #{sppcspc_forward.8} parent=51 // pred_check
          %p339 = pneg %p129
        $region54: #{sppcspc_forward.8} parent=51 // pred_check_branch
          %341 = sbr.rel (%p339) target = $region56
        $region55: #{sppcspc_forward.8} parent=51 // pred_region
          %s342 = sand.u32 %s114, 1
          %s343 = scalar_lea.sflag [#allocation4], %s342
          %s344 = sand.u32 %s114, 1
          %s345 = smul.addr %s344, 8
          %s346 = scalar_lea.vmem [#allocation8], %s345
          %347 = dma.done %s343, 128
        $region56: #{sppcspc_forward.8} parent=51 // pred_fallthru
          _
      $region52: #{sppcspc_forward.8} parent=5 // pred_fallthru
        _
    $region6: #{sppcspc_forward.8} parent=1 // loop_footer
      %s20 = sadd.s32 1, %s16
    $region7: #{sppcspc_forward.8} parent=1 // loop_footer_branch
      %15 = sbr.rel target = $region3
    $region8: #{sppcspc_forward.8} parent=1 // loop_exit
      _
    %348 = vsyncpa [#allocation3], 1
    %s349 = scalar_lea.sflag [#allocation3], 1
    %350 = vsyncpa %s349, 1
    %351 = vsyncpa [#allocation6], 1
    %352 = vsyncpa [#allocation4], 1
    %s353 = scalar_lea.sflag [#allocation4], 1
    %354 = vsyncpa %s353, 1

// kernel: sppcspc_forward.10
$region0: #{sppcspc_forward.10}
  #allocation0 [shape = 'u32[]', space=smem, size = 0x4, offset = 0x4, fixed_abs, tag = 'smem constant byte address 0x4 - core index']
  #allocation1 [shape = 'u32[144,128]{1,0:T(1,128)}', space=vmem, size = 0x12000, scoped, tag = 'internal scratch']
  %s0 = inlined_call_operand.hbm [shape: bf16[2,8,256], index: 0, kind: input, shape index: {}]
  %s1 = inlined_call_operand.hbm [shape: bf16[8,8], index: 1, kind: input, shape index: {}]
  %s2 = inlined_call_operand.hbm [shape: f32[8,1], index: 2, kind: input, shape index: {}]
  %s3 = inlined_call_operand.hbm [shape: bf16[2,8,256], index: 3, kind: output, shape index: {}]
  %s4 = sld [smem:[#allocation0]]
  $region57: #{sppcspc_forward.10} parent=0
    _
  %s6 = ssub.s32 1, %s4
  %s7 = scalar_select 0, %s6, %s4
  $region1: #{sppcspc_forward.10} parent=0
    #allocation2 [shape = 'u8[8192]{0}', space=vmem, size = 0x2000, scoped, tag = 'input window, operand 0']
    #allocation3 [shape = 's32[2]{0}', space=sflag, size = 0x8, scoped, tag = 'scoped memory for sppcspc_forward.10']
    #allocation4 [shape = 's32[2]{0}', space=sflag, size = 0x8, scoped, tag = 'scoped memory for sppcspc_forward.10']
    #allocation5 [shape = 'u8[2048]{0}', space=vmem, size = 0x800, scoped, tag = 'input window, operand 1, single buffered']
    #allocation6 [shape = 's32[1]{0}', space=sflag, size = 0x4, scoped, tag = 'scoped memory for sppcspc_forward.10']
    #allocation7 [shape = 'u8[4096]{0}', space=vmem, size = 0x1000, scoped, tag = 'input window, operand 2, single buffered']
    #allocation8 [shape = 'u8[8192]{0}', space=vmem, size = 0x2000, scoped, tag = 'output window, operand 0']
    %8 = vsyncpa [#allocation3], 0
    %s9 = scalar_lea.sflag [#allocation3], 1
    %10 = vsyncpa %s9, 0
    %11 = vsyncpa [#allocation6], 0
    %12 = vsyncpa [#allocation4], 0
    %s13 = scalar_lea.sflag [#allocation4], 1
    %14 = vsyncpa %s13, 0
    loop: start=0, step=1, limit=4
    $region2: #{sppcspc_forward.10} parent=1 // loop_pre_header
      _
    $region3: #{sppcspc_forward.10} parent=1 // loop_header
      %s16 = sphi 0, %s20
      %p17 = scmp.ge.s32.totalorder %s16, 4
      %s23 = sphi 0, %s35
      %s24 = sphi 0, %s31
      %s25 = sphi 0, %s23
      %s26 = sphi 0, %s24
      %s27 = sphi 0, %s25
      %s28 = sphi 0, %s26
      %s40 = sphi 0, %s42
      %s43 = sphi 0, %s40
      %s44 = sphi 0, %s43
      %s60 = sphi 0, %s44
      %s64 = sphi 0, %s64
      %s66 = sphi 0, %s64
      %s67 = sphi 0, %s66
      %s81 = sphi 0, %s67
      %s85 = sphi 0, %s85
      %s87 = sphi 0, %s85
      %s88 = sphi 0, %s87
      %s102 = sphi 0, %s88
      %s110 = sphi 0, %s112
      %s113 = sphi 0, %s110
      %s114 = sphi 0, %s113
      %s130 = sphi 0, %s114
    $region4: #{sppcspc_forward.10} parent=1 // loop_header_branch
      %19 = sbr.rel (%p17) target = $region8
    $region5: #{sppcspc_forward.10} parent=1 // loop_body
      %s21 = ssub.s32 %s16, 1
      %s22 = ssub.s32 %s16, 2
      %s29 = sadd.s32 1, %s24
      %p30 = scmp.ge.s32.totalorder %s29, 1
      %s31 = scalar_select %p30, 0, %s29
      %s32 = sadd.s32 1, %s23
      %s33 = scalar_select %p30, %s32, %s23
      %p34 = scmp.ge.s32.totalorder %s33, 2
      %s35 = scalar_select %p34, 0, %s33
      %s36 = ssub.s32 %s23, %s35
      %s37 = ssub.s32 %s24, %s31
      %s38 = sor.u32 %s36, %s37
      %p39 = scmp.eq.s32.totalorder %s38, 0
      %s41 = sadd.s32 %s40, 1
      %s42 = scalar_select %p39, %s40, %s41
      %p45 = pneg %p39
      %p46 = scmp.eq.s32.totalorder %s16, 1
      %p47 = por %p45, %p46
      %p48 = scmp.ne.s32.totalorder %s40, %s43
      %p49 = scmp.eq.s32.totalorder %s16, 0
      %p50 = por %p48, %p49
      %p51 = scmp.ne.s32.totalorder %s40, %s43
      %p52 = scmp.eq.s32.totalorder %s21, 1
      %p53 = por %p51, %p52
      %p54 = scmp.ne.s32.totalorder %s43, %s44
      %p55 = scmp.eq.s32.totalorder %s21, 0
      %p56 = por %p54, %p55
      %p57 = scmp.ne.s32.totalorder %s43, %s44
      %p58 = scmp.eq.s32.totalorder %s22, 1
      %p59 = por %p57, %p58
      %p61 = scmp.ne.s32.totalorder %s44, %s60
      %p62 = scmp.eq.s32.totalorder %s22, 0
      %p63 = por %p61, %p62
      %s65 = sadd.s32 %s64, 1
      %p68 = scmp.eq.s32.totalorder %s16, 1
      %p69 = scmp.ne.s32.totalorder %s64, %s66
      %p70 = scmp.eq.s32.totalorder %s16, 0
      %p71 = por %p69, %p70
      %p72 = scmp.ne.s32.totalorder %s64, %s66
      %p73 = scmp.eq.s32.totalorder %s21, 1
      %p74 = por %p72, %p73
      %p75 = scmp.ne.s32.totalorder %s66, %s67
      %p76 = scmp.eq.s32.totalorder %s21, 0
      %p77 = por %p75, %p76
      %p78 = scmp.ne.s32.totalorder %s66, %s67
      %p79 = scmp.eq.s32.totalorder %s22, 1
      %p80 = por %p78, %p79
      %p82 = scmp.ne.s32.totalorder %s67, %s81
      %p83 = scmp.eq.s32.totalorder %s22, 0
      %p84 = por %p82, %p83
      %s86 = sadd.s32 %s85, 1
      %p89 = scmp.eq.s32.totalorder %s16, 1
      %p90 = scmp.ne.s32.totalorder %s85, %s87
      %p91 = scmp.eq.s32.totalorder %s16, 0
      %p92 = por %p90, %p91
      %p93 = scmp.ne.s32.totalorder %s85, %s87
      %p94 = scmp.eq.s32.totalorder %s21, 1
      %p95 = por %p93, %p94
      %p96 = scmp.ne.s32.totalorder %s87, %s88
      %p97 = scmp.eq.s32.totalorder %s21, 0
      %p98 = por %p96, %p97
      %p99 = scmp.ne.s32.totalorder %s87, %s88
      %p100 = scmp.eq.s32.totalorder %s22, 1
      %p101 = por %p99, %p100
      %p103 = scmp.ne.s32.totalorder %s88, %s102
      %p104 = scmp.eq.s32.totalorder %s22, 0
      %p105 = por %p103, %p104
      %s106 = ssub.s32 %s23, %s35
      %s107 = ssub.s32 %s24, %s31
      %s108 = sor.u32 %s106, %s107
      %p109 = scmp.eq.s32.totalorder %s108, 0
      %s111 = sadd.s32 %s110, 1
      %s112 = scalar_select %p109, %s110, %s111
      %p115 = pneg %p109
      %p116 = scmp.eq.s32.totalorder %s16, 1
      %p117 = por %p115, %p116
      %p118 = scmp.ne.s32.totalorder %s110, %s113
      %p119 = scmp.eq.s32.totalorder %s16, 0
      %p120 = por %p118, %p119
      %p121 = scmp.ne.s32.totalorder %s110, %s113
      %p122 = scmp.eq.s32.totalorder %s21, 1
      %p123 = por %p121, %p122
      %p124 = scmp.ne.s32.totalorder %s113, %s114
      %p125 = scmp.eq.s32.totalorder %s21, 0
      %p126 = por %p124, %p125
      %p127 = scmp.ne.s32.totalorder %s113, %s114
      %p128 = scmp.eq.s32.totalorder %s22, 1
      %p129 = por %p127, %p128
      %p131 = scmp.ne.s32.totalorder %s114, %s130
      %p132 = scmp.eq.s32.totalorder %s22, 0
      %p133 = por %p131, %p132
      %p134 = scmp.le.s32.totalorder 1, %s16
      %p135 = scmp.lt.s32.totalorder %s16, 3
      %p136 = pnand %p134, %p135
      %p137 = pneg %p136
      // Predicated region
      $region9: #{sppcspc_forward.10} parent=5 // pred_check
        _
      $region10: #{sppcspc_forward.10} parent=5 // pred_check_branch
        %139 = sbr.rel (%p136) target = $region12
      $region11: #{sppcspc_forward.10} parent=5 // pred_region
        %s140 = ssub.s32 %s16, 1
        // Predicated region
        $region13: #{sppcspc_forward.10} parent=11 // pred_check
          %p141 = pneg %p77
        $region14: #{sppcspc_forward.10} parent=11 // pred_check_branch
          %143 = sbr.rel (%p141) target = $region16
        $region15: #{sppcspc_forward.10} parent=11 // pred_region
          %s145 = ssub.s32 64, 64
          %146 = vsyncadd [#allocation6], %s145
          %s148 = sshll.u32 [#allocation5], 4
          %s149 = int_to_ptr.vmem [resolvable:$true] %s148
          %151 = dma.hbm_to_vmem [thread:$0]  %s1, 64, %s149, [#allocation6]
        $region16: #{sppcspc_forward.10} parent=11 // pred_fallthru
          _
        // Predicated region
        $region17: #{sppcspc_forward.10} parent=11 // pred_check
          %p152 = pneg %p98
        $region18: #{sppcspc_forward.10} parent=11 // pred_check_branch
          %154 = sbr.rel (%p152) target = $region20
        $region19: #{sppcspc_forward.10} parent=11 // pred_region
          %s156 = ssub.s32 128, 128
          %157 = vsyncadd [#allocation6], %s156
          %s159 = sshll.u32 [#allocation7], 4
          %s160 = int_to_ptr.vmem [resolvable:$true] %s159
          %162 = dma.hbm_to_vmem [thread:$0]  %s2, 128, %s160, [#allocation6]
        $region20: #{sppcspc_forward.10} parent=11 // pred_fallthru
          _
      $region12: #{sppcspc_forward.10} parent=5 // pred_fallthru
        _
      %p163 = scmp.lt.s32.totalorder %s16, 2
      // Predicated region
      $region21: #{sppcspc_forward.10} parent=5 // pred_check
        %p164 = pneg %p163
      $region22: #{sppcspc_forward.10} parent=5 // pred_check_branch
        %166 = sbr.rel (%p164) target = $region24
      $region23: #{sppcspc_forward.10} parent=5 // pred_region
        // Predicated region
        $region25: #{sppcspc_forward.10} parent=23 // pred_check
          %p167 = pneg %p50
        $region26: #{sppcspc_forward.10} parent=23 // pred_check_branch
          %169 = sbr.rel (%p167) target = $region28
        $region27: #{sppcspc_forward.10} parent=23 // pred_region
          %s170 = sand.u32 %s40, 1
          %s171 = scalar_lea.sflag [#allocation3], %s170
          %s172 = sand.u32 %s40, 1
          %s173 = smul.addr %s172, 8
          %s174 = scalar_lea.vmem [#allocation2], %s173
          %s175 = smul.u32 2, %s24
          %s177 = ssub.s32 128, 128
          %178 = vsyncadd %s171, %s177
          %s179 = smul.addr %s23, 2
          %s180 = sadd.s32 %s175, %s179
          %s181 = smul.addr %s180, 64
          %s182 = scalar_lea.hbm %s0, %s181
          %s184 = sshll.u32 %s174, 4
          %s185 = int_to_ptr.vmem [resolvable:$true] %s184
          %187 = dma.hbm_to_vmem [thread:$0]  %s182, 128, %s185, %s171
        $region28: #{sppcspc_forward.10} parent=23 // pred_fallthru
          _
      $region24: #{sppcspc_forward.10} parent=5 // pred_fallthru
        _
      %p188 = scmp.le.s32.totalorder 1, %s16
      %p189 = scmp.lt.s32.totalorder %s16, 3
      %p190 = pnand %p188, %p189
      %p191 = pneg %p190
      // Predicated region
      $region29: #{sppcspc_forward.10} parent=5 // pred_check
        _
      $region30: #{sppcspc_forward.10} parent=5 // pred_check_branch
        %193 = sbr.rel (%p190) target = $region32
      $region31: #{sppcspc_forward.10} parent=5 // pred_region
        %s194 = ssub.s32 %s16, 1
        %s195 = sand.u32 %s43, 1
        %s196 = scalar_lea.sflag [#allocation3], %s195
        %s197 = sand.u32 %s43, 1
        %s198 = smul.addr %s197, 8
        %s199 = scalar_lea.vmem [#allocation2], %s198
        // Predicated region
        $region33: #{sppcspc_forward.10} parent=31 // pred_check
          %p200 = pneg %p56
        $region34: #{sppcspc_forward.10} parent=31 // pred_check_branch
          %202 = sbr.rel (%p200) target = $region36
        $region35: #{sppcspc_forward.10} parent=31 // pred_region
          %203 = dma.done %s196, 128
        $region36: #{sppcspc_forward.10} parent=31 // pred_fallthru
          _
        // Predicated region
        $region37: #{sppcspc_forward.10} parent=31 // pred_check
          %p204 = pneg %p77
        $region38: #{sppcspc_forward.10} parent=31 // pred_check_branch
          %206 = sbr.rel (%p204) target = $region40
        $region39: #{sppcspc_forward.10} parent=31 // pred_region
          %207 = dma.done [#allocation6], 64
        $region40: #{sppcspc_forward.10} parent=31 // pred_fallthru
          _
        // Predicated region
        $region41: #{sppcspc_forward.10} parent=31 // pred_check
          %p208 = pneg %p98
        $region42: #{sppcspc_forward.10} parent=31 // pred_check_branch
          %210 = sbr.rel (%p208) target = $region44
        $region43: #{sppcspc_forward.10} parent=31 // pred_region
          %211 = dma.done [#allocation6], 128
        $region44: #{sppcspc_forward.10} parent=31 // pred_fallthru
          _
        %s212 = sand.u32 %s43, 1
        %s213 = scalar_lea.sflag [#allocation3], %s212
        %s214 = sand.u32 %s43, 1
        %s215 = smul.addr %s214, 8
        %s216 = scalar_lea.vmem [#allocation2], %s215
        %p217 = pneg %p56
        %p218 = pneg %p53
        %p219 = pneg %p77
        %p220 = pneg %p74
        %p221 = pneg %p98
        %p222 = pneg %p95
        %p223 = pneg %p126
        %p224 = pneg %p123
        %s225 = sand.u32 %s113, 1
        %s226 = scalar_lea.sflag [#allocation4], %s225
        %s227 = sand.u32 %s113, 1
        %s228 = smul.addr %s227, 8
        %s229 = scalar_lea.vmem [#allocation8], %s228
        %s230 = smul.u32 2, %s26
        %s231 = smul.u32 2, %s26
        %v233 = vld [vmem:[#allocation5] sm:$0xf]
        %v234 = vld [vmem:[%s199] sm:$0xff]
        %v235 = vld [vmem:[#allocation7] sm:$0xff]
        %237 = vset.pattern.permute.xlu0 0
        %238 = vperm.xlu0 %237, %v235
        %v239 = vpop.permute.xlu0 %238
        %v242 = vunpack.c.l.b16 %v234
        %v243 = vunpack.c.h.b16 %v234
        %v244 = vpack.c.b16 %v242, %v242
        %v245 = vpack.c.b16 %v243, %v243
        %vm246 = vcmask 64512
        %v248 = vsel %vm246, %v233, 0
        %vm250 = vcmask 1043456
        %v252 = vsel %vm250, %v244, 0
        %v255 = vsel %vm250, %v245, 0
        %257 = vmatprep.subr.bf16.mxu0 %v255
        %258 = vmatpush1.bf16.msra.mxu0 %v252
        %259 = vmatprep.subr.bf16.mxu0 0
        %260 = vmatpush1.bf16.msra.mxu0 0
        %261 = vmatprep.subr.bf16.mxu0 0
        %262 = vmatpush1.bf16.msra.mxu0 0
        %263 = vmatprep.subr.bf16.mxu0 0
        %264 = vmatpush1.bf16.msra.mxu0 0
        %265 = vmatprep.subr.bf16.mxu0 0
        %266 = vmatpush1.bf16.msra.mxu0 0
        %267 = vmatprep.subr.bf16.mxu0 0
        %268 = vmatpush1.bf16.msra.mxu0 0
        %269 = vmatprep.subr.bf16.mxu0 0
        %270 = vmatpush1.bf16.msra.mxu0 0
        %271 = vmatprep.subr.bf16.mxu0 0
        %272 = vmatpush1.bf16.msra.mxu0 0
        %273 = vmatprep.subr.bf16.mxu0 0
        %274 = vmatpush1.bf16.msra.mxu0 0
        %275 = vmatprep.subr.bf16.mxu0 0
        %276 = vmatpush1.bf16.msra.mxu0 0
        %277 = vmatprep.subr.bf16.mxu0 0
        %278 = vmatpush1.bf16.msra.mxu0 0
        %279 = vmatprep.subr.bf16.mxu0 0
        %280 = vmatpush1.bf16.msra.mxu0 0
        %281 = vmatprep.subr.bf16.mxu0 0
        %282 = vmatpush1.bf16.msra.mxu0 0
        %283 = vmatprep.subr.bf16.mxu0 0
        %284 = vmatpush1.bf16.msra.mxu0 0
        %285 = vmatprep.subr.bf16.mxu0 0
        %286 = vmatpush1.bf16.msra.mxu0 0
        %287 = vmatprep.subr.bf16.mxu0 0
        %288 = vmatpush1.bf16.msra.mxu0 0
        %289 = vmatprep.mubr.bf16.mxu0 0
        %290 = vmatmul.mubr.bf16.gmra.mrb[0].mxu0 %v248
        %v291 = vpop.f32.mrb[0].mxu0
        %v292 = vadd.f32 %v239, %v291
        %v293 = vpop.f32.mrb[0].mxu0
        %v294 = vadd.f32 %v239, %v293
        %v295 = vpop.f32.mrb[0].mxu0
        %v296 = vpop.f32.mrb[0].mxu0
        %297 = vdwg.mxu0
        %v298 = vmax.f32 %v292, 0.0
        %v299 = vmax.f32 %v294, 0.0
        %v300 = vpack.c.bf16 %v298, %v298
        %v301 = vpack.c.bf16 %v299, %v299
        %v304 = vunpack.c.l.b16 %v300
        %v305 = vunpack.c.l.b16 %v301
        %v306 = vpack.c.b16 %v305, %v304
        %308 = vst [vmem:[%s229] sm:$0xff] %v306
        %s309 = sand.u32 %s113, 1
        %s310 = scalar_lea.sflag [#allocation4], %s309
        %s311 = sand.u32 %s113, 1
        %s312 = smul.addr %s311, 8
        %s313 = scalar_lea.vmem [#allocation8], %s312
        // Predicated region
        $region45: #{sppcspc_forward.10} parent=31 // pred_check
          %p314 = pneg %p123
        $region46: #{sppcspc_forward.10} parent=31 // pred_check_branch
          %316 = sbr.rel (%p314) target = $region48
        $region47: #{sppcspc_forward.10} parent=31 // pred_region
          %s317 = smul.u32 2, %s26
          %s319 = ssub.s32 128, 128
          %320 = vsyncadd %s310, %s319
          %s321 = smul.addr %s25, 2
          %s322 = sadd.s32 %s317, %s321
          %s323 = smul.addr %s322, 64
          %s324 = scalar_lea.hbm %s3, %s323
          %s326 = sshll.u32 %s313, 4
          %s327 = int_to_ptr.vmem [resolvable:$true] %s326
          %329 = dma.vmem_to_hbm [thread:$0]  %s327, 128, %s324, %s310
        $region48: #{sppcspc_forward.10} parent=31 // pred_fallthru
          _
      $region32: #{sppcspc_forward.10} parent=5 // pred_fallthru
        _
      %p330 = scmp.le.s32.totalorder 2, %s16
      // Predicated region
      $region49: #{sppcspc_forward.10} parent=5 // pred_check
        %p331 = pneg %p330
      $region50: #{sppcspc_forward.10} parent=5 // pred_check_branch
        %333 = sbr.rel (%p331) target = $region52
      $region51: #{sppcspc_forward.10} parent=5 // pred_region
        %s334 = ssub.s32 %s16, 2
        // Predicated region
        $region53: #{sppcspc_forward.10} parent=51 // pred_check
          %p335 = pneg %p129
        $region54: #{sppcspc_forward.10} parent=51 // pred_check_branch
          %337 = sbr.rel (%p335) target = $region56
        $region55: #{sppcspc_forward.10} parent=51 // pred_region
          %s338 = sand.u32 %s114, 1
          %s339 = scalar_lea.sflag [#allocation4], %s338
          %s340 = sand.u32 %s114, 1
          %s341 = smul.addr %s340, 8
          %s342 = scalar_lea.vmem [#allocation8], %s341
          %343 = dma.done %s339, 128
        $region56: #{sppcspc_forward.10} parent=51 // pred_fallthru
          _
      $region52: #{sppcspc_forward.10} parent=5 // pred_fallthru
        _
    $region6: #{sppcspc_forward.10} parent=1 // loop_footer
      %s20 = sadd.s32 1, %s16
    $region7: #{sppcspc_forward.10} parent=1 // loop_footer_branch
      %15 = sbr.rel target = $region3
    $region8: #{sppcspc_forward.10} parent=1 // loop_exit
      _
    %344 = vsyncpa [#allocation3], 1
    %s345 = scalar_lea.sflag [#allocation3], 1
    %346 = vsyncpa %s345, 1
    %347 = vsyncpa [#allocation6], 1
    %348 = vsyncpa [#allocation4], 1
    %s349 = scalar_lea.sflag [#allocation4], 1
    %350 = vsyncpa %s349, 1

// kernel: sppcspc_forward.9
$region0: #{sppcspc_forward.9}
  #allocation0 [shape = 'u32[]', space=smem, size = 0x4, offset = 0x4, fixed_abs, tag = 'smem constant byte address 0x4 - core index']
  #allocation1 [shape = 'u32[144,128]{1,0:T(1,128)}', space=vmem, size = 0x12000, scoped, tag = 'internal scratch']
  %s0 = inlined_call_operand.hbm [shape: bf16[2,8,342], index: 0, kind: input, shape index: {}]
  %s1 = inlined_call_operand.hbm [shape: bf16[9,8,8], index: 1, kind: input, shape index: {}]
  %s2 = inlined_call_operand.hbm [shape: f32[8,1], index: 2, kind: input, shape index: {}]
  %s3 = inlined_call_operand.hbm [shape: bf16[2,8,288], index: 3, kind: output, shape index: {}]
  %s4 = sld [smem:[#allocation0]]
  $region57: #{sppcspc_forward.9} parent=0
    _
  %s6 = ssub.s32 1, %s4
  %s7 = scalar_select 0, %s6, %s4
  $region1: #{sppcspc_forward.9} parent=0
    #allocation2 [shape = 'u8[12288]{0}', space=vmem, size = 0x3000, scoped, tag = 'input window, operand 0']
    #allocation3 [shape = 's32[2]{0}', space=sflag, size = 0x8, scoped, tag = 'scoped memory for sppcspc_forward.9']
    #allocation4 [shape = 's32[2]{0}', space=sflag, size = 0x8, scoped, tag = 'scoped memory for sppcspc_forward.9']
    #allocation5 [shape = 'u8[18432]{0}', space=vmem, size = 0x4800, scoped, tag = 'input window, operand 1, single buffered']
    #allocation6 [shape = 's32[1]{0}', space=sflag, size = 0x4, scoped, tag = 'scoped memory for sppcspc_forward.9']
    #allocation7 [shape = 'u8[4096]{0}', space=vmem, size = 0x1000, scoped, tag = 'input window, operand 2, single buffered']
    #allocation8 [shape = 'u8[12288]{0}', space=vmem, size = 0x3000, scoped, tag = 'output window, operand 0']
    %8 = vsyncpa [#allocation3], 0
    %s9 = scalar_lea.sflag [#allocation3], 1
    %10 = vsyncpa %s9, 0
    %11 = vsyncpa [#allocation6], 0
    %12 = vsyncpa [#allocation4], 0
    %s13 = scalar_lea.sflag [#allocation4], 1
    %14 = vsyncpa %s13, 0
    loop: start=0, step=1, limit=4
    $region2: #{sppcspc_forward.9} parent=1 // loop_pre_header
      _
    $region3: #{sppcspc_forward.9} parent=1 // loop_header
      %s16 = sphi 0, %s20
      %p17 = scmp.ge.s32.totalorder %s16, 4
      %s26 = sphi 0, %s28
      %s29 = sphi 0, %s26
      %s30 = sphi 0, %s29
      %s46 = sphi 0, %s30
      %s50 = sphi 0, %s50
      %s52 = sphi 0, %s50
      %s53 = sphi 0, %s52
      %s67 = sphi 0, %s53
      %s71 = sphi 0, %s71
      %s73 = sphi 0, %s71
      %s74 = sphi 0, %s73
      %s88 = sphi 0, %s74
      %s94 = sphi 0, %s96
      %s97 = sphi 0, %s94
      %s98 = sphi 0, %s97
      %s114 = sphi 0, %s98
    $region4: #{sppcspc_forward.9} parent=1 // loop_header_branch
      %19 = sbr.rel (%p17) target = $region8
    $region5: #{sppcspc_forward.9} parent=1 // loop_body
      %s21 = ssub.s32 %s16, 1
      %s22 = ssub.s32 %s16, 2
      %s23 = sadd.s32 %s16, 1
      %s24 = ssub.s32 %s16, %s23
      %p25 = scmp.eq.s32.totalorder %s24, 0
      %s27 = sadd.s32 %s26, 1
      %s28 = scalar_select %p25, %s26, %s27
      %p31 = pneg %p25
      %p32 = scmp.eq.s32.totalorder %s16, 1
      %p33 = por %p31, %p32
      %p34 = scmp.ne.s32.totalorder %s26, %s29
      %p35 = scmp.eq.s32.totalorder %s16, 0
      %p36 = por %p34, %p35
      %p37 = scmp.ne.s32.totalorder %s26, %s29
      %p38 = scmp.eq.s32.totalorder %s21, 1
      %p39 = por %p37, %p38
      %p40 = scmp.ne.s32.totalorder %s29, %s30
      %p41 = scmp.eq.s32.totalorder %s21, 0
      %p42 = por %p40, %p41
      %p43 = scmp.ne.s32.totalorder %s29, %s30
      %p44 = scmp.eq.s32.totalorder %s22, 1
      %p45 = por %p43, %p44
      %p47 = scmp.ne.s32.totalorder %s30, %s46
      %p48 = scmp.eq.s32.totalorder %s22, 0
      %p49 = por %p47, %p48
      %s51 = sadd.s32 %s50, 1
      %p54 = scmp.eq.s32.totalorder %s16, 1
      %p55 = scmp.ne.s32.totalorder %s50, %s52
      %p56 = scmp.eq.s32.totalorder %s16, 0
      %p57 = por %p55, %p56
      %p58 = scmp.ne.s32.totalorder %s50, %s52
      %p59 = scmp.eq.s32.totalorder %s21, 1
      %p60 = por %p58, %p59
      %p61 = scmp.ne.s32.totalorder %s52, %s53
      %p62 = scmp.eq.s32.totalorder %s21, 0
      %p63 = por %p61, %p62
      %p64 = scmp.ne.s32.totalorder %s52, %s53
      %p65 = scmp.eq.s32.totalorder %s22, 1
      %p66 = por %p64, %p65
      %p68 = scmp.ne.s32.totalorder %s53, %s67
      %p69 = scmp.eq.s32.totalorder %s22, 0
      %p70 = por %p68, %p69
      %s72 = sadd.s32 %s71, 1
      %p75 = scmp.eq.s32.totalorder %s16, 1
      %p76 = scmp.ne.s32.totalorder %s71, %s73
      %p77 = scmp.eq.s32.totalorder %s16, 0
      %p78 = por %p76, %p77
      %p79 = scmp.ne.s32.totalorder %s71, %s73
      %p80 = scmp.eq.s32.totalorder %s21, 1
      %p81 = por %p79, %p80
      %p82 = scmp.ne.s32.totalorder %s73, %s74
      %p83 = scmp.eq.s32.totalorder %s21, 0
      %p84 = por %p82, %p83
      %p85 = scmp.ne.s32.totalorder %s73, %s74
      %p86 = scmp.eq.s32.totalorder %s22, 1
      %p87 = por %p85, %p86
      %p89 = scmp.ne.s32.totalorder %s74, %s88
      %p90 = scmp.eq.s32.totalorder %s22, 0
      %p91 = por %p89, %p90
      %s92 = ssub.s32 %s16, %s23
      %p93 = scmp.eq.s32.totalorder %s92, 0
      %s95 = sadd.s32 %s94, 1
      %s96 = scalar_select %p93, %s94, %s95
      %p99 = pneg %p93
      %p100 = scmp.eq.s32.totalorder %s16, 1
      %p101 = por %p99, %p100
      %p102 = scmp.ne.s32.totalorder %s94, %s97
      %p103 = scmp.eq.s32.totalorder %s16, 0
      %p104 = por %p102, %p103
      %p105 = scmp.ne.s32.totalorder %s94, %s97
      %p106 = scmp.eq.s32.totalorder %s21, 1
      %p107 = por %p105, %p106
      %p108 = scmp.ne.s32.totalorder %s97, %s98
      %p109 = scmp.eq.s32.totalorder %s21, 0
      %p110 = por %p108, %p109
      %p111 = scmp.ne.s32.totalorder %s97, %s98
      %p112 = scmp.eq.s32.totalorder %s22, 1
      %p113 = por %p111, %p112
      %p115 = scmp.ne.s32.totalorder %s98, %s114
      %p116 = scmp.eq.s32.totalorder %s22, 0
      %p117 = por %p115, %p116
      %p118 = scmp.le.s32.totalorder 1, %s16
      %p119 = scmp.lt.s32.totalorder %s16, 3
      %p120 = pnand %p118, %p119
      %p121 = pneg %p120
      // Predicated region
      $region9: #{sppcspc_forward.9} parent=5 // pred_check
        _
      $region10: #{sppcspc_forward.9} parent=5 // pred_check_branch
        %123 = sbr.rel (%p120) target = $region12
      $region11: #{sppcspc_forward.9} parent=5 // pred_region
        %s124 = ssub.s32 %s16, 1
        // Predicated region
        $region13: #{sppcspc_forward.9} parent=11 // pred_check
          %p125 = pneg %p63
        $region14: #{sppcspc_forward.9} parent=11 // pred_check_branch
          %127 = sbr.rel (%p125) target = $region16
        $region15: #{sppcspc_forward.9} parent=11 // pred_region
          %s129 = ssub.s32 576, 576
          %130 = vsyncadd [#allocation6], %s129
          %s131 = sshll.u32 [#allocation5], 4
          %s132 = int_to_ptr.vmem [resolvable:$true] %s131
          %137 = dma.hbm_to_vmem [thread:$0]  %s1, 576, %s132, [#allocation6], 64, 64, 4
        $region16: #{sppcspc_forward.9} parent=11 // pred_fallthru
          _
        // Predicated region
        $region17: #{sppcspc_forward.9} parent=11 // pred_check
          %p138 = pneg %p84
        $region18: #{sppcspc_forward.9} parent=11 // pred_check_branch
          %140 = sbr.rel (%p138) target = $region20
        $region19: #{sppcspc_forward.9} parent=11 // pred_region
          %s142 = ssub.s32 128, 128
          %143 = vsyncadd [#allocation6], %s142
          %s145 = sshll.u32 [#allocation7], 4
          %s146 = int_to_ptr.vmem [resolvable:$true] %s145
          %148 = dma.hbm_to_vmem [thread:$0]  %s2, 128, %s146, [#allocation6]
        $region20: #{sppcspc_forward.9} parent=11 // pred_fallthru
          _
      $region12: #{sppcspc_forward.9} parent=5 // pred_fallthru
        _
      %p149 = scmp.lt.s32.totalorder %s16, 2
      // Predicated region
      $region21: #{sppcspc_forward.9} parent=5 // pred_check
        %p150 = pneg %p149
      $region22: #{sppcspc_forward.9} parent=5 // pred_check_branch
        %152 = sbr.rel (%p150) target = $region24
      $region23: #{sppcspc_forward.9} parent=5 // pred_region
        // Predicated region
        $region25: #{sppcspc_forward.9} parent=23 // pred_check
          %p153 = pneg %p36
        $region26: #{sppcspc_forward.9} parent=23 // pred_check_branch
          %155 = sbr.rel (%p153) target = $region28
        $region27: #{sppcspc_forward.9} parent=23 // pred_region
          %s156 = sand.u32 %s26, 1
          %s157 = scalar_lea.sflag [#allocation3], %s156
          %s158 = sand.u32 %s26, 1
          %s159 = smul.addr %s158, 12
          %s160 = scalar_lea.vmem [#allocation2], %s159
          %s162 = ssub.s32 192, 192
          %163 = vsyncadd %s157, %s162
          %s164 = smul.addr %s16, 3
          %s165 = smul.addr %s164, 64
          %s166 = scalar_lea.hbm %s0, %s165
          %s168 = sshll.u32 %s160, 4
          %s169 = int_to_ptr.vmem [resolvable:$true] %s168
          %171 = dma.hbm_to_vmem [thread:$0]  %s166, 192, %s169, %s157
        $region28: #{sppcspc_forward.9} parent=23 // pred_fallthru
          _
      $region24: #{sppcspc_forward.9} parent=5 // pred_fallthru
        _
      %p172 = scmp.le.s32.totalorder 1, %s16
      %p173 = scmp.lt.s32.totalorder %s16, 3
      %p174 = pnand %p172, %p173
      %p175 = pneg %p174
      // Predicated region
      $region29: #{sppcspc_forward.9} parent=5 // pred_check
        _
      $region30: #{sppcspc_forward.9} parent=5 // pred_check_branch
        %177 = sbr.rel (%p174) target = $region32
      $region31: #{sppcspc_forward.9} parent=5 // pred_region
        %s178 = ssub.s32 %s16, 1
        %s179 = sand.u32 %s29, 1
        %s180 = scalar_lea.sflag [#allocation3], %s179
        %s181 = sand.u32 %s29, 1
        %s182 = smul.addr %s181, 12
        %s183 = scalar_lea.vmem [#allocation2], %s182
        // Predicated region
        $region33: #{sppcspc_forward.9} parent=31 // pred_check
          %p184 = pneg %p42
        $region34: #{sppcspc_forward.9} parent=31 // pred_check_branch
          %186 = sbr.rel (%p184) target = $region36
        $region35: #{sppcspc_forward.9} parent=31 // pred_region
          %187 = dma.done %s180, 192
        $region36: #{sppcspc_forward.9} parent=31 // pred_fallthru
          _
        // Predicated region
        $region37: #{sppcspc_forward.9} parent=31 // pred_check
          %p188 = pneg %p63
        $region38: #{sppcspc_forward.9} parent=31 // pred_check_branch
          %190 = sbr.rel (%p188) target = $region40
        $region39: #{sppcspc_forward.9} parent=31 // pred_region
          %191 = dma.done [#allocation6], 576
        $region40: #{sppcspc_forward.9} parent=31 // pred_fallthru
          _
        // Predicated region
        $region41: #{sppcspc_forward.9} parent=31 // pred_check
          %p192 = pneg %p84
        $region42: #{sppcspc_forward.9} parent=31 // pred_check_branch
          %194 = sbr.rel (%p192) target = $region44
        $region43: #{sppcspc_forward.9} parent=31 // pred_region
          %195 = dma.done [#allocation6], 128
        $region44: #{sppcspc_forward.9} parent=31 // pred_fallthru
          _
        %s196 = sand.u32 %s29, 1
        %s197 = scalar_lea.sflag [#allocation3], %s196
        %s198 = sand.u32 %s29, 1
        %s199 = smul.addr %s198, 12
        %s200 = scalar_lea.vmem [#allocation2], %s199
        %p201 = pneg %p42
        %p202 = pneg %p39
        %p203 = pneg %p63
        %p204 = pneg %p60
        %p205 = pneg %p84
        %p206 = pneg %p81
        %p207 = pneg %p110
        %p208 = pneg %p107
        %s209 = sand.u32 %s97, 1
        %s210 = scalar_lea.sflag [#allocation4], %s209
        %s211 = sand.u32 %s97, 1
        %s212 = smul.addr %s211, 12
        %s213 = scalar_lea.vmem [#allocation8], %s212
        %v215 = vld [vmem:[%s183] sm:$0xff]
        %v216 = vld [vmem:[%s183 + $0x8] sm:$0xf]
        %v217 = vld [vmem:[#allocation5] sm:$0xf]
        %s218 = scalar_lea.vmem [#allocation5], 4
        %v219 = vld [vmem:[%s218] sm:$0xf]
        %v222 = vunpack.c.l.b16 %v215
        %v223 = vunpack.c.h.b16 %v215
        %v224 = vunpack.c.l.b16 %v216
        %v225 = vpack.c.b16 %v222, %v222
        %v226 = vpack.c.b16 %v223, %v223
        %v227 = vpack.c.b16 %v224, %v224
        %228 = vrot.lane.b32.xlu0 %v225, 127
        %v229 = vpop.permute.xlu0 %228
        %230 = vrot.lane.b32.xlu0 %v226, 127
        %v231 = vpop.permute.xlu0 %230
        %232 = vrot.lane.b32.xlu0 %v227, 127
        %v233 = vpop.permute.xlu0 %232
        %vm234 = vcmask 1039360
        %v235 = vsel %vm234, %v229, %v231
        %v236 = vsel %vm234, %v231, %v233
        %vm237 = vcmask 64512
        %v239 = vsel %vm237, %v219, 0
        %vm241 = vcmask 1043456
        %v243 = vsel %vm241, %v235, 0
        %v246 = vsel %vm241, %v236, 0
        %v249 = vsel %vm241, %v233, 0
        %251 = vmatprep.subr.bf16.mxu0 %v246
        %252 = vmatpush1.bf16.msra.mxu0 %v243
        %253 = vmatprep.subr.bf16.mxu0 0
        %254 = vmatpush1.bf16.msra.mxu0 0
        %255 = vmatprep.subr.bf16.mxu0 0
        %256 = vmatpush1.bf16.msra.mxu0 0
        %257 = vmatprep.subr.bf16.mxu0 0
        %258 = vmatpush1.bf16.msra.mxu0 0
        %259 = vmatprep.subr.bf16.mxu0 0
        %260 = vmatpush1.bf16.msra.mxu0 0
        %261 = vmatprep.subr.bf16.mxu0 0
        %262 = vmatpush1.bf16.msra.mxu0 0
        %263 = vmatprep.subr.bf16.mxu0 0
        %264 = vmatpush1.bf16.msra.mxu0 0
        %265 = vmatprep.subr.bf16.mxu0 0
        %266 = vmatpush1.bf16.msra.mxu0 0
        %267 = vmatprep.subr.bf16.mxu0 0
        %268 = vmatpush1.bf16.msra.mxu0 0
        %269 = vmatprep.subr.bf16.mxu0 0
        %270 = vmatpush1.bf16.msra.mxu0 0
        %271 = vmatprep.subr.bf16.mxu0 0
        %272 = vmatpush1.bf16.msra.mxu0 0
        %273 = vmatprep.subr.bf16.mxu0 0
        %274 = vmatpush1.bf16.msra.mxu0 0
        %275 = vmatprep.subr.bf16.mxu0 0
        %276 = vmatpush1.bf16.msra.mxu0 0
        %277 = vmatprep.subr.bf16.mxu0 0
        %278 = vmatpush1.bf16.msra.mxu0 0
        %279 = vmatprep.subr.bf16.mxu0 0
        %280 = vmatpush1.bf16.msra.mxu0 0
        %281 = vmatprep.subr.bf16.mxu0 0
        %282 = vmatpush1.bf16.msra.mxu0 0
        %283 = vmatprep.mubr.bf16.mxu0 0
        %284 = vmatmul.mubr.bf16.gmra.mrb[0].mxu0 %v239
        %v285 = vpop.f32.mrb[0].mxu0
        %v286 = vadd.f32 0.0, %v285
        %v287 = vpop.f32.mrb[0].mxu0
        %v288 = vadd.f32 0.0, %v287
        %v289 = vpop.f32.mrb[0].mxu0
        %v290 = vpop.f32.mrb[0].mxu0
        %291 = vdwg.mxu0
        %292 = vmatprep.subr.bf16.mxu0 0
        %293 = vmatpush1.bf16.msra.mxu0 %v249
        %294 = vmatprep.subr.bf16.mxu0 0
        %295 = vmatpush1.bf16.msra.mxu0 0
        %296 = vmatprep.subr.bf16.mxu0 0
        %297 = vmatpush1.bf16.msra.mxu0 0
        %298 = vmatprep.subr.bf16.mxu0 0
        %299 = vmatpush1.bf16.msra.mxu0 0
        %300 = vmatprep.subr.bf16.mxu0 0
        %301 = vmatpush1.bf16.msra.mxu0 0
        %302 = vmatprep.subr.bf16.mxu0 0
        %303 = vmatpush1.bf16.msra.mxu0 0
        %304 = vmatprep.subr.bf16.mxu0 0
        %305 = vmatpush1.bf16.msra.mxu0 0
        %306 = vmatprep.subr.bf16.mxu0 0
        %307 = vmatpush1.bf16.msra.mxu0 0
        %308 = vmatprep.subr.bf16.mxu0 0
        %309 = vmatpush1.bf16.msra.mxu0 0
        %310 = vmatprep.subr.bf16.mxu0 0
        %311 = vmatpush1.bf16.msra.mxu0 0
        %312 = vmatprep.subr.bf16.mxu0 0
        %313 = vmatpush1.bf16.msra.mxu0 0
        %314 = vmatprep.subr.bf16.mxu0 0
        %315 = vmatpush1.bf16.msra.mxu0 0
        %316 = vmatprep.subr.bf16.mxu0 0
        %317 = vmatpush1.bf16.msra.mxu0 0
        %318 = vmatprep.subr.bf16.mxu0 0
        %319 = vmatpush1.bf16.msra.mxu0 0
        %320 = vmatprep.subr.bf16.mxu0 0
        %321 = vmatpush1.bf16.msra.mxu0 0
        %322 = vmatprep.subr.bf16.mxu0 0
        %323 = vmatpush1.bf16.msra.mxu0 0
        %324 = vmatprep.mubr.bf16.mxu0 0
        %325 = vmatmul.mubr.bf16.gmra.mrb[0].mxu0 %v239
        %v326 = vpop.f32.mrb[0].mxu0
        %v327 = vadd.f32 0.0, %v326
        %v328 = vpop.f32.mrb[0].mxu0
        %v329 = vpop.f32.mrb[0].mxu0
        %v330 = vpop.f32.mrb[0].mxu0
        %331 = vdwg.mxu0
        %v333 = vsel %vm237, %v217, 0
        %v336 = vsel %vm241, %v225, 0
        %v339 = vsel %vm241, %v226, 0
        %v342 = vsel %vm241, %v227, 0
        %344 = vmatprep.subr.bf16.mxu0 %v339
        %345 = vmatpush1.bf16.msra.mxu0 %v336
        %346 = vmatprep.subr.bf16.mxu0 0
        %347 = vmatpush1.bf16.msra.mxu0 0
        %348 = vmatprep.subr.bf16.mxu0 0
        %349 = vmatpush1.bf16.msra.mxu0 0
        %350 = vmatprep.subr.bf16.mxu0 0
        %351 = vmatpush1.bf16.msra.mxu0 0
        %352 = vmatprep.subr.bf16.mxu0 0
        %353 = vmatpush1.bf16.msra.mxu0 0
        %354 = vmatprep.subr.bf16.mxu0 0
        %355 = vmatpush1.bf16.msra.mxu0 0
        %356 = vmatprep.subr.bf16.mxu0 0
        %357 = vmatpush1.bf16.msra.mxu0 0
        %358 = vmatprep.subr.bf16.mxu0 0
        %359 = vmatpush1.bf16.msra.mxu0 0
        %360 = vmatprep.subr.bf16.mxu0 0
        %361 = vmatpush1.bf16.msra.mxu0 0
        %362 = vmatprep.subr.bf16.mxu0 0
        %363 = vmatpush1.bf16.msra.mxu0 0
        %364 = vmatprep.subr.bf16.mxu0 0
        %365 = vmatpush1.bf16.msra.mxu0 0
        %366 = vmatprep.subr.bf16.mxu0 0
        %367 = vmatpush1.bf16.msra.mxu0 0
        %368 = vmatprep.subr.bf16.mxu0 0
        %369 = vmatpush1.bf16.msra.mxu0 0
        %370 = vmatprep.subr.bf16.mxu0 0
        %371 = vmatpush1.bf16.msra.mxu0 0
        %372 = vmatprep.subr.bf16.mxu0 0
        %373 = vmatpush1.bf16.msra.mxu0 0
        %374 = vmatprep.subr.bf16.mxu0 0
        %375 = vmatpush1.bf16.msra.mxu0 0
        %376 = vmatprep.mubr.bf16.mxu0 0
        %377 = vmatmul.mubr.bf16.gmra.mrb[0].mxu0 %v333
        %v378 = vpop.f32.mrb[0].mxu0
        %v379 = vadd.f32 %v286, %v378
        %v380 = vpop.f32.mrb[0].mxu0
        %v381 = vadd.f32 %v288, %v380
        %v382 = vpop.f32.mrb[0].mxu0
        %v383 = vpop.f32.mrb[0].mxu0
        %384 = vdwg.mxu0
        %385 = vmatprep.subr.bf16.mxu0 0
        %386 = vmatpush1.bf16.msra.mxu0 %v342
        %387 = vmatprep.subr.bf16.mxu0 0
        %388 = vmatpush1.bf16.msra.mxu0 0
        %389 = vmatprep.subr.bf16.mxu0 0
        %390 = vmatpush1.bf16.msra.mxu0 0
        %391 = vmatprep.subr.bf16.mxu0 0
        %392 = vmatpush1.bf16.msra.mxu0 0
        %393 = vmatprep.subr.bf16.mxu0 0
        %394 = vmatpush1.bf16.msra.mxu0 0
        %395 = vmatprep.subr.bf16.mxu0 0
        %396 = vmatpush1.bf16.msra.mxu0 0
        %397 = vmatprep.subr.bf16.mxu0 0
        %398 = vmatpush1.bf16.msra.mxu0 0
        %399 = vmatprep.subr.bf16.mxu0 0
        %400 = vmatpush1.bf16.msra.mxu0 0
        %401 = vmatprep.subr.bf16.mxu0 0
        %402 = vmatpush1.bf16.msra.mxu0 0
        %403 = vmatprep.subr.bf16.mxu0 0
        %404 = vmatpush1.bf16.msra.mxu0 0
        %405 = vmatprep.subr.bf16.mxu0 0
        %406 = vmatpush1.bf16.msra.mxu0 0
        %407 = vmatprep.subr.bf16.mxu0 0
        %408 = vmatpush1.bf16.msra.mxu0 0
        %409 = vmatprep.subr.bf16.mxu0 0
        %410 = vmatpush1.bf16.msra.mxu0 0
        %411 = vmatprep.subr.bf16.mxu0 0
        %412 = vmatpush1.bf16.msra.mxu0 0
        %413 = vmatprep.subr.bf16.mxu0 0
        %414 = vmatpush1.bf16.msra.mxu0 0
        %415 = vmatprep.subr.bf16.mxu0 0
        %416 = vmatpush1.bf16.msra.mxu0 0
        %417 = vmatprep.mubr.bf16.mxu0 0
        %418 = vmatmul.mubr.bf16.gmra.mrb[0].mxu0 %v333
        %v419 = vpop.f32.mrb[0].mxu0
        %v420 = vadd.f32 %v327, %v419
        %v421 = vpop.f32.mrb[0].mxu0
        %v422 = vpop.f32.mrb[0].mxu0
        %v423 = vpop.f32.mrb[0].mxu0
        %424 = vdwg.mxu0
        %s425 = scalar_lea.vmem [#allocation5], 8
        %v426 = vld [vmem:[%s425] sm:$0xf]
        %427 = vrot.lane.b32.xlu0 %v225, 126
        %v428 = vpop.permute.xlu0 %427
        %429 = vrot.lane.b32.xlu0 %v226, 126
        %v430 = vpop.permute.xlu0 %429
        %431 = vrot.lane.b32.xlu0 %v227, 126
        %v432 = vpop.permute.xlu0 %431
        %vm433 = vcmask 1031168
        %v434 = vsel %vm433, %v428, %v430
        %v435 = vsel %vm433, %v430, %v432
        %v437 = vsel %vm237, %v426, 0
        %v440 = vsel %vm241, %v434, 0
        %v443 = vsel %vm241, %v435, 0
        %v446 = vsel %vm241, %v432, 0
        %448 = vmatprep.subr.bf16.mxu0 %v443
        %449 = vmatpush1.bf16.msra.mxu0 %v440
        %450 = vmatprep.subr.bf16.mxu0 0
        %451 = vmatpush1.bf16.msra.mxu0 0
        %452 = vmatprep.subr.bf16.mxu0 0
        %453 = vmatpush1.bf16.msra.mxu0 0
        %454 = vmatprep.subr.bf16.mxu0 0
        %455 = vmatpush1.bf16.msra.mxu0 0
        %456 = vmatprep.subr.bf16.mxu0 0
        %457 = vmatpush1.bf16.msra.mxu0 0
        %458 = vmatprep.subr.bf16.mxu0 0
        %459 = vmatpush1.bf16.msra.mxu0 0
        %460 = vmatprep.subr.bf16.mxu0 0
        %461 = vmatpush1.bf16.msra.mxu0 0
        %462 = vmatprep.subr.bf16.mxu0 0
        %463 = vmatpush1.bf16.msra.mxu0 0
        %464 = vmatprep.subr.bf16.mxu0 0
        %465 = vmatpush1.bf16.msra.mxu0 0
        %466 = vmatprep.subr.bf16.mxu0 0
        %467 = vmatpush1.bf16.msra.mxu0 0
        %468 = vmatprep.subr.bf16.mxu0 0
        %469 = vmatpush1.bf16.msra.mxu0 0
        %470 = vmatprep.subr.bf16.mxu0 0
        %471 = vmatpush1.bf16.msra.mxu0 0
        %472 = vmatprep.subr.bf16.mxu0 0
        %473 = vmatpush1.bf16.msra.mxu0 0
        %474 = vmatprep.subr.bf16.mxu0 0
        %475 = vmatpush1.bf16.msra.mxu0 0
        %476 = vmatprep.subr.bf16.mxu0 0
        %477 = vmatpush1.bf16.msra.mxu0 0
        %478 = vmatprep.subr.bf16.mxu0 0
        %479 = vmatpush1.bf16.msra.mxu0 0
        %480 = vmatprep.mubr.bf16.mxu0 0
        %481 = vmatmul.mubr.bf16.gmra.mrb[0].mxu0 %v437
        %v482 = vpop.f32.mrb[0].mxu0
        %v483 = vadd.f32 0.0, %v482
        %v484 = vpop.f32.mrb[0].mxu0
        %v485 = vadd.f32 0.0, %v484
        %v486 = vpop.f32.mrb[0].mxu0
        %v487 = vpop.f32.mrb[0].mxu0
        %488 = vdwg.mxu0
        %489 = vmatprep.subr.bf16.mxu0 0
        %490 = vmatpush1.bf16.msra.mxu0 %v446
        %491 = vmatprep.subr.bf16.mxu0 0
        %492 = vmatpush1.bf16.msra.mxu0 0
        %493 = vmatprep.subr.bf16.mxu0 0
        %494 = vmatpush1.bf16.msra.mxu0 0
        %495 = vmatprep.subr.bf16.mxu0 0
        %496 = vmatpush1.bf16.msra.mxu0 0
        %497 = vmatprep.subr.bf16.mxu0 0
        %498 = vmatpush1.bf16.msra.mxu0 0
        %499 = vmatprep.subr.bf16.mxu0 0
        %500 = vmatpush1.bf16.msra.mxu0 0
        %501 = vmatprep.subr.bf16.mxu0 0
        %502 = vmatpush1.bf16.msra.mxu0 0
        %503 = vmatprep.subr.bf16.mxu0 0
        %504 = vmatpush1.bf16.msra.mxu0 0
        %505 = vmatprep.subr.bf16.mxu0 0
        %506 = vmatpush1.bf16.msra.mxu0 0
        %507 = vmatprep.subr.bf16.mxu0 0
        %508 = vmatpush1.bf16.msra.mxu0 0
        %509 = vmatprep.subr.bf16.mxu0 0
        %510 = vmatpush1.bf16.msra.mxu0 0
        %511 = vmatprep.subr.bf16.mxu0 0
        %512 = vmatpush1.bf16.msra.mxu0 0
        %513 = vmatprep.subr.bf16.mxu0 0
        %514 = vmatpush1.bf16.msra.mxu0 0
        %515 = vmatprep.subr.bf16.mxu0 0
        %516 = vmatpush1.bf16.msra.mxu0 0
        %517 = vmatprep.subr.bf16.mxu0 0
        %518 = vmatpush1.bf16.msra.mxu0 0
        %519 = vmatprep.subr.bf16.mxu0 0
        %520 = vmatpush1.bf16.msra.mxu0 0
        %521 = vmatprep.mubr.bf16.mxu0 0
        %522 = vmatmul.mubr.bf16.gmra.mrb[0].mxu0 %v437
        %v523 = vpop.f32.mrb[0].mxu0
        %v524 = vadd.f32 0.0, %v523
        %v525 = vpop.f32.mrb[0].mxu0
        %v526 = vpop.f32.mrb[0].mxu0
        %v527 = vpop.f32.mrb[0].mxu0
        %528 = vdwg.mxu0
        %v529 = vadd.f32 %v379, %v483
        %v530 = vadd.f32 %v381, %v485
        %v531 = vadd.f32 %v420, %v524
        %s532 = scalar_lea.vmem [#allocation5], 12
        %v533 = vld [vmem:[%s532] sm:$0xf]
        %534 = vrot.lane.b32.xlu0 %v225, 110
        %v535 = vpop.permute.xlu0 %534
        %536 = vrot.lane.b32.xlu0 %v226, 110
        %v537 = vpop.permute.xlu0 %536
        %538 = vrot.lane.b32.xlu0 %v227, 110
        %v539 = vpop.permute.xlu0 %538
        %vm540 = vcmask 900096
        %v541 = vsel %vm540, %v535, %v537
        %v542 = vsel %vm540, %v537, %v539
        %v544 = vsel %vm237, %v533, 0
        %v547 = vsel %vm241, %v541, 0
        %v550 = vsel %vm241, %v542, 0
        %v553 = vsel %vm241, %v539, 0
        %555 = vmatprep.subr.bf16.mxu0 %v550
        %556 = vmatpush1.bf16.msra.mxu0 %v547
        %557 = vmatprep.subr.bf16.mxu0 0
        %558 = vmatpush1.bf16.msra.mxu0 0
        %559 = vmatprep.subr.bf16.mxu0 0
        %560 = vmatpush1.bf16.msra.mxu0 0
        %561 = vmatprep.subr.bf16.mxu0 0
        %562 = vmatpush1.bf16.msra.mxu0 0
        %563 = vmatprep.subr.bf16.mxu0 0
        %564 = vmatpush1.bf16.msra.mxu0 0
        %565 = vmatprep.subr.bf16.mxu0 0
        %566 = vmatpush1.bf16.msra.mxu0 0
        %567 = vmatprep.subr.bf16.mxu0 0
        %568 = vmatpush1.bf16.msra.mxu0 0
        %569 = vmatprep.subr.bf16.mxu0 0
        %570 = vmatpush1.bf16.msra.mxu0 0
        %571 = vmatprep.subr.bf16.mxu0 0
        %572 = vmatpush1.bf16.msra.mxu0 0
        %573 = vmatprep.subr.bf16.mxu0 0
        %574 = vmatpush1.bf16.msra.mxu0 0
        %575 = vmatprep.subr.bf16.mxu0 0
        %576 = vmatpush1.bf16.msra.mxu0 0
        %577 = vmatprep.subr.bf16.mxu0 0
        %578 = vmatpush1.bf16.msra.mxu0 0
        %579 = vmatprep.subr.bf16.mxu0 0
        %580 = vmatpush1.bf16.msra.mxu0 0
        %581 = vmatprep.subr.bf16.mxu0 0
        %582 = vmatpush1.bf16.msra.mxu0 0
        %583 = vmatprep.subr.bf16.mxu0 0
        %584 = vmatpush1.bf16.msra.mxu0 0
        %585 = vmatprep.subr.bf16.mxu0 0
        %586 = vmatpush1.bf16.msra.mxu0 0
        %587 = vmatprep.mubr.bf16.mxu0 0
        %588 = vmatmul.mubr.bf16.gmra.mrb[0].mxu0 %v544
        %v589 = vpop.f32.mrb[0].mxu0
        %v590 = vadd.f32 0.0, %v589
        %v591 = vpop.f32.mrb[0].mxu0
        %v592 = vadd.f32 0.0, %v591
        %v593 = vpop.f32.mrb[0].mxu0
        %v594 = vpop.f32.mrb[0].mxu0
        %595 = vdwg.mxu0
        %596 = vmatprep.subr.bf16.mxu0 0
        %597 = vmatpush1.bf16.msra.mxu0 %v553
        %598 = vmatprep.subr.bf16.mxu0 0
        %599 = vmatpush1.bf16.msra.mxu0 0
        %600 = vmatprep.subr.bf16.mxu0 0
        %601 = vmatpush1.bf16.msra.mxu0 0
        %602 = vmatprep.subr.bf16.mxu0 0
        %603 = vmatpush1.bf16.msra.mxu0 0
        %604 = vmatprep.subr.bf16.mxu0 0
        %605 = vmatpush1.bf16.msra.mxu0 0
        %606 = vmatprep.subr.bf16.mxu0 0
        %607 = vmatpush1.bf16.msra.mxu0 0
        %608 = vmatprep.subr.bf16.mxu0 0
        %609 = vmatpush1.bf16.msra.mxu0 0
        %610 = vmatprep.subr.bf16.mxu0 0
        %611 = vmatpush1.bf16.msra.mxu0 0
        %612 = vmatprep.subr.bf16.mxu0 0
        %613 = vmatpush1.bf16.msra.mxu0 0
        %614 = vmatprep.subr.bf16.mxu0 0
        %615 = vmatpush1.bf16.msra.mxu0 0
        %616 = vmatprep.subr.bf16.mxu0 0
        %617 = vmatpush1.bf16.msra.mxu0 0
        %618 = vmatprep.subr.bf16.mxu0 0
        %619 = vmatpush1.bf16.msra.mxu0 0
        %620 = vmatprep.subr.bf16.mxu0 0
        %621 = vmatpush1.bf16.msra.mxu0 0
        %622 = vmatprep.subr.bf16.mxu0 0
        %623 = vmatpush1.bf16.msra.mxu0 0
        %624 = vmatprep.subr.bf16.mxu0 0
        %625 = vmatpush1.bf16.msra.mxu0 0
        %626 = vmatprep.subr.bf16.mxu0 0
        %627 = vmatpush1.bf16.msra.mxu0 0
        %628 = vmatprep.mubr.bf16.mxu0 0
        %629 = vmatmul.mubr.bf16.gmra.mrb[0].mxu0 %v544
        %v630 = vpop.f32.mrb[0].mxu0
        %v631 = vadd.f32 0.0, %v630
        %v632 = vpop.f32.mrb[0].mxu0
        %v633 = vpop.f32.mrb[0].mxu0
        %v634 = vpop.f32.mrb[0].mxu0
        %635 = vdwg.mxu0
        %v636 = vadd.f32 %v529, %v590
        %v637 = vadd.f32 %v530, %v592
        %v638 = vadd.f32 %v531, %v631
        %s639 = scalar_lea.vmem [#allocation5], 16
        %v640 = vld [vmem:[%s639] sm:$0xf]
        %641 = vrot.lane.b32.xlu0 %v225, 109
        %v642 = vpop.permute.xlu0 %641
        %643 = vrot.lane.b32.xlu0 %v226, 109
        %v644 = vpop.permute.xlu0 %643
        %645 = vrot.lane.b32.xlu0 %v227, 109
        %v646 = vpop.permute.xlu0 %645
        %vm647 = vcmask 891904
        %v648 = vsel %vm647, %v642, %v644
        %v649 = vsel %vm647, %v644, %v646
        %v651 = vsel %vm237, %v640, 0
        %v654 = vsel %vm241, %v648, 0
        %v657 = vsel %vm241, %v649, 0
        %v660 = vsel %vm241, %v646, 0
        %662 = vmatprep.subr.bf16.mxu0 %v657
        %663 = vmatpush1.bf16.msra.mxu0 %v654
        %664 = vmatprep.subr.bf16.mxu0 0
        %665 = vmatpush1.bf16.msra.mxu0 0
        %666 = vmatprep.subr.bf16.mxu0 0
        %667 = vmatpush1.bf16.msra.mxu0 0
        %668 = vmatprep.subr.bf16.mxu0 0
        %669 = vmatpush1.bf16.msra.mxu0 0
        %670 = vmatprep.subr.bf16.mxu0 0
        %671 = vmatpush1.bf16.msra.mxu0 0
        %672 = vmatprep.subr.bf16.mxu0 0
        %673 = vmatpush1.bf16.msra.mxu0 0
        %674 = vmatprep.subr.bf16.mxu0 0
        %675 = vmatpush1.bf16.msra.mxu0 0
        %676 = vmatprep.subr.bf16.mxu0 0
        %677 = vmatpush1.bf16.msra.mxu0 0
        %678 = vmatprep.subr.bf16.mxu0 0
        %679 = vmatpush1.bf16.msra.mxu0 0
        %680 = vmatprep.subr.bf16.mxu0 0
        %681 = vmatpush1.bf16.msra.mxu0 0
        %682 = vmatprep.subr.bf16.mxu0 0
        %683 = vmatpush1.bf16.msra.mxu0 0
        %684 = vmatprep.subr.bf16.mxu0 0
        %685 = vmatpush1.bf16.msra.mxu0 0
        %686 = vmatprep.subr.bf16.mxu0 0
        %687 = vmatpush1.bf16.msra.mxu0 0
        %688 = vmatprep.subr.bf16.mxu0 0
        %689 = vmatpush1.bf16.msra.mxu0 0
        %690 = vmatprep.subr.bf16.mxu0 0
        %691 = vmatpush1.bf16.msra.mxu0 0
        %692 = vmatprep.subr.bf16.mxu0 0
        %693 = vmatpush1.bf16.msra.mxu0 0
        %694 = vmatprep.mubr.bf16.mxu0 0
        %695 = vmatmul.mubr.bf16.gmra.mrb[0].mxu0 %v651
        %v696 = vpop.f32.mrb[0].mxu0
        %v697 = vadd.f32 0.0, %v696
        %v698 = vpop.f32.mrb[0].mxu0
        %v699 = vadd.f32 0.0, %v698
        %v700 = vpop.f32.mrb[0].mxu0
        %v701 = vpop.f32.mrb[0].mxu0
        %702 = vdwg.mxu0
        %703 = vmatprep.subr.bf16.mxu0 0
        %704 = vmatpush1.bf16.msra.mxu0 %v660
        %705 = vmatprep.subr.bf16.mxu0 0
        %706 = vmatpush1.bf16.msra.mxu0 0
        %707 = vmatprep.subr.bf16.mxu0 0
        %708 = vmatpush1.bf16.msra.mxu0 0
        %709 = vmatprep.subr.bf16.mxu0 0
        %710 = vmatpush1.bf16.msra.mxu0 0
        %711 = vmatprep.subr.bf16.mxu0 0
        %712 = vmatpush1.bf16.msra.mxu0 0
        %713 = vmatprep.subr.bf16.mxu0 0
        %714 = vmatpush1.bf16.msra.mxu0 0
        %715 = vmatprep.subr.bf16.mxu0 0
        %716 = vmatpush1.bf16.msra.mxu0 0
        %717 = vmatprep.subr.bf16.mxu0 0
        %718 = vmatpush1.bf16.msra.mxu0 0
        %719 = vmatprep.subr.bf16.mxu0 0
        %720 = vmatpush1.bf16.msra.mxu0 0
        %721 = vmatprep.subr.bf16.mxu0 0
        %722 = vmatpush1.bf16.msra.mxu0 0
        %723 = vmatprep.subr.bf16.mxu0 0
        %724 = vmatpush1.bf16.msra.mxu0 0
        %725 = vmatprep.subr.bf16.mxu0 0
        %726 = vmatpush1.bf16.msra.mxu0 0
        %727 = vmatprep.subr.bf16.mxu0 0
        %728 = vmatpush1.bf16.msra.mxu0 0
        %729 = vmatprep.subr.bf16.mxu0 0
        %730 = vmatpush1.bf16.msra.mxu0 0
        %731 = vmatprep.subr.bf16.mxu0 0
        %732 = vmatpush1.bf16.msra.mxu0 0
        %733 = vmatprep.subr.bf16.mxu0 0
        %734 = vmatpush1.bf16.msra.mxu0 0
        %735 = vmatprep.mubr.bf16.mxu0 0
        %736 = vmatmul.mubr.bf16.gmra.mrb[0].mxu0 %v651
        %v737 = vpop.f32.mrb[0].mxu0
        %v738 = vadd.f32 0.0, %v737
        %v739 = vpop.f32.mrb[0].mxu0
        %v740 = vpop.f32.mrb[0].mxu0
        %v741 = vpop.f32.mrb[0].mxu0
        %742 = vdwg.mxu0
        %v743 = vadd.f32 %v636, %v697
        %v744 = vadd.f32 %v637, %v699
        %v745 = vadd.f32 %v638, %v738
        %s746 = scalar_lea.vmem [#allocation5], 20
        %v747 = vld [vmem:[%s746] sm:$0xf]
        %748 = vrot.lane.b32.xlu0 %v225, 108
        %v749 = vpop.permute.xlu0 %748
        %750 = vrot.lane.b32.xlu0 %v226, 108
        %v751 = vpop.permute.xlu0 %750
        %752 = vrot.lane.b32.xlu0 %v227, 108
        %v753 = vpop.permute.xlu0 %752
        %vm754 = vcmask 883712
        %v755 = vsel %vm754, %v749, %v751
        %v756 = vsel %vm754, %v751, %v753
        %v758 = vsel %vm237, %v747, 0
        %v761 = vsel %vm241, %v755, 0
        %v764 = vsel %vm241, %v756, 0
        %v767 = vsel %vm241, %v753, 0
        %769 = vmatprep.subr.bf16.mxu0 %v764
        %770 = vmatpush1.bf16.msra.mxu0 %v761
        %771 = vmatprep.subr.bf16.mxu0 0
        %772 = vmatpush1.bf16.msra.mxu0 0
        %773 = vmatprep.subr.bf16.mxu0 0
        %774 = vmatpush1.bf16.msra.mxu0 0
        %775 = vmatprep.subr.bf16.mxu0 0
        %776 = vmatpush1.bf16.msra.mxu0 0
        %777 = vmatprep.subr.bf16.mxu0 0
        %778 = vmatpush1.bf16.msra.mxu0 0
        %779 = vmatprep.subr.bf16.mxu0 0
        %780 = vmatpush1.bf16.msra.mxu0 0
        %781 = vmatprep.subr.bf16.mxu0 0
        %782 = vmatpush1.bf16.msra.mxu0 0
        %783 = vmatprep.subr.bf16.mxu0 0
        %784 = vmatpush1.bf16.msra.mxu0 0
        %785 = vmatprep.subr.bf16.mxu0 0
        %786 = vmatpush1.bf16.msra.mxu0 0
        %787 = vmatprep.subr.bf16.mxu0 0
        %788 = vmatpush1.bf16.msra.mxu0 0
        %789 = vmatprep.subr.bf16.mxu0 0
        %790 = vmatpush1.bf16.msra.mxu0 0
        %791 = vmatprep.subr.bf16.mxu0 0
        %792 = vmatpush1.bf16.msra.mxu0 0
        %793 = vmatprep.subr.bf16.mxu0 0
        %794 = vmatpush1.bf16.msra.mxu0 0
        %795 = vmatprep.subr.bf16.mxu0 0
        %796 = vmatpush1.bf16.msra.mxu0 0
        %797 = vmatprep.subr.bf16.mxu0 0
        %798 = vmatpush1.bf16.msra.mxu0 0
        %799 = vmatprep.subr.bf16.mxu0 0
        %800 = vmatpush1.bf16.msra.mxu0 0
        %801 = vmatprep.mubr.bf16.mxu0 0
        %802 = vmatmul.mubr.bf16.gmra.mrb[0].mxu0 %v758
        %v803 = vpop.f32.mrb[0].mxu0
        %v804 = vadd.f32 0.0, %v803
        %v805 = vpop.f32.mrb[0].mxu0
        %v806 = vadd.f32 0.0, %v805
        %v807 = vpop.f32.mrb[0].mxu0
        %v808 = vpop.f32.mrb[0].mxu0
        %809 = vdwg.mxu0
        %810 = vmatprep.subr.bf16.mxu0 0
        %811 = vmatpush1.bf16.msra.mxu0 %v767
        %812 = vmatprep.subr.bf16.mxu0 0
        %813 = vmatpush1.bf16.msra.mxu0 0
        %814 = vmatprep.subr.bf16.mxu0 0
        %815 = vmatpush1.bf16.msra.mxu0 0
        %816 = vmatprep.subr.bf16.mxu0 0
        %817 = vmatpush1.bf16.msra.mxu0 0
        %818 = vmatprep.subr.bf16.mxu0 0
        %819 = vmatpush1.bf16.msra.mxu0 0
        %820 = vmatprep.subr.bf16.mxu0 0
        %821 = vmatpush1.bf16.msra.mxu0 0
        %822 = vmatprep.subr.bf16.mxu0 0
        %823 = vmatpush1.bf16.msra.mxu0 0
        %824 = vmatprep.subr.bf16.mxu0 0
        %825 = vmatpush1.bf16.msra.mxu0 0
        %826 = vmatprep.subr.bf16.mxu0 0
        %827 = vmatpush1.bf16.msra.mxu0 0
        %828 = vmatprep.subr.bf16.mxu0 0
        %829 = vmatpush1.bf16.msra.mxu0 0
        %830 = vmatprep.subr.bf16.mxu0 0
        %831 = vmatpush1.bf16.msra.mxu0 0
        %832 = vmatprep.subr.bf16.mxu0 0
        %833 = vmatpush1.bf16.msra.mxu0 0
        %834 = vmatprep.subr.bf16.mxu0 0
        %835 = vmatpush1.bf16.msra.mxu0 0
        %836 = vmatprep.subr.bf16.mxu0 0
        %837 = vmatpush1.bf16.msra.mxu0 0
        %838 = vmatprep.subr.bf16.mxu0 0
        %839 = vmatpush1.bf16.msra.mxu0 0
        %840 = vmatprep.subr.bf16.mxu0 0
        %841 = vmatpush1.bf16.msra.mxu0 0
        %842 = vmatprep.mubr.bf16.mxu0 0
        %843 = vmatmul.mubr.bf16.gmra.mrb[0].mxu0 %v758
        %v844 = vpop.f32.mrb[0].mxu0
        %v845 = vadd.f32 0.0, %v844
        %v846 = vpop.f32.mrb[0].mxu0
        %v847 = vpop.f32.mrb[0].mxu0
        %v848 = vpop.f32.mrb[0].mxu0
        %849 = vdwg.mxu0
        %v850 = vadd.f32 %v743, %v804
        %v851 = vadd.f32 %v744, %v806
        %v852 = vadd.f32 %v745, %v845
        %s853 = scalar_lea.vmem [#allocation5], 24
        %v854 = vld [vmem:[%s853] sm:$0xf]
        %855 = vrot.lane.b32.xlu0 %v225, 92
        %v856 = vpop.permute.xlu0 %855
        %857 = vrot.lane.b32.xlu0 %v226, 92
        %v858 = vpop.permute.xlu0 %857
        %859 = vrot.lane.b32.xlu0 %v227, 92
        %v860 = vpop.permute.xlu0 %859
        %vm861 = vcmask 752640
        %v862 = vsel %vm861, %v856, %v858
        %v863 = vsel %vm861, %v858, %v860
        %v865 = vsel %vm237, %v854, 0
        %v868 = vsel %vm241, %v862, 0
        %v871 = vsel %vm241, %v863, 0
        %v874 = vsel %vm241, %v860, 0
        %876 = vmatprep.subr.bf16.mxu0 %v871
        %877 = vmatpush1.bf16.msra.mxu0 %v868
        %878 = vmatprep.subr.bf16.mxu0 0
        %879 = vmatpush1.bf16.msra.mxu0 0
        %880 = vmatprep.subr.bf16.mxu0 0
        %881 = vmatpush1.bf16.msra.mxu0 0
        %882 = vmatprep.subr.bf16.mxu0 0
        %883 = vmatpush1.bf16.msra.mxu0 0
        %884 = vmatprep.subr.bf16.mxu0 0
        %885 = vmatpush1.bf16.msra.mxu0 0
        %886 = vmatprep.subr.bf16.mxu0 0
        %887 = vmatpush1.bf16.msra.mxu0 0
        %888 = vmatprep.subr.bf16.mxu0 0
        %889 = vmatpush1.bf16.msra.mxu0 0
        %890 = vmatprep.subr.bf16.mxu0 0
        %891 = vmatpush1.bf16.msra.mxu0 0
        %892 = vmatprep.subr.bf16.mxu0 0
        %893 = vmatpush1.bf16.msra.mxu0 0
        %894 = vmatprep.subr.bf16.mxu0 0
        %895 = vmatpush1.bf16.msra.mxu0 0
        %896 = vmatprep.subr.bf16.mxu0 0
        %897 = vmatpush1.bf16.msra.mxu0 0
        %898 = vmatprep.subr.bf16.mxu0 0
        %899 = vmatpush1.bf16.msra.mxu0 0
        %900 = vmatprep.subr.bf16.mxu0 0
        %901 = vmatpush1.bf16.msra.mxu0 0
        %902 = vmatprep.subr.bf16.mxu0 0
        %903 = vmatpush1.bf16.msra.mxu0 0
        %904 = vmatprep.subr.bf16.mxu0 0
        %905 = vmatpush1.bf16.msra.mxu0 0
        %906 = vmatprep.subr.bf16.mxu0 0
        %907 = vmatpush1.bf16.msra.mxu0 0
        %908 = vmatprep.mubr.bf16.mxu0 0
        %909 = vmatmul.mubr.bf16.gmra.mrb[0].mxu0 %v865
        %v910 = vpop.f32.mrb[0].mxu0
        %v911 = vadd.f32 0.0, %v910
        %v912 = vpop.f32.mrb[0].mxu0
        %v913 = vadd.f32 0.0, %v912
        %v914 = vpop.f32.mrb[0].mxu0
        %v915 = vpop.f32.mrb[0].mxu0
        %916 = vdwg.mxu0
        %917 = vmatprep.subr.bf16.mxu0 0
        %918 = vmatpush1.bf16.msra.mxu0 %v874
        %919 = vmatprep.subr.bf16.mxu0 0
        %920 = vmatpush1.bf16.msra.mxu0 0
        %921 = vmatprep.subr.bf16.mxu0 0
        %922 = vmatpush1.bf16.msra.mxu0 0
        %923 = vmatprep.subr.bf16.mxu0 0
        %924 = vmatpush1.bf16.msra.mxu0 0
        %925 = vmatprep.subr.bf16.mxu0 0
        %926 = vmatpush1.bf16.msra.mxu0 0
        %927 = vmatprep.subr.bf16.mxu0 0
        %928 = vmatpush1.bf16.msra.mxu0 0
        %929 = vmatprep.subr.bf16.mxu0 0
        %930 = vmatpush1.bf16.msra.mxu0 0
        %931 = vmatprep.subr.bf16.mxu0 0
        %932 = vmatpush1.bf16.msra.mxu0 0
        %933 = vmatprep.subr.bf16.mxu0 0
        %934 = vmatpush1.bf16.msra.mxu0 0
        %935 = vmatprep.subr.bf16.mxu0 0
        %936 = vmatpush1.bf16.msra.mxu0 0
        %937 = vmatprep.subr.bf16.mxu0 0
        %938 = vmatpush1.bf16.msra.mxu0 0
        %939 = vmatprep.subr.bf16.mxu0 0
        %940 = vmatpush1.bf16.msra.mxu0 0
        %941 = vmatprep.subr.bf16.mxu0 0
        %942 = vmatpush1.bf16.msra.mxu0 0
        %943 = vmatprep.subr.bf16.mxu0 0
        %944 = vmatpush1.bf16.msra.mxu0 0
        %945 = vmatprep.subr.bf16.mxu0 0
        %946 = vmatpush1.bf16.msra.mxu0 0
        %947 = vmatprep.subr.bf16.mxu0 0
        %948 = vmatpush1.bf16.msra.mxu0 0
        %949 = vmatprep.mubr.bf16.mxu0 0
        %950 = vmatmul.mubr.bf16.gmra.mrb[0].mxu0 %v865
        %v951 = vpop.f32.mrb[0].mxu0
        %v952 = vadd.f32 0.0, %v951
        %v953 = vpop.f32.mrb[0].mxu0
        %v954 = vpop.f32.mrb[0].mxu0
        %v955 = vpop.f32.mrb[0].mxu0
        %956 = vdwg.mxu0
        %v957 = vadd.f32 %v850, %v911
        %v958 = vadd.f32 %v851, %v913
        %v959 = vadd.f32 %v852, %v952
        %s960 = scalar_lea.vmem [#allocation5], 28
        %v961 = vld [vmem:[%s960] sm:$0xf]
        %962 = vrot.lane.b32.xlu0 %v225, 91
        %v963 = vpop.permute.xlu0 %962
        %964 = vrot.lane.b32.xlu0 %v226, 91
        %v965 = vpop.permute.xlu0 %964
        %966 = vrot.lane.b32.xlu0 %v227, 91
        %v967 = vpop.permute.xlu0 %966
        %vm968 = vcmask 744448
        %v969 = vsel %vm968, %v963, %v965
        %v970 = vsel %vm968, %v965, %v967
        %v972 = vsel %vm237, %v961, 0
        %v975 = vsel %vm241, %v969, 0
        %v978 = vsel %vm241, %v970, 0
        %v981 = vsel %vm241, %v967, 0
        %983 = vmatprep.subr.bf16.mxu0 %v978
        %984 = vmatpush1.bf16.msra.mxu0 %v975
        %985 = vmatprep.subr.bf16.mxu0 0
        %986 = vmatpush1.bf16.msra.mxu0 0
        %987 = vmatprep.subr.bf16.mxu0 0
        %988 = vmatpush1.bf16.msra.mxu0 0
        %989 = vmatprep.subr.bf16.mxu0 0
        %990 = vmatpush1.bf16.msra.mxu0 0
        %991 = vmatprep.subr.bf16.mxu0 0
        %992 = vmatpush1.bf16.msra.mxu0 0
        %993 = vmatprep.subr.bf16.mxu0 0
        %994 = vmatpush1.bf16.msra.mxu0 0
        %995 = vmatprep.subr.bf16.mxu0 0
        %996 = vmatpush1.bf16.msra.mxu0 0
        %997 = vmatprep.subr.bf16.mxu0 0
        %998 = vmatpush1.bf16.msra.mxu0 0
        %999 = vmatprep.subr.bf16.mxu0 0
        %1000 = vmatpush1.bf16.msra.mxu0 0
        %1001 = vmatprep.subr.bf16.mxu0 0
        %1002 = vmatpush1.bf16.msra.mxu0 0
        %1003 = vmatprep.subr.bf16.mxu0 0
        %1004 = vmatpush1.bf16.msra.mxu0 0
        %1005 = vmatprep.subr.bf16.mxu0 0
        %1006 = vmatpush1.bf16.msra.mxu0 0
        %1007 = vmatprep.subr.bf16.mxu0 0
        %1008 = vmatpush1.bf16.msra.mxu0 0
        %1009 = vmatprep.subr.bf16.mxu0 0
        %1010 = vmatpush1.bf16.msra.mxu0 0
        %1011 = vmatprep.subr.bf16.mxu0 0
        %1012 = vmatpush1.bf16.msra.mxu0 0
        %1013 = vmatprep.subr.bf16.mxu0 0
        %1014 = vmatpush1.bf16.msra.mxu0 0
        %1015 = vmatprep.mubr.bf16.mxu0 0
        %1016 = vmatmul.mubr.bf16.gmra.mrb[0].mxu0 %v972
        %v1017 = vpop.f32.mrb[0].mxu0
        %v1018 = vadd.f32 0.0, %v1017
        %v1019 = vpop.f32.mrb[0].mxu0
        %v1020 = vadd.f32 0.0, %v1019
        %v1021 = vpop.f32.mrb[0].mxu0
        %v1022 = vpop.f32.mrb[0].mxu0
        %1023 = vdwg.mxu0
        %1024 = vmatprep.subr.bf16.mxu0 0
        %1025 = vmatpush1.bf16.msra.mxu0 %v981
        %1026 = vmatprep.subr.bf16.mxu0 0
        %1027 = vmatpush1.bf16.msra.mxu0 0
        %1028 = vmatprep.subr.bf16.mxu0 0
        %1029 = vmatpush1.bf16.msra.mxu0 0
        %1030 = vmatprep.subr.bf16.mxu0 0
        %1031 = vmatpush1.bf16.msra.mxu0 0
        %1032 = vmatprep.subr.bf16.mxu0 0
        %1033 = vmatpush1.bf16.msra.mxu0 0
        %1034 = vmatprep.subr.bf16.mxu0 0
        %1035 = vmatpush1.bf16.msra.mxu0 0
        %1036 = vmatprep.subr.bf16.mxu0 0
        %1037 = vmatpush1.bf16.msra.mxu0 0
        %1038 = vmatprep.subr.bf16.mxu0 0
        %1039 = vmatpush1.bf16.msra.mxu0 0
        %1040 = vmatprep.subr.bf16.mxu0 0
        %1041 = vmatpush1.bf16.msra.mxu0 0
        %1042 = vmatprep.subr.bf16.mxu0 0
        %1043 = vmatpush1.bf16.msra.mxu0 0
        %1044 = vmatprep.subr.bf16.mxu0 0
        %1045 = vmatpush1.bf16.msra.mxu0 0
        %1046 = vmatprep.subr.bf16.mxu0 0
        %1047 = vmatpush1.bf16.msra.mxu0 0
        %1048 = vmatprep.subr.bf16.mxu0 0
        %1049 = vmatpush1.bf16.msra.mxu0 0
        %1050 = vmatprep.subr.bf16.mxu0 0
        %1051 = vmatpush1.bf16.msra.mxu0 0
        %1052 = vmatprep.subr.bf16.mxu0 0
        %1053 = vmatpush1.bf16.msra.mxu0 0
        %1054 = vmatprep.subr.bf16.mxu0 0
        %1055 = vmatpush1.bf16.msra.mxu0 0
        %1056 = vmatprep.mubr.bf16.mxu0 0
        %1057 = vmatmul.mubr.bf16.gmra.mrb[0].mxu0 %v972
        %v1058 = vpop.f32.mrb[0].mxu0
        %v1059 = vadd.f32 0.0, %v1058
        %v1060 = vpop.f32.mrb[0].mxu0
        %v1061 = vpop.f32.mrb[0].mxu0
        %v1062 = vpop.f32.mrb[0].mxu0
        %1063 = vdwg.mxu0
        %v1064 = vadd.f32 %v957, %v1018
        %v1065 = vadd.f32 %v958, %v1020
        %v1066 = vadd.f32 %v959, %v1059
        %s1067 = scalar_lea.vmem [#allocation5], 32
        %v1068 = vld [vmem:[%s1067] sm:$0xf]
        %1069 = vrot.lane.b32.xlu0 %v225, 90
        %v1070 = vpop.permute.xlu0 %1069
        %1071 = vrot.lane.b32.xlu0 %v226, 90
        %v1072 = vpop.permute.xlu0 %1071
        %1073 = vrot.lane.b32.xlu0 %v227, 90
        %v1074 = vpop.permute.xlu0 %1073
        %vm1075 = vcmask 736256
        %v1076 = vsel %vm1075, %v1070, %v1072
        %v1077 = vsel %vm1075, %v1072, %v1074
        %v1079 = vsel %vm237, %v1068, 0
        %v1082 = vsel %vm241, %v1076, 0
        %v1085 = vsel %vm241, %v1077, 0
        %v1088 = vsel %vm241, %v1074, 0
        %1090 = vmatprep.subr.bf16.mxu0 %v1085
        %1091 = vmatpush1.bf16.msra.mxu0 %v1082
        %1092 = vmatprep.subr.bf16.mxu0 0
        %1093 = vmatpush1.bf16.msra.mxu0 0
        %1094 = vmatprep.subr.bf16.mxu0 0
        %1095 = vmatpush1.bf16.msra.mxu0 0
        %1096 = vmatprep.subr.bf16.mxu0 0
        %1097 = vmatpush1.bf16.msra.mxu0 0
        %1098 = vmatprep.subr.bf16.mxu0 0
        %1099 = vmatpush1.bf16.msra.mxu0 0
        %1100 = vmatprep.subr.bf16.mxu0 0
        %1101 = vmatpush1.bf16.msra.mxu0 0
        %1102 = vmatprep.subr.bf16.mxu0 0
        %1103 = vmatpush1.bf16.msra.mxu0 0
        %1104 = vmatprep.subr.bf16.mxu0 0
        %1105 = vmatpush1.bf16.msra.mxu0 0
        %1106 = vmatprep.subr.bf16.mxu0 0
        %1107 = vmatpush1.bf16.msra.mxu0 0
        %1108 = vmatprep.subr.bf16.mxu0 0
        %1109 = vmatpush1.bf16.msra.mxu0 0
        %1110 = vmatprep.subr.bf16.mxu0 0
        %1111 = vmatpush1.bf16.msra.mxu0 0
        %1112 = vmatprep.subr.bf16.mxu0 0
        %1113 = vmatpush1.bf16.msra.mxu0 0
        %1114 = vmatprep.subr.bf16.mxu0 0
        %1115 = vmatpush1.bf16.msra.mxu0 0
        %1116 = vmatprep.subr.bf16.mxu0 0
        %1117 = vmatpush1.bf16.msra.mxu0 0
        %1118 = vmatprep.subr.bf16.mxu0 0
        %1119 = vmatpush1.bf16.msra.mxu0 0
        %1120 = vmatprep.subr.bf16.mxu0 0
        %1121 = vmatpush1.bf16.msra.mxu0 0
        %1122 = vmatprep.mubr.bf16.mxu0 0
        %1123 = vmatmul.mubr.bf16.gmra.mrb[0].mxu0 %v1079
        %v1124 = vpop.f32.mrb[0].mxu0
        %v1125 = vadd.f32 0.0, %v1124
        %v1126 = vpop.f32.mrb[0].mxu0
        %v1127 = vadd.f32 0.0, %v1126
        %v1128 = vpop.f32.mrb[0].mxu0
        %v1129 = vpop.f32.mrb[0].mxu0
        %1130 = vdwg.mxu0
        %1131 = vmatprep.subr.bf16.mxu0 0
        %1132 = vmatpush1.bf16.msra.mxu0 %v1088
        %1133 = vmatprep.subr.bf16.mxu0 0
        %1134 = vmatpush1.bf16.msra.mxu0 0
        %1135 = vmatprep.subr.bf16.mxu0 0
        %1136 = vmatpush1.bf16.msra.mxu0 0
        %1137 = vmatprep.subr.bf16.mxu0 0
        %1138 = vmatpush1.bf16.msra.mxu0 0
        %1139 = vmatprep.subr.bf16.mxu0 0
        %1140 = vmatpush1.bf16.msra.mxu0 0
        %1141 = vmatprep.subr.bf16.mxu0 0
        %1142 = vmatpush1.bf16.msra.mxu0 0
        %1143 = vmatprep.subr.bf16.mxu0 0
        %1144 = vmatpush1.bf16.msra.mxu0 0
        %1145 = vmatprep.subr.bf16.mxu0 0
        %1146 = vmatpush1.bf16.msra.mxu0 0
        %1147 = vmatprep.subr.bf16.mxu0 0
        %1148 = vmatpush1.bf16.msra.mxu0 0
        %1149 = vmatprep.subr.bf16.mxu0 0
        %1150 = vmatpush1.bf16.msra.mxu0 0
        %1151 = vmatprep.subr.bf16.mxu0 0
        %1152 = vmatpush1.bf16.msra.mxu0 0
        %1153 = vmatprep.subr.bf16.mxu0 0
        %1154 = vmatpush1.bf16.msra.mxu0 0
        %1155 = vmatprep.subr.bf16.mxu0 0
        %1156 = vmatpush1.bf16.msra.mxu0 0
        %1157 = vmatprep.subr.bf16.mxu0 0
        %1158 = vmatpush1.bf16.msra.mxu0 0
        %1159 = vmatprep.subr.bf16.mxu0 0
        %1160 = vmatpush1.bf16.msra.mxu0 0
        %1161 = vmatprep.subr.bf16.mxu0 0
        %1162 = vmatpush1.bf16.msra.mxu0 0
        %1163 = vmatprep.mubr.bf16.mxu0 0
        %1164 = vmatmul.mubr.bf16.gmra.mrb[0].mxu0 %v1079
        %v1165 = vpop.f32.mrb[0].mxu0
        %v1166 = vadd.f32 0.0, %v1165
        %v1167 = vpop.f32.mrb[0].mxu0
        %v1168 = vpop.f32.mrb[0].mxu0
        %v1169 = vpop.f32.mrb[0].mxu0
        %1170 = vdwg.mxu0
        %v1171 = vadd.f32 %v1064, %v1125
        %v1172 = vadd.f32 %v1065, %v1127
        %v1173 = vadd.f32 %v1066, %v1166
        %v1174 = vld [vmem:[#allocation7] sm:$0xff]
        %1176 = vset.pattern.permute.xlu0 0
        %1177 = vperm.xlu0 %1176, %v1174
        %v1178 = vpop.permute.xlu0 %1177
        %v1180 = vadd.f32 %v1171, %v1178
        %v1181 = vadd.f32 %v1172, %v1178
        %v1182 = vadd.f32 %v1173, %v1178
        %v1183 = vmax.f32 %v1180, 0.0
        %v1184 = vmax.f32 %v1181, 0.0
        %v1185 = vmax.f32 %v1182, 0.0
        %v1186 = vpack.c.bf16 %v1183, %v1183
        %v1187 = vpack.c.bf16 %v1184, %v1184
        %v1188 = vpack.c.bf16 %v1185, %v1185
        %v1192 = vunpack.c.l.b16 %v1186
        %v1193 = vunpack.c.l.b16 %v1187
        %v1194 = vunpack.c.l.b16 %v1188
        %v1195 = vpack.c.b16 %v1193, %v1192
        %v1196 = vpack.c.b16 %v1194, %v1194
        %1199 = vst [vmem:[%s213] sm:$0xff] %v1195
        %vm1200 = vcmask 257024
        %1201 = vst.msk [vmem:[%s213 + $0x8] sm:$0xf] %vm1200, %v1196
        %s1202 = sand.u32 %s97, 1
        %s1203 = scalar_lea.sflag [#allocation4], %s1202
        %s1204 = sand.u32 %s97, 1
        %s1205 = smul.addr %s1204, 12
        %s1206 = scalar_lea.vmem [#allocation8], %s1205
        // Predicated region
        $region45: #{sppcspc_forward.9} parent=31 // pred_check
          %p1207 = pneg %p107
        $region46: #{sppcspc_forward.9} parent=31 // pred_check_branch
          %1209 = sbr.rel (%p1207) target = $region48
        $region47: #{sppcspc_forward.9} parent=31 // pred_region
          %s1211 = ssub.s32 192, 192
          %1212 = vsyncadd %s1203, %s1211
          %s1213 = smul.addr %s21, 3
          %s1214 = smul.addr %s1213, 64
          %s1215 = scalar_lea.hbm %s3, %s1214
          %s1217 = sshll.u32 %s1206, 4
          %s1218 = int_to_ptr.vmem [resolvable:$true] %s1217
          %1220 = dma.vmem_to_hbm [thread:$0]  %s1218, 192, %s1215, %s1203
        $region48: #{sppcspc_forward.9} parent=31 // pred_fallthru
          _
      $region32: #{sppcspc_forward.9} parent=5 // pred_fallthru
        _
      %p1221 = scmp.le.s32.totalorder 2, %s16
      // Predicated region
      $region49: #{sppcspc_forward.9} parent=5 // pred_check
        %p1222 = pneg %p1221
      $region50: #{sppcspc_forward.9} parent=5 // pred_check_branch
        %1224 = sbr.rel (%p1222) target = $region52
      $region51: #{sppcspc_forward.9} parent=5 // pred_region
        %s1225 = ssub.s32 %s16, 2
        // Predicated region
        $region53: #{sppcspc_forward.9} parent=51 // pred_check
          %p1226 = pneg %p113
        $region54: #{sppcspc_forward.9} parent=51 // pred_check_branch
          %1228 = sbr.rel (%p1226) target = $region56
        $region55: #{sppcspc_forward.9} parent=51 // pred_region
          %s1229 = sand.u32 %s98, 1
          %s1230 = scalar_lea.sflag [#allocation4], %s1229
          %s1231 = sand.u32 %s98, 1
          %s1232 = smul.addr %s1231, 12
          %s1233 = scalar_lea.vmem [#allocation8], %s1232
          %1234 = dma.done %s1230, 192
        $region56: #{sppcspc_forward.9} parent=51 // pred_fallthru
          _
      $region52: #{sppcspc_forward.9} parent=5 // pred_fallthru
        _
    $region6: #{sppcspc_forward.9} parent=1 // loop_footer
      %s20 = sadd.s32 1, %s16
    $region7: #{sppcspc_forward.9} parent=1 // loop_footer_branch
      %15 = sbr.rel target = $region3
    $region8: #{sppcspc_forward.9} parent=1 // loop_exit
      _
    %1235 = vsyncpa [#allocation3], 1
    %s1236 = scalar_lea.sflag [#allocation3], 1
    %1237 = vsyncpa %s1236, 1
    %1238 = vsyncpa [#allocation6], 1
    %1239 = vsyncpa [#allocation4], 1
    %s1240 = scalar_lea.sflag [#allocation4], 1
    %1241 = vsyncpa %s1240, 1

// kernel: sppcspc_forward.11
$region0: #{sppcspc_forward.11}
  #allocation0 [shape = 'u32[]', space=smem, size = 0x4, offset = 0x4, fixed_abs, tag = 'smem constant byte address 0x4 - core index']
  #allocation1 [shape = 'u32[144,128]{1,0:T(1,128)}', space=vmem, size = 0x12000, scoped, tag = 'internal scratch']
  %s0 = inlined_call_operand.hbm [shape: bf16[2,8,812], index: 0, kind: input, shape index: {}]
  %s1 = inlined_call_operand.hbm [shape: bf16[2,4,8,448], index: 1, kind: output, shape index: {}]
  %s2 = sld [smem:[#allocation0]]
  $region41: #{sppcspc_forward.11} parent=0
    _
  %s4 = ssub.s32 1, %s2
  %s5 = scalar_select 0, %s4, %s2
  $region1: #{sppcspc_forward.11} parent=0
    #allocation2 [shape = 'u8[28672]{0}', space=vmem, size = 0x7000, scoped, tag = 'input window, operand 0']
    #allocation3 [shape = 's32[2]{0}', space=sflag, size = 0x8, scoped, tag = 'scoped memory for sppcspc_forward.11']
    #allocation4 [shape = 's32[2]{0}', space=sflag, size = 0x8, scoped, tag = 'scoped memory for sppcspc_forward.11']
    #allocation5 [shape = 'u8[65536]{0}', space=vmem, size = 0x10000, scoped, tag = 'output window, operand 0']
    %6 = vsyncpa [#allocation3], 0
    %s7 = scalar_lea.sflag [#allocation3], 1
    %8 = vsyncpa %s7, 0
    %9 = vsyncpa [#allocation4], 0
    %s10 = scalar_lea.sflag [#allocation4], 1
    %11 = vsyncpa %s10, 0
    loop: start=0, step=1, limit=4
    $region2: #{sppcspc_forward.11} parent=1 // loop_pre_header
      _
    $region3: #{sppcspc_forward.11} parent=1 // loop_header
      %s13 = sphi 0, %s17
      %p14 = scmp.ge.s32.totalorder %s13, 4
      %s20 = sphi 0, %s32
      %s21 = sphi 0, %s28
      %s22 = sphi 0, %s20
      %s23 = sphi 0, %s21
      %s24 = sphi 0, %s22
      %s25 = sphi 0, %s23
      %s37 = sphi 0, %s39
      %s40 = sphi 0, %s37
      %s41 = sphi 0, %s40
      %s57 = sphi 0, %s41
      %s65 = sphi 0, %s67
      %s68 = sphi 0, %s65
      %s69 = sphi 0, %s68
      %s85 = sphi 0, %s69
    $region4: #{sppcspc_forward.11} parent=1 // loop_header_branch
      %16 = sbr.rel (%p14) target = $region8
    $region5: #{sppcspc_forward.11} parent=1 // loop_body
      %s18 = ssub.s32 %s13, 1
      %s19 = ssub.s32 %s13, 2
      %s26 = sadd.s32 1, %s21
      %p27 = scmp.ge.s32.totalorder %s26, 1
      %s28 = scalar_select %p27, 0, %s26
      %s29 = sadd.s32 1, %s20
      %s30 = scalar_select %p27, %s29, %s20
      %p31 = scmp.ge.s32.totalorder %s30, 2
      %s32 = scalar_select %p31, 0, %s30
      %s33 = ssub.s32 %s20, %s32
      %s34 = ssub.s32 %s21, %s28
      %s35 = sor.u32 %s33, %s34
      %p36 = scmp.eq.s32.totalorder %s35, 0
      %s38 = sadd.s32 %s37, 1
      %s39 = scalar_select %p36, %s37, %s38
      %p42 = pneg %p36
      %p43 = scmp.eq.s32.totalorder %s13, 1
      %p44 = por %p42, %p43
      %p45 = scmp.ne.s32.totalorder %s37, %s40
      %p46 = scmp.eq.s32.totalorder %s13, 0
      %p47 = por %p45, %p46
      %p48 = scmp.ne.s32.totalorder %s37, %s40
      %p49 = scmp.eq.s32.totalorder %s18, 1
      %p50 = por %p48, %p49
      %p51 = scmp.ne.s32.totalorder %s40, %s41
      %p52 = scmp.eq.s32.totalorder %s18, 0
      %p53 = por %p51, %p52
      %p54 = scmp.ne.s32.totalorder %s40, %s41
      %p55 = scmp.eq.s32.totalorder %s19, 1
      %p56 = por %p54, %p55
      %p58 = scmp.ne.s32.totalorder %s41, %s57
      %p59 = scmp.eq.s32.totalorder %s19, 0
      %p60 = por %p58, %p59
      %s61 = ssub.s32 %s20, %s32
      %s62 = ssub.s32 %s21, %s28
      %s63 = sor.u32 %s61, %s62
      %p64 = scmp.eq.s32.totalorder %s63, 0
      %s66 = sadd.s32 %s65, 1
      %s67 = scalar_select %p64, %s65, %s66
      %p70 = pneg %p64
      %p71 = scmp.eq.s32.totalorder %s13, 1
      %p72 = por %p70, %p71
      %p73 = scmp.ne.s32.totalorder %s65, %s68
      %p74 = scmp.eq.s32.totalorder %s13, 0
      %p75 = por %p73, %p74
      %p76 = scmp.ne.s32.totalorder %s65, %s68
      %p77 = scmp.eq.s32.totalorder %s18, 1
      %p78 = por %p76, %p77
      %p79 = scmp.ne.s32.totalorder %s68, %s69
      %p80 = scmp.eq.s32.totalorder %s18, 0
      %p81 = por %p79, %p80
      %p82 = scmp.ne.s32.totalorder %s68, %s69
      %p83 = scmp.eq.s32.totalorder %s19, 1
      %p84 = por %p82, %p83
      %p86 = scmp.ne.s32.totalorder %s69, %s85
      %p87 = scmp.eq.s32.totalorder %s19, 0
      %p88 = por %p86, %p87
      %p89 = scmp.le.s32.totalorder 1, %s13
      %p90 = scmp.lt.s32.totalorder %s13, 3
      %p91 = pnand %p89, %p90
      %p92 = pneg %p91
      // Predicated region
      $region9: #{sppcspc_forward.11} parent=5 // pred_check
        _
      $region10: #{sppcspc_forward.11} parent=5 // pred_check_branch
        %94 = sbr.rel (%p91) target = $region12
      $region11: #{sppcspc_forward.11} parent=5 // pred_region
        %s95 = ssub.s32 %s13, 1
      $region12: #{sppcspc_forward.11} parent=5 // pred_fallthru
        _
      %p96 = scmp.lt.s32.totalorder %s13, 2
      // Predicated region
      $region13: #{sppcspc_forward.11} parent=5 // pred_check
        %p97 = pneg %p96
      $region14: #{sppcspc_forward.11} parent=5 // pred_check_branch
        %99 = sbr.rel (%p97) target = $region16
      $region15: #{sppcspc_forward.11} parent=5 // pred_region
        // Predicated region
        $region17: #{sppcspc_forward.11} parent=15 // pred_check
          %p100 = pneg %p47
        $region18: #{sppcspc_forward.11} parent=15 // pred_check_branch
          %102 = sbr.rel (%p100) target = $region20
        $region19: #{sppcspc_forward.11} parent=15 // pred_region
          %s103 = sand.u32 %s37, 1
          %s104 = scalar_lea.sflag [#allocation3], %s103
          %s105 = sand.u32 %s37, 1
          %s106 = smul.addr %s105, 28
          %s107 = scalar_lea.vmem [#allocation2], %s106
          %s109 = ssub.s32 448, 448
          %110 = vsyncadd %s104, %s109
          %s111 = smul.addr %s21, 7
          %s112 = smul.addr %s20, 7
          %s113 = sadd.s32 %s111, %s112
          %s114 = smul.addr %s113, 64
          %s115 = scalar_lea.hbm %s0, %s114
          %s117 = sshll.u32 %s107, 4
          %s118 = int_to_ptr.vmem [resolvable:$true] %s117
          %120 = dma.hbm_to_vmem [thread:$0]  %s115, 448, %s118, %s104
        $region20: #{sppcspc_forward.11} parent=15 // pred_fallthru
          _
      $region16: #{sppcspc_forward.11} parent=5 // pred_fallthru
        _
      %p121 = scmp.le.s32.totalorder 1, %s13
      %p122 = scmp.lt.s32.totalorder %s13, 3
      %p123 = pnand %p121, %p122
      %p124 = pneg %p123
      // Predicated region
      $region21: #{sppcspc_forward.11} parent=5 // pred_check
        _
      $region22: #{sppcspc_forward.11} parent=5 // pred_check_branch
        %126 = sbr.rel (%p123) target = $region24
      $region23: #{sppcspc_forward.11} parent=5 // pred_region
        %s127 = ssub.s32 %s13, 1
        %s128 = sand.u32 %s40, 1
        %s129 = scalar_lea.sflag [#allocation3], %s128
        %s130 = sand.u32 %s40, 1
        %s131 = smul.addr %s130, 28
        %s132 = scalar_lea.vmem [#allocation2], %s131
        // Predicated region
        $region25: #{sppcspc_forward.11} parent=23 // pred_check
          %p133 = pneg %p53
        $region26: #{sppcspc_forward.11} parent=23 // pred_check_branch
          %135 = sbr.rel (%p133) target = $region28
        $region27: #{sppcspc_forward.11} parent=23 // pred_region
          %136 = dma.done %s129, 448
        $region28: #{sppcspc_forward.11} parent=23 // pred_fallthru
          _
        %s137 = sand.u32 %s40, 1
        %s138 = scalar_lea.sflag [#allocation3], %s137
        %s139 = sand.u32 %s40, 1
        %s140 = smul.addr %s139, 28
        %s141 = scalar_lea.vmem [#allocation2], %s140
        %p142 = pneg %p53
        %p143 = pneg %p50
        %p144 = pneg %p81
        %p145 = pneg %p78
        %s146 = sand.u32 %s68, 1
        %s147 = scalar_lea.sflag [#allocation4], %s146
        %s148 = sand.u32 %s68, 1
        %s149 = smul.addr %s148, 64
        %s150 = scalar_lea.vmem [#allocation5], %s149
        %v151 = vld [vmem:[%s132] sm:$0xff]
        %v152 = vld [vmem:[%s132 + $0x8] sm:$0xff]
        %v153 = vld [vmem:[%s132 + $0x10] sm:$0xff]
        %v154 = vld [vmem:[%s132 + $0x18] sm:$0xf]
        %158 = vrot.lane.b32.xlu0 %v151, 82
        %v159 = vpop.permute.xlu0 %158
        %160 = vrot.lane.b32.xlu0 %v152, 82
        %v161 = vpop.permute.xlu0 %160
        %162 = vrot.lane.b32.xlu0 %v153, 82
        %v163 = vpop.permute.xlu0 %162
        %v164 = vrot.slane %v159, 4
        %v165 = vrot.slane %v161, 4
        %v166 = vrot.slane %v163, 4
        %vm167 = vcmask 1043456
        %v168 = vsel %vm167, %v164, %v165
        %vm169 = vcmask 670720
        %v170 = vsel %vm169, %v168, %v161
        %v171 = vsel %vm167, %v165, %v166
        %v172 = vsel %vm169, %v171, %v163
        %175 = vst [vmem:[%s150] sm:$0xff] %v170
        %vm176 = vcmask 1043456
        %vm177 = vcmask 523268
        %vm178 = vmor %vm177, %vm176
        %179 = vst.msk [vmem:[%s150 + $0x8] sm:$0xff] %vm178, %v172
        %181 = vrot.lane.b32.xlu0 %v151, 127
        %v182 = vpop.permute.xlu0 %181
        %183 = vrot.lane.b32.xlu0 %v152, 127
        %v184 = vpop.permute.xlu0 %183
        %185 = vrot.lane.b32.xlu0 %v153, 127
        %v186 = vpop.permute.xlu0 %185
        %187 = vrot.lane.b32.xlu0 %v154, 127
        %v188 = vpop.permute.xlu0 %187
        %v189 = vrot.slane %v182, 4
        %v190 = vrot.slane %v184, 4
        %v191 = vrot.slane %v186, 4
        %v192 = vrot.slane %v188, 4
        %v193 = vsel %vm167, %v189, %v190
        %vm194 = vcmask 1039360
        %v195 = vsel %vm194, %v182, %v193
        %v196 = vsel %vm167, %v190, %v191
        %v197 = vsel %vm194, %v184, %v196
        %v198 = vsel %vm167, %v191, %v192
        %v199 = vsel %vm194, %v186, %v198
        %v204 = vmax.bf16 %v151, %v195
        %v205 = vmax.bf16 %v152, %v197
        %v206 = vmax.bf16 %v153, %v199
        %v207 = vmax.bf16 %v154, %v188
        %208 = vrot.lane.b32.xlu0 %v151, 126
        %v209 = vpop.permute.xlu0 %208
        %210 = vrot.lane.b32.xlu0 %v152, 126
        %v211 = vpop.permute.xlu0 %210
        %212 = vrot.lane.b32.xlu0 %v153, 126
        %v213 = vpop.permute.xlu0 %212
        %214 = vrot.lane.b32.xlu0 %v154, 126
        %v215 = vpop.permute.xlu0 %214
        %v216 = vrot.slane %v209, 4
        %v217 = vrot.slane %v211, 4
        %v218 = vrot.slane %v213, 4
        %v219 = vrot.slane %v215, 4
        %v220 = vsel %vm167, %v216, %v217
        %vm221 = vcmask 1031168
        %v222 = vsel %vm221, %v209, %v220
        %v223 = vsel %vm167, %v217, %v218
        %v224 = vsel %vm221, %v211, %v223
        %v225 = vsel %vm167, %v218, %v219
        %v226 = vsel %vm221, %v213, %v225
        %v231 = vmax.bf16 %v204, %v222
        %v232 = vmax.bf16 %v205, %v224
        %v233 = vmax.bf16 %v206, %v226
        %v234 = vmax.bf16 %v207, %v215
        %235 = vrot.lane.b32.xlu0 %v151, 125
        %v236 = vpop.permute.xlu0 %235
        %237 = vrot.lane.b32.xlu0 %v152, 125
        %v238 = vpop.permute.xlu0 %237
        %239 = vrot.lane.b32.xlu0 %v153, 125
        %v240 = vpop.permute.xlu0 %239
        %241 = vrot.lane.b32.xlu0 %v154, 125
        %v242 = vpop.permute.xlu0 %241
        %v243 = vrot.slane %v236, 4
        %v244 = vrot.slane %v238, 4
        %v245 = vrot.slane %v240, 4
        %v246 = vrot.slane %v242, 4
        %v247 = vsel %vm167, %v243, %v244
        %vm248 = vcmask 1022976
        %v249 = vsel %vm248, %v236, %v247
        %v250 = vsel %vm167, %v244, %v245
        %v251 = vsel %vm248, %v238, %v250
        %v252 = vsel %vm167, %v245, %v246
        %v253 = vsel %vm248, %v240, %v252
        %v258 = vmax.bf16 %v231, %v249
        %v259 = vmax.bf16 %v232, %v251
        %v260 = vmax.bf16 %v233, %v253
        %v261 = vmax.bf16 %v234, %v242
        %262 = vrot.lane.b32.xlu0 %v151, 124
        %v263 = vpop.permute.xlu0 %262
        %264 = vrot.lane.b32.xlu0 %v152, 124
        %v265 = vpop.permute.xlu0 %264
        %266 = vrot.lane.b32.xlu0 %v153, 124
        %v267 = vpop.permute.xlu0 %266
        %268 = vrot.lane.b32.xlu0 %v154, 124
        %v269 = vpop.permute.xlu0 %268
        %v270 = vrot.slane %v263, 4
        %v271 = vrot.slane %v265, 4
        %v272 = vrot.slane %v267, 4
        %v273 = vrot.slane %v269, 4
        %v274 = vsel %vm167, %v270, %v271
        %vm275 = vcmask 1014784
        %v276 = vsel %vm275, %v263, %v274
        %v277 = vsel %vm167, %v271, %v272
        %v278 = vsel %vm275, %v265, %v277
        %v279 = vsel %vm167, %v272, %v273
        %v280 = vsel %vm275, %v267, %v279
        %v285 = vmax.bf16 %v258, %v276
        %v286 = vmax.bf16 %v259, %v278
        %v287 = vmax.bf16 %v260, %v280
        %v288 = vmax.bf16 %v261, %v269
        %292 = vrot.lane.b32.xlu0 %v285, 100
        %v293 = vpop.permute.xlu0 %292
        %294 = vrot.lane.b32.xlu0 %v286, 100
        %v295 = vpop.permute.xlu0 %294
        %296 = vrot.lane.b32.xlu0 %v287, 100
        %v297 = vpop.permute.xlu0 %296
        %v298 = vrot.slane %v293, 4
        %v299 = vrot.slane %v295, 4
        %v300 = vrot.slane %v297, 4
        %v301 = vsel %vm167, %v298, %v299
        %vm302 = vcmask 818176
        %v303 = vsel %vm302, %v293, %v301
        %v304 = vsel %vm167, %v299, %v300
        %v305 = vsel %vm302, %v295, %v304
        %v306 = vsel %vm302, %v297, %v300
        %v310 = vmax.bf16 %v285, %v303
        %v311 = vmax.bf16 %v286, %v305
        %v312 = vmax.bf16 %v287, %v306
        %313 = vrot.lane.b32.xlu0 %v285, 72
        %v314 = vpop.permute.xlu0 %313
        %315 = vrot.lane.b32.xlu0 %v286, 72
        %v316 = vpop.permute.xlu0 %315
        %317 = vrot.lane.b32.xlu0 %v287, 72
        %v318 = vpop.permute.xlu0 %317
        %v319 = vrot.slane %v314, 4
        %v320 = vrot.slane %v316, 4
        %v321 = vrot.slane %v318, 4
        %v322 = vsel %vm167, %v319, %v320
        %vm323 = vcmask 588800
        %v324 = vsel %vm323, %v314, %v322
        %v325 = vsel %vm167, %v320, %v321
        %v326 = vsel %vm323, %v316, %v325
        %v327 = vsel %vm323, %v318, %v321
        %v331 = vmax.bf16 %v310, %v324
        %v332 = vmax.bf16 %v311, %v326
        %v333 = vmax.bf16 %v312, %v327
        %335 = vrot.lane.b32.xlu0 %v285, 44
        %v336 = vpop.permute.xlu0 %335
        %337 = vrot.lane.b32.xlu0 %v286, 44
        %v338 = vpop.permute.xlu0 %337
        %339 = vrot.lane.b32.xlu0 %v287, 44
        %v340 = vpop.permute.xlu0 %339
        %341 = vrot.lane.b32.xlu0 %v288, 44
        %v342 = vpop.permute.xlu0 %341
        %v343 = vrot.slane %v336, 4
        %v344 = vrot.slane %v338, 4
        %v345 = vrot.slane %v340, 4
        %v346 = vrot.slane %v342, 4
        %v347 = vsel %vm167, %v343, %v344
        %vm348 = vcmask 359424
        %v349 = vsel %vm348, %v336, %v347
        %v350 = vsel %vm167, %v344, %v345
        %v351 = vsel %vm348, %v338, %v350
        %v352 = vsel %vm167, %v345, %v346
        %v353 = vsel %vm348, %v340, %v352
        %v357 = vmax.bf16 %v331, %v349
        %v358 = vmax.bf16 %v332, %v351
        %v359 = vmax.bf16 %v333, %v353
        %360 = vrot.lane.b32.xlu0 %v285, 16
        %v361 = vpop.permute.xlu0 %360
        %362 = vrot.lane.b32.xlu0 %v286, 16
        %v363 = vpop.permute.xlu0 %362
        %364 = vrot.lane.b32.xlu0 %v287, 16
        %v365 = vpop.permute.xlu0 %364
        %366 = vrot.lane.b32.xlu0 %v288, 16
        %v367 = vpop.permute.xlu0 %366
        %v368 = vrot.slane %v361, 4
        %v369 = vrot.slane %v363, 4
        %v370 = vrot.slane %v365, 4
        %v371 = vrot.slane %v367, 4
        %v372 = vsel %vm167, %v368, %v369
        %vm373 = vcmask 130048
        %v374 = vsel %vm373, %v361, %v372
        %v375 = vsel %vm167, %v369, %v370
        %v376 = vsel %vm373, %v363, %v375
        %v377 = vsel %vm167, %v370, %v371
        %v378 = vsel %vm373, %v365, %v377
        %v382 = vmax.bf16 %v357, %v374
        %v383 = vmax.bf16 %v358, %v376
        %v384 = vmax.bf16 %v359, %v378
        %388 = vrot.lane.b32.xlu0 %v382, 12
        %v389 = vpop.permute.xlu0 %388
        %390 = vrot.lane.b32.xlu0 %v383, 12
        %v391 = vpop.permute.xlu0 %390
        %392 = vrot.lane.b32.xlu0 %v384, 12
        %v393 = vpop.permute.xlu0 %392
        %v394 = vrot.slane %v389, 4
        %v395 = vrot.slane %v391, 4
        %v396 = vrot.slane %v393, 4
        %v397 = vsel %vm167, %v394, %v395
        %vm398 = vcmask 97280
        %v399 = vsel %vm398, %v389, %v397
        %v400 = vsel %vm167, %v395, %v396
        %v401 = vsel %vm398, %v391, %v400
        %s404 = scalar_lea.vmem %s150, 16 [#allocation5]
        %405 = vst [vmem:[%s404] sm:$0xff] %v399
        %406 = vst.msk [vmem:[%s404 + $0x8] sm:$0xff] %vm178, %v401
        %407 = vrot.lane.b32.xlu0 %v382, 127
        %v408 = vpop.permute.xlu0 %407
        %409 = vrot.lane.b32.xlu0 %v383, 127
        %v410 = vpop.permute.xlu0 %409
        %411 = vrot.lane.b32.xlu0 %v384, 127
        %v412 = vpop.permute.xlu0 %411
        %v413 = vrot.slane %v408, 4
        %v414 = vrot.slane %v410, 4
        %v415 = vrot.slane %v412, 4
        %v416 = vsel %vm167, %v413, %v414
        %v417 = vsel %vm194, %v408, %v416
        %v418 = vsel %vm167, %v414, %v415
        %v419 = vsel %vm194, %v410, %v418
        %v420 = vsel %vm194, %v412, %v415
        %v424 = vmax.bf16 %v382, %v417
        %v425 = vmax.bf16 %v383, %v419
        %v426 = vmax.bf16 %v384, %v420
        %427 = vrot.lane.b32.xlu0 %v382, 126
        %v428 = vpop.permute.xlu0 %427
        %429 = vrot.lane.b32.xlu0 %v383, 126
        %v430 = vpop.permute.xlu0 %429
        %431 = vrot.lane.b32.xlu0 %v384, 126
        %v432 = vpop.permute.xlu0 %431
        %v433 = vrot.slane %v428, 4
        %v434 = vrot.slane %v430, 4
        %v435 = vrot.slane %v432, 4
        %v436 = vsel %vm167, %v433, %v434
        %v437 = vsel %vm221, %v428, %v436
        %v438 = vsel %vm167, %v434, %v435
        %v439 = vsel %vm221, %v430, %v438
        %v440 = vsel %vm221, %v432, %v435
        %v444 = vmax.bf16 %v424, %v437
        %v445 = vmax.bf16 %v425, %v439
        %v446 = vmax.bf16 %v426, %v440
        %447 = vrot.lane.b32.xlu0 %v382, 125
        %v448 = vpop.permute.xlu0 %447
        %449 = vrot.lane.b32.xlu0 %v383, 125
        %v450 = vpop.permute.xlu0 %449
        %451 = vrot.lane.b32.xlu0 %v384, 125
        %v452 = vpop.permute.xlu0 %451
        %v453 = vrot.slane %v448, 4
        %v454 = vrot.slane %v450, 4
        %v455 = vrot.slane %v452, 4
        %v456 = vsel %vm167, %v453, %v454
        %v457 = vsel %vm248, %v448, %v456
        %v458 = vsel %vm167, %v454, %v455
        %v459 = vsel %vm248, %v450, %v458
        %v460 = vsel %vm248, %v452, %v455
        %v464 = vmax.bf16 %v444, %v457
        %v465 = vmax.bf16 %v445, %v459
        %v466 = vmax.bf16 %v446, %v460
        %467 = vrot.lane.b32.xlu0 %v382, 124
        %v468 = vpop.permute.xlu0 %467
        %469 = vrot.lane.b32.xlu0 %v383, 124
        %v470 = vpop.permute.xlu0 %469
        %471 = vrot.lane.b32.xlu0 %v384, 124
        %v472 = vpop.permute.xlu0 %471
        %v473 = vrot.slane %v468, 4
        %v474 = vrot.slane %v470, 4
        %v475 = vrot.slane %v472, 4
        %v476 = vsel %vm167, %v473, %v474
        %v477 = vsel %vm275, %v468, %v476
        %v478 = vsel %vm167, %v474, %v475
        %v479 = vsel %vm275, %v470, %v478
        %v480 = vsel %vm275, %v472, %v475
        %v484 = vmax.bf16 %v464, %v477
        %v485 = vmax.bf16 %v465, %v479
        %v486 = vmax.bf16 %v466, %v480
        %490 = vrot.lane.b32.xlu0 %v484, 100
        %v491 = vpop.permute.xlu0 %490
        %492 = vrot.lane.b32.xlu0 %v485, 100
        %v493 = vpop.permute.xlu0 %492
        %494 = vrot.lane.b32.xlu0 %v486, 100
        %v495 = vpop.permute.xlu0 %494
        %v496 = vrot.slane %v491, 4
        %v497 = vrot.slane %v493, 4
        %v498 = vrot.slane %v495, 4
        %v499 = vsel %vm167, %v496, %v497
        %v500 = vsel %vm302, %v491, %v499
        %v501 = vsel %vm167, %v497, %v498
        %v502 = vsel %vm302, %v493, %v501
        %v506 = vmax.bf16 %v484, %v500
        %v507 = vmax.bf16 %v485, %v502
        %v508 = vmax.bf16 %v486, %v495
        %509 = vrot.lane.b32.xlu0 %v484, 72
        %v510 = vpop.permute.xlu0 %509
        %511 = vrot.lane.b32.xlu0 %v485, 72
        %v512 = vpop.permute.xlu0 %511
        %513 = vrot.lane.b32.xlu0 %v486, 72
        %v514 = vpop.permute.xlu0 %513
        %v515 = vrot.slane %v510, 4
        %v516 = vrot.slane %v512, 4
        %v517 = vrot.slane %v514, 4
        %v518 = vsel %vm167, %v515, %v516
        %v519 = vsel %vm323, %v510, %v518
        %v520 = vsel %vm167, %v516, %v517
        %v521 = vsel %vm323, %v512, %v520
        %v525 = vmax.bf16 %v506, %v519
        %v526 = vmax.bf16 %v507, %v521
        %v527 = vmax.bf16 %v508, %v514
        %528 = vrot.lane.b32.xlu0 %v484, 44
        %v529 = vpop.permute.xlu0 %528
        %530 = vrot.lane.b32.xlu0 %v485, 44
        %v531 = vpop.permute.xlu0 %530
        %532 = vrot.lane.b32.xlu0 %v486, 44
        %v533 = vpop.permute.xlu0 %532
        %v534 = vrot.slane %v529, 4
        %v535 = vrot.slane %v531, 4
        %v536 = vrot.slane %v533, 4
        %v537 = vsel %vm167, %v534, %v535
        %v538 = vsel %vm348, %v529, %v537
        %v539 = vsel %vm167, %v535, %v536
        %v540 = vsel %vm348, %v531, %v539
        %v541 = vsel %vm348, %v533, %v536
        %v545 = vmax.bf16 %v525, %v538
        %v546 = vmax.bf16 %v526, %v540
        %v547 = vmax.bf16 %v527, %v541
        %548 = vrot.lane.b32.xlu0 %v484, 16
        %v549 = vpop.permute.xlu0 %548
        %550 = vrot.lane.b32.xlu0 %v485, 16
        %v551 = vpop.permute.xlu0 %550
        %552 = vrot.lane.b32.xlu0 %v486, 16
        %v553 = vpop.permute.xlu0 %552
        %v554 = vrot.slane %v549, 4
        %v555 = vrot.slane %v551, 4
        %v556 = vrot.slane %v553, 4
        %v557 = vsel %vm167, %v554, %v555
        %v558 = vsel %vm373, %v549, %v557
        %v559 = vsel %vm167, %v555, %v556
        %v560 = vsel %vm373, %v551, %v559
        %v561 = vsel %vm373, %v553, %v556
        %v565 = vmax.bf16 %v545, %v558
        %v566 = vmax.bf16 %v546, %v560
        %v567 = vmax.bf16 %v547, %v561
        %570 = vrot.lane.b32.xlu0 %v565, 70
        %v571 = vpop.permute.xlu0 %570
        %572 = vrot.lane.b32.xlu0 %v566, 70
        %v573 = vpop.permute.xlu0 %572
        %v574 = vrot.slane %v571, 4
        %v575 = vrot.slane %v573, 4
        %v576 = vsel %vm167, %v574, %v575
        %vm577 = vcmask 572416
        %v578 = vsel %vm577, %v571, %v576
        %v579 = vsel %vm577, %v573, %v575
        %s582 = scalar_lea.vmem %s150, 32 [#allocation5]
        %583 = vst [vmem:[%s582] sm:$0xff] %v578
        %584 = vst.msk [vmem:[%s582 + $0x8] sm:$0xff] %vm178, %v579
        %586 = vrot.lane.b32.xlu0 %v565, 127
        %v587 = vpop.permute.xlu0 %586
        %588 = vrot.lane.b32.xlu0 %v566, 127
        %v589 = vpop.permute.xlu0 %588
        %590 = vrot.lane.b32.xlu0 %v567, 127
        %v591 = vpop.permute.xlu0 %590
        %v592 = vrot.slane %v587, 4
        %v593 = vrot.slane %v589, 4
        %v594 = vrot.slane %v591, 4
        %v595 = vsel %vm167, %v592, %v593
        %v596 = vsel %vm194, %v587, %v595
        %v597 = vsel %vm167, %v593, %v594
        %v598 = vsel %vm194, %v589, %v597
        %v602 = vmax.bf16 %v565, %v596
        %v603 = vmax.bf16 %v566, %v598
        %v604 = vmax.bf16 %v567, %v591
        %605 = vrot.lane.b32.xlu0 %v565, 126
        %v606 = vpop.permute.xlu0 %605
        %607 = vrot.lane.b32.xlu0 %v566, 126
        %v608 = vpop.permute.xlu0 %607
        %609 = vrot.lane.b32.xlu0 %v567, 126
        %v610 = vpop.permute.xlu0 %609
        %v611 = vrot.slane %v606, 4
        %v612 = vrot.slane %v608, 4
        %v613 = vrot.slane %v610, 4
        %v614 = vsel %vm167, %v611, %v612
        %v615 = vsel %vm221, %v606, %v614
        %v616 = vsel %vm167, %v612, %v613
        %v617 = vsel %vm221, %v608, %v616
        %v621 = vmax.bf16 %v602, %v615
        %v622 = vmax.bf16 %v603, %v617
        %v623 = vmax.bf16 %v604, %v610
        %624 = vrot.lane.b32.xlu0 %v565, 125
        %v625 = vpop.permute.xlu0 %624
        %626 = vrot.lane.b32.xlu0 %v566, 125
        %v627 = vpop.permute.xlu0 %626
        %628 = vrot.lane.b32.xlu0 %v567, 125
        %v629 = vpop.permute.xlu0 %628
        %v630 = vrot.slane %v625, 4
        %v631 = vrot.slane %v627, 4
        %v632 = vrot.slane %v629, 4
        %v633 = vsel %vm167, %v630, %v631
        %v634 = vsel %vm248, %v625, %v633
        %v635 = vsel %vm167, %v631, %v632
        %v636 = vsel %vm248, %v627, %v635
        %v640 = vmax.bf16 %v621, %v634
        %v641 = vmax.bf16 %v622, %v636
        %v642 = vmax.bf16 %v623, %v629
        %643 = vrot.lane.b32.xlu0 %v565, 124
        %v644 = vpop.permute.xlu0 %643
        %645 = vrot.lane.b32.xlu0 %v566, 124
        %v646 = vpop.permute.xlu0 %645
        %647 = vrot.lane.b32.xlu0 %v567, 124
        %v648 = vpop.permute.xlu0 %647
        %v649 = vrot.slane %v644, 4
        %v650 = vrot.slane %v646, 4
        %v651 = vrot.slane %v648, 4
        %v652 = vsel %vm167, %v649, %v650
        %v653 = vsel %vm275, %v644, %v652
        %v654 = vsel %vm167, %v650, %v651
        %v655 = vsel %vm275, %v646, %v654
        %v659 = vmax.bf16 %v640, %v653
        %v660 = vmax.bf16 %v641, %v655
        %v661 = vmax.bf16 %v642, %v648
        %664 = vrot.lane.b32.xlu0 %v659, 100
        %v665 = vpop.permute.xlu0 %664
        %666 = vrot.lane.b32.xlu0 %v660, 100
        %v667 = vpop.permute.xlu0 %666
        %v668 = vrot.slane %v665, 4
        %v669 = vrot.slane %v667, 4
        %v670 = vsel %vm167, %v668, %v669
        %v671 = vsel %vm302, %v665, %v670
        %v672 = vsel %vm302, %v667, %v669
        %v675 = vmax.bf16 %v659, %v671
        %v676 = vmax.bf16 %v660, %v672
        %678 = vrot.lane.b32.xlu0 %v659, 72
        %v679 = vpop.permute.xlu0 %678
        %680 = vrot.lane.b32.xlu0 %v660, 72
        %v681 = vpop.permute.xlu0 %680
        %682 = vrot.lane.b32.xlu0 %v661, 72
        %v683 = vpop.permute.xlu0 %682
        %v684 = vrot.slane %v679, 4
        %v685 = vrot.slane %v681, 4
        %v686 = vrot.slane %v683, 4
        %v687 = vsel %vm167, %v684, %v685
        %v688 = vsel %vm323, %v679, %v687
        %v689 = vsel %vm167, %v685, %v686
        %v690 = vsel %vm323, %v681, %v689
        %v693 = vmax.bf16 %v675, %v688
        %v694 = vmax.bf16 %v676, %v690
        %695 = vrot.lane.b32.xlu0 %v659, 44
        %v696 = vpop.permute.xlu0 %695
        %697 = vrot.lane.b32.xlu0 %v660, 44
        %v698 = vpop.permute.xlu0 %697
        %699 = vrot.lane.b32.xlu0 %v661, 44
        %v700 = vpop.permute.xlu0 %699
        %v701 = vrot.slane %v696, 4
        %v702 = vrot.slane %v698, 4
        %v703 = vrot.slane %v700, 4
        %v704 = vsel %vm167, %v701, %v702
        %v705 = vsel %vm348, %v696, %v704
        %v706 = vsel %vm167, %v702, %v703
        %v707 = vsel %vm348, %v698, %v706
        %v710 = vmax.bf16 %v693, %v705
        %v711 = vmax.bf16 %v694, %v707
        %712 = vrot.lane.b32.xlu0 %v659, 16
        %v713 = vpop.permute.xlu0 %712
        %714 = vrot.lane.b32.xlu0 %v660, 16
        %v715 = vpop.permute.xlu0 %714
        %716 = vrot.lane.b32.xlu0 %v661, 16
        %v717 = vpop.permute.xlu0 %716
        %v718 = vrot.slane %v713, 4
        %v719 = vrot.slane %v715, 4
        %v720 = vrot.slane %v717, 4
        %v721 = vsel %vm167, %v718, %v719
        %v722 = vsel %vm373, %v713, %v721
        %v723 = vsel %vm167, %v719, %v720
        %v724 = vsel %vm373, %v715, %v723
        %v727 = vmax.bf16 %v710, %v722
        %v728 = vmax.bf16 %v711, %v724
        %s729 = scalar_lea.vmem %s150, 48 [#allocation5]
        %730 = vst [vmem:[%s729] sm:$0xff] %v727
        %731 = vst.msk [vmem:[%s729 + $0x8] sm:$0xff] %vm178, %v728
        %s732 = sand.u32 %s68, 1
        %s733 = scalar_lea.sflag [#allocation4], %s732
        %s734 = sand.u32 %s68, 1
        %s735 = smul.addr %s734, 64
        %s736 = scalar_lea.vmem [#allocation5], %s735
        // Predicated region
        $region29: #{sppcspc_forward.11} parent=23 // pred_check
          %p737 = pneg %p78
        $region30: #{sppcspc_forward.11} parent=23 // pred_check_branch
          %739 = sbr.rel (%p737) target = $region32
        $region31: #{sppcspc_forward.11} parent=23 // pred_region
          %s741 = ssub.s32 1024, 1024
          %742 = vsyncadd %s733, %s741
          %s743 = smul.addr %s23, 4
          %s744 = smul.addr %s22, 16
          %s745 = sadd.s32 %s743, %s744
          %s746 = smul.addr %s745, 64
          %s747 = scalar_lea.hbm %s1, %s746
          %s748 = sshll.u32 %s736, 4
          %s749 = int_to_ptr.vmem [resolvable:$true] %s748
          %754 = dma.vmem_to_hbm [thread:$0]  %s749, 1024, %s747, %s733, 256, 256, 16
        $region32: #{sppcspc_forward.11} parent=23 // pred_fallthru
          _
      $region24: #{sppcspc_forward.11} parent=5 // pred_fallthru
        _
      %p755 = scmp.le.s32.totalorder 2, %s13
      // Predicated region
      $region33: #{sppcspc_forward.11} parent=5 // pred_check
        %p756 = pneg %p755
      $region34: #{sppcspc_forward.11} parent=5 // pred_check_branch
        %758 = sbr.rel (%p756) target = $region36
      $region35: #{sppcspc_forward.11} parent=5 // pred_region
        %s759 = ssub.s32 %s13, 2
        // Predicated region
        $region37: #{sppcspc_forward.11} parent=35 // pred_check
          %p760 = pneg %p84
        $region38: #{sppcspc_forward.11} parent=35 // pred_check_branch
          %762 = sbr.rel (%p760) target = $region40
        $region39: #{sppcspc_forward.11} parent=35 // pred_region
          %s763 = sand.u32 %s69, 1
          %s764 = scalar_lea.sflag [#allocation4], %s763
          %s765 = sand.u32 %s69, 1
          %s766 = smul.addr %s765, 64
          %s767 = scalar_lea.vmem [#allocation5], %s766
          %768 = dma.done %s764, 1024
        $region40: #{sppcspc_forward.11} parent=35 // pred_fallthru
          _
      $region36: #{sppcspc_forward.11} parent=5 // pred_fallthru
        _
    $region6: #{sppcspc_forward.11} parent=1 // loop_footer
      %s17 = sadd.s32 1, %s13
    $region7: #{sppcspc_forward.11} parent=1 // loop_footer_branch
      %12 = sbr.rel target = $region3
    $region8: #{sppcspc_forward.11} parent=1 // loop_exit
      _
    %769 = vsyncpa [#allocation3], 1
    %s770 = scalar_lea.sflag [#allocation3], 1
    %771 = vsyncpa %s770, 1
    %772 = vsyncpa [#allocation4], 1
    %s773 = scalar_lea.sflag [#allocation4], 1
    %774 = vsyncpa %s773, 1

// kernel: sppcspc_forward.12
$region0: #{sppcspc_forward.12}
  #allocation0 [shape = 'u32[]', space=smem, size = 0x4, offset = 0x4, fixed_abs, tag = 'smem constant byte address 0x4 - core index']
  #allocation1 [shape = 'u32[144,128]{1,0:T(1,128)}', space=vmem, size = 0x12000, scoped, tag = 'internal scratch']
  %s0 = inlined_call_operand.hbm [shape: bf16[2,32,256], index: 0, kind: input, shape index: {}]
  %s1 = inlined_call_operand.hbm [shape: bf16[8,32], index: 1, kind: input, shape index: {}]
  %s2 = inlined_call_operand.hbm [shape: f32[8,1], index: 2, kind: input, shape index: {}]
  %s3 = inlined_call_operand.hbm [shape: bf16[2,8,256], index: 3, kind: output, shape index: {}]
  %s4 = sld [smem:[#allocation0]]
  $region57: #{sppcspc_forward.12} parent=0
    _
  %s6 = ssub.s32 1, %s4
  %s7 = scalar_select 0, %s6, %s4
  $region1: #{sppcspc_forward.12} parent=0
    #allocation2 [shape = 'u8[32768]{0}', space=vmem, size = 0x8000, scoped, tag = 'input window, operand 0']
    #allocation3 [shape = 's32[2]{0}', space=sflag, size = 0x8, scoped, tag = 'scoped memory for sppcspc_forward.12']
    #allocation4 [shape = 's32[2]{0}', space=sflag, size = 0x8, scoped, tag = 'scoped memory for sppcspc_forward.12']
    #allocation5 [shape = 'u8[2048]{0}', space=vmem, size = 0x800, scoped, tag = 'input window, operand 1, single buffered']
    #allocation6 [shape = 's32[1]{0}', space=sflag, size = 0x4, scoped, tag = 'scoped memory for sppcspc_forward.12']
    #allocation7 [shape = 'u8[4096]{0}', space=vmem, size = 0x1000, scoped, tag = 'input window, operand 2, single buffered']
    #allocation8 [shape = 'u8[8192]{0}', space=vmem, size = 0x2000, scoped, tag = 'output window, operand 0']
    %8 = vsyncpa [#allocation3], 0
    %s9 = scalar_lea.sflag [#allocation3], 1
    %10 = vsyncpa %s9, 0
    %11 = vsyncpa [#allocation6], 0
    %12 = vsyncpa [#allocation4], 0
    %s13 = scalar_lea.sflag [#allocation4], 1
    %14 = vsyncpa %s13, 0
    loop: start=0, step=1, limit=4
    $region2: #{sppcspc_forward.12} parent=1 // loop_pre_header
      _
    $region3: #{sppcspc_forward.12} parent=1 // loop_header
      %s16 = sphi 0, %s20
      %p17 = scmp.ge.s32.totalorder %s16, 4
      %s23 = sphi 0, %s35
      %s24 = sphi 0, %s31
      %s25 = sphi 0, %s23
      %s26 = sphi 0, %s24
      %s27 = sphi 0, %s25
      %s28 = sphi 0, %s26
      %s40 = sphi 0, %s42
      %s43 = sphi 0, %s40
      %s44 = sphi 0, %s43
      %s60 = sphi 0, %s44
      %s64 = sphi 0, %s64
      %s66 = sphi 0, %s64
      %s67 = sphi 0, %s66
      %s81 = sphi 0, %s67
      %s85 = sphi 0, %s85
      %s87 = sphi 0, %s85
      %s88 = sphi 0, %s87
      %s102 = sphi 0, %s88
      %s110 = sphi 0, %s112
      %s113 = sphi 0, %s110
      %s114 = sphi 0, %s113
      %s130 = sphi 0, %s114
    $region4: #{sppcspc_forward.12} parent=1 // loop_header_branch
      %19 = sbr.rel (%p17) target = $region8
    $region5: #{sppcspc_forward.12} parent=1 // loop_body
      %s21 = ssub.s32 %s16, 1
      %s22 = ssub.s32 %s16, 2
      %s29 = sadd.s32 1, %s24
      %p30 = scmp.ge.s32.totalorder %s29, 1
      %s31 = scalar_select %p30, 0, %s29
      %s32 = sadd.s32 1, %s23
      %s33 = scalar_select %p30, %s32, %s23
      %p34 = scmp.ge.s32.totalorder %s33, 2
      %s35 = scalar_select %p34, 0, %s33
      %s36 = ssub.s32 %s23, %s35
      %s37 = ssub.s32 %s24, %s31
      %s38 = sor.u32 %s36, %s37
      %p39 = scmp.eq.s32.totalorder %s38, 0
      %s41 = sadd.s32 %s40, 1
      %s42 = scalar_select %p39, %s40, %s41
      %p45 = pneg %p39
      %p46 = scmp.eq.s32.totalorder %s16, 1
      %p47 = por %p45, %p46
      %p48 = scmp.ne.s32.totalorder %s40, %s43
      %p49 = scmp.eq.s32.totalorder %s16, 0
      %p50 = por %p48, %p49
      %p51 = scmp.ne.s32.totalorder %s40, %s43
      %p52 = scmp.eq.s32.totalorder %s21, 1
      %p53 = por %p51, %p52
      %p54 = scmp.ne.s32.totalorder %s43, %s44
      %p55 = scmp.eq.s32.totalorder %s21, 0
      %p56 = por %p54, %p55
      %p57 = scmp.ne.s32.totalorder %s43, %s44
      %p58 = scmp.eq.s32.totalorder %s22, 1
      %p59 = por %p57, %p58
      %p61 = scmp.ne.s32.totalorder %s44, %s60
      %p62 = scmp.eq.s32.totalorder %s22, 0
      %p63 = por %p61, %p62
      %s65 = sadd.s32 %s64, 1
      %p68 = scmp.eq.s32.totalorder %s16, 1
      %p69 = scmp.ne.s32.totalorder %s64, %s66
      %p70 = scmp.eq.s32.totalorder %s16, 0
      %p71 = por %p69, %p70
      %p72 = scmp.ne.s32.totalorder %s64, %s66
      %p73 = scmp.eq.s32.totalorder %s21, 1
      %p74 = por %p72, %p73
      %p75 = scmp.ne.s32.totalorder %s66, %s67
      %p76 = scmp.eq.s32.totalorder %s21, 0
      %p77 = por %p75, %p76
      %p78 = scmp.ne.s32.totalorder %s66, %s67
      %p79 = scmp.eq.s32.totalorder %s22, 1
      %p80 = por %p78, %p79
      %p82 = scmp.ne.s32.totalorder %s67, %s81
      %p83 = scmp.eq.s32.totalorder %s22, 0
      %p84 = por %p82, %p83
      %s86 = sadd.s32 %s85, 1
      %p89 = scmp.eq.s32.totalorder %s16, 1
      %p90 = scmp.ne.s32.totalorder %s85, %s87
      %p91 = scmp.eq.s32.totalorder %s16, 0
      %p92 = por %p90, %p91
      %p93 = scmp.ne.s32.totalorder %s85, %s87
      %p94 = scmp.eq.s32.totalorder %s21, 1
      %p95 = por %p93, %p94
      %p96 = scmp.ne.s32.totalorder %s87, %s88
      %p97 = scmp.eq.s32.totalorder %s21, 0
      %p98 = por %p96, %p97
      %p99 = scmp.ne.s32.totalorder %s87, %s88
      %p100 = scmp.eq.s32.totalorder %s22, 1
      %p101 = por %p99, %p100
      %p103 = scmp.ne.s32.totalorder %s88, %s102
      %p104 = scmp.eq.s32.totalorder %s22, 0
      %p105 = por %p103, %p104
      %s106 = ssub.s32 %s23, %s35
      %s107 = ssub.s32 %s24, %s31
      %s108 = sor.u32 %s106, %s107
      %p109 = scmp.eq.s32.totalorder %s108, 0
      %s111 = sadd.s32 %s110, 1
      %s112 = scalar_select %p109, %s110, %s111
      %p115 = pneg %p109
      %p116 = scmp.eq.s32.totalorder %s16, 1
      %p117 = por %p115, %p116
      %p118 = scmp.ne.s32.totalorder %s110, %s113
      %p119 = scmp.eq.s32.totalorder %s16, 0
      %p120 = por %p118, %p119
      %p121 = scmp.ne.s32.totalorder %s110, %s113
      %p122 = scmp.eq.s32.totalorder %s21, 1
      %p123 = por %p121, %p122
      %p124 = scmp.ne.s32.totalorder %s113, %s114
      %p125 = scmp.eq.s32.totalorder %s21, 0
      %p126 = por %p124, %p125
      %p127 = scmp.ne.s32.totalorder %s113, %s114
      %p128 = scmp.eq.s32.totalorder %s22, 1
      %p129 = por %p127, %p128
      %p131 = scmp.ne.s32.totalorder %s114, %s130
      %p132 = scmp.eq.s32.totalorder %s22, 0
      %p133 = por %p131, %p132
      %p134 = scmp.le.s32.totalorder 1, %s16
      %p135 = scmp.lt.s32.totalorder %s16, 3
      %p136 = pnand %p134, %p135
      %p137 = pneg %p136
      // Predicated region
      $region9: #{sppcspc_forward.12} parent=5 // pred_check
        _
      $region10: #{sppcspc_forward.12} parent=5 // pred_check_branch
        %139 = sbr.rel (%p136) target = $region12
      $region11: #{sppcspc_forward.12} parent=5 // pred_region
        %s140 = ssub.s32 %s16, 1
        // Predicated region
        $region13: #{sppcspc_forward.12} parent=11 // pred_check
          %p141 = pneg %p77
        $region14: #{sppcspc_forward.12} parent=11 // pred_check_branch
          %143 = sbr.rel (%p141) target = $region16
        $region15: #{sppcspc_forward.12} parent=11 // pred_region
          %s145 = ssub.s32 64, 64
          %146 = vsyncadd [#allocation6], %s145
          %s148 = sshll.u32 [#allocation5], 4
          %s149 = int_to_ptr.vmem [resolvable:$true] %s148
          %151 = dma.hbm_to_vmem [thread:$0]  %s1, 64, %s149, [#allocation6]
        $region16: #{sppcspc_forward.12} parent=11 // pred_fallthru
          _
        // Predicated region
        $region17: #{sppcspc_forward.12} parent=11 // pred_check
          %p152 = pneg %p98
        $region18: #{sppcspc_forward.12} parent=11 // pred_check_branch
          %154 = sbr.rel (%p152) target = $region20
        $region19: #{sppcspc_forward.12} parent=11 // pred_region
          %s156 = ssub.s32 128, 128
          %157 = vsyncadd [#allocation6], %s156
          %s159 = sshll.u32 [#allocation7], 4
          %s160 = int_to_ptr.vmem [resolvable:$true] %s159
          %162 = dma.hbm_to_vmem [thread:$0]  %s2, 128, %s160, [#allocation6]
        $region20: #{sppcspc_forward.12} parent=11 // pred_fallthru
          _
      $region12: #{sppcspc_forward.12} parent=5 // pred_fallthru
        _
      %p163 = scmp.lt.s32.totalorder %s16, 2
      // Predicated region
      $region21: #{sppcspc_forward.12} parent=5 // pred_check
        %p164 = pneg %p163
      $region22: #{sppcspc_forward.12} parent=5 // pred_check_branch
        %166 = sbr.rel (%p164) target = $region24
      $region23: #{sppcspc_forward.12} parent=5 // pred_region
        // Predicated region
        $region25: #{sppcspc_forward.12} parent=23 // pred_check
          %p167 = pneg %p50
        $region26: #{sppcspc_forward.12} parent=23 // pred_check_branch
          %169 = sbr.rel (%p167) target = $region28
        $region27: #{sppcspc_forward.12} parent=23 // pred_region
          %s170 = sand.u32 %s40, 1
          %s171 = scalar_lea.sflag [#allocation3], %s170
          %s172 = sand.u32 %s40, 1
          %s173 = smul.addr %s172, 32
          %s174 = scalar_lea.vmem [#allocation2], %s173
          %s175 = smul.u32 2, %s24
          %s177 = ssub.s32 512, 512
          %178 = vsyncadd %s171, %s177
          %s179 = smul.addr %s23, 8
          %s180 = sadd.s32 %s175, %s179
          %s181 = smul.addr %s180, 64
          %s182 = scalar_lea.hbm %s0, %s181
          %s183 = sshll.u32 %s174, 4
          %s184 = int_to_ptr.vmem [resolvable:$true] %s183
          %189 = dma.hbm_to_vmem [thread:$0]  %s182, 512, %s184, %s171, 128, 128, 8
        $region28: #{sppcspc_forward.12} parent=23 // pred_fallthru
          _
      $region24: #{sppcspc_forward.12} parent=5 // pred_fallthru
        _
      %p190 = scmp.le.s32.totalorder 1, %s16
      %p191 = scmp.lt.s32.totalorder %s16, 3
      %p192 = pnand %p190, %p191
      %p193 = pneg %p192
      // Predicated region
      $region29: #{sppcspc_forward.12} parent=5 // pred_check
        _
      $region30: #{sppcspc_forward.12} parent=5 // pred_check_branch
        %195 = sbr.rel (%p192) target = $region32
      $region31: #{sppcspc_forward.12} parent=5 // pred_region
        %s196 = ssub.s32 %s16, 1
        %s197 = sand.u32 %s43, 1
        %s198 = scalar_lea.sflag [#allocation3], %s197
        %s199 = sand.u32 %s43, 1
        %s200 = smul.addr %s199, 32
        %s201 = scalar_lea.vmem [#allocation2], %s200
        // Predicated region
        $region33: #{sppcspc_forward.12} parent=31 // pred_check
          %p202 = pneg %p56
        $region34: #{sppcspc_forward.12} parent=31 // pred_check_branch
          %204 = sbr.rel (%p202) target = $region36
        $region35: #{sppcspc_forward.12} parent=31 // pred_region
          %205 = dma.done %s198, 512
        $region36: #{sppcspc_forward.12} parent=31 // pred_fallthru
          _
        // Predicated region
        $region37: #{sppcspc_forward.12} parent=31 // pred_check
          %p206 = pneg %p77
        $region38: #{sppcspc_forward.12} parent=31 // pred_check_branch
          %208 = sbr.rel (%p206) target = $region40
        $region39: #{sppcspc_forward.12} parent=31 // pred_region
          %209 = dma.done [#allocation6], 64
        $region40: #{sppcspc_forward.12} parent=31 // pred_fallthru
          _
        // Predicated region
        $region41: #{sppcspc_forward.12} parent=31 // pred_check
          %p210 = pneg %p98
        $region42: #{sppcspc_forward.12} parent=31 // pred_check_branch
          %212 = sbr.rel (%p210) target = $region44
        $region43: #{sppcspc_forward.12} parent=31 // pred_region
          %213 = dma.done [#allocation6], 128
        $region44: #{sppcspc_forward.12} parent=31 // pred_fallthru
          _
        %s214 = sand.u32 %s43, 1
        %s215 = scalar_lea.sflag [#allocation3], %s214
        %s216 = sand.u32 %s43, 1
        %s217 = smul.addr %s216, 32
        %s218 = scalar_lea.vmem [#allocation2], %s217
        %p219 = pneg %p56
        %p220 = pneg %p53
        %p221 = pneg %p77
        %p222 = pneg %p74
        %p223 = pneg %p98
        %p224 = pneg %p95
        %p225 = pneg %p126
        %p226 = pneg %p123
        %s227 = sand.u32 %s113, 1
        %s228 = scalar_lea.sflag [#allocation4], %s227
        %s229 = sand.u32 %s113, 1
        %s230 = smul.addr %s229, 8
        %s231 = scalar_lea.vmem [#allocation8], %s230
        %s232 = smul.u32 2, %s26
        %s233 = smul.u32 2, %s26
        %v235 = vld [vmem:[#allocation5] sm:$0xf]
        %v236 = vld [vmem:[%s201] sm:$0xff]
        %v237 = vld [vmem:[%s201 + $0x8] sm:$0xff]
        %v238 = vld [vmem:[%s201 + $0x10] sm:$0xff]
        %v239 = vld [vmem:[%s201 + $0x18] sm:$0xff]
        %v240 = vld [vmem:[#allocation7] sm:$0xff]
        %242 = vset.pattern.permute.xlu0 0
        %243 = vperm.xlu0 %242, %v240
        %v244 = vpop.permute.xlu0 %243
        %v250 = vunpack.c.l.b16 %v236
        %v251 = vunpack.c.h.b16 %v236
        %v252 = vunpack.c.l.b16 %v237
        %v253 = vunpack.c.h.b16 %v237
        %v254 = vunpack.c.l.b16 %v238
        %v255 = vunpack.c.h.b16 %v238
        %v256 = vunpack.c.l.b16 %v239
        %v257 = vunpack.c.h.b16 %v239
        %v258 = vpack.c.b16 %v252, %v250
        %v259 = vpack.c.b16 %v253, %v251
        %v260 = vpack.c.b16 %v256, %v254
        %v261 = vpack.c.b16 %v257, %v255
        %vm266 = vcmask 261120
        %v268 = vsel %vm266, %v235, 0
        %270 = vmatprep.subr.bf16.mxu0 %v259
        %271 = vmatpush1.bf16.msra.mxu0 %v258
        %272 = vmatprep.subr.bf16.mxu0 %v261
        %273 = vmatpush1.bf16.msra.mxu0 %v260
        %274 = vmatprep.subr.bf16.mxu0 0
        %275 = vmatpush1.bf16.msra.mxu0 0
        %276 = vmatprep.subr.bf16.mxu0 0
        %277 = vmatpush1.bf16.msra.mxu0 0
        %278 = vmatprep.subr.bf16.mxu0 0
        %279 = vmatpush1.bf16.msra.mxu0 0
        %280 = vmatprep.subr.bf16.mxu0 0
        %281 = vmatpush1.bf16.msra.mxu0 0
        %282 = vmatprep.subr.bf16.mxu0 0
        %283 = vmatpush1.bf16.msra.mxu0 0
        %284 = vmatprep.subr.bf16.mxu0 0
        %285 = vmatpush1.bf16.msra.mxu0 0
        %286 = vmatprep.subr.bf16.mxu0 0
        %287 = vmatpush1.bf16.msra.mxu0 0
        %288 = vmatprep.subr.bf16.mxu0 0
        %289 = vmatpush1.bf16.msra.mxu0 0
        %290 = vmatprep.subr.bf16.mxu0 0
        %291 = vmatpush1.bf16.msra.mxu0 0
        %292 = vmatprep.subr.bf16.mxu0 0
        %293 = vmatpush1.bf16.msra.mxu0 0
        %294 = vmatprep.subr.bf16.mxu0 0
        %295 = vmatpush1.bf16.msra.mxu0 0
        %296 = vmatprep.subr.bf16.mxu0 0
        %297 = vmatpush1.bf16.msra.mxu0 0
        %298 = vmatprep.subr.bf16.mxu0 0
        %299 = vmatpush1.bf16.msra.mxu0 0
        %300 = vmatprep.subr.bf16.mxu0 0
        %301 = vmatpush1.bf16.msra.mxu0 0
        %302 = vmatprep.mubr.bf16.mxu0 0
        %303 = vmatmul.mubr.bf16.gmra.mrb[0].mxu0 %v268
        %v304 = vpop.f32.mrb[0].mxu0
        %v305 = vadd.f32 %v244, %v304
        %v306 = vpop.f32.mrb[0].mxu0
        %v307 = vadd.f32 %v244, %v306
        %v308 = vpop.f32.mrb[0].mxu0
        %v309 = vpop.f32.mrb[0].mxu0
        %310 = vdwg.mxu0
        %v311 = vmax.f32 %v305, 0.0
        %v312 = vmax.f32 %v307, 0.0
        %v313 = vpack.c.bf16 %v311, %v311
        %v314 = vpack.c.bf16 %v312, %v312
        %v317 = vunpack.c.l.b16 %v313
        %v318 = vunpack.c.l.b16 %v314
        %v319 = vpack.c.b16 %v318, %v317
        %321 = vst [vmem:[%s231] sm:$0xff] %v319
        %s322 = sand.u32 %s113, 1
        %s323 = scalar_lea.sflag [#allocation4], %s322
        %s324 = sand.u32 %s113, 1
        %s325 = smul.addr %s324, 8
        %s326 = scalar_lea.vmem [#allocation8], %s325
        // Predicated region
        $region45: #{sppcspc_forward.12} parent=31 // pred_check
          %p327 = pneg %p123
        $region46: #{sppcspc_forward.12} parent=31 // pred_check_branch
          %329 = sbr.rel (%p327) target = $region48
        $region47: #{sppcspc_forward.12} parent=31 // pred_region
          %s330 = smul.u32 2, %s26
          %s332 = ssub.s32 128, 128
          %333 = vsyncadd %s323, %s332
          %s334 = smul.addr %s25, 2
          %s335 = sadd.s32 %s330, %s334
          %s336 = smul.addr %s335, 64
          %s337 = scalar_lea.hbm %s3, %s336
          %s339 = sshll.u32 %s326, 4
          %s340 = int_to_ptr.vmem [resolvable:$true] %s339
          %342 = dma.vmem_to_hbm [thread:$0]  %s340, 128, %s337, %s323
        $region48: #{sppcspc_forward.12} parent=31 // pred_fallthru
          _
      $region32: #{sppcspc_forward.12} parent=5 // pred_fallthru
        _
      %p343 = scmp.le.s32.totalorder 2, %s16
      // Predicated region
      $region49: #{sppcspc_forward.12} parent=5 // pred_check
        %p344 = pneg %p343
      $region50: #{sppcspc_forward.12} parent=5 // pred_check_branch
        %346 = sbr.rel (%p344) target = $region52
      $region51: #{sppcspc_forward.12} parent=5 // pred_region
        %s347 = ssub.s32 %s16, 2
        // Predicated region
        $region53: #{sppcspc_forward.12} parent=51 // pred_check
          %p348 = pneg %p129
        $region54: #{sppcspc_forward.12} parent=51 // pred_check_branch
          %350 = sbr.rel (%p348) target = $region56
        $region55: #{sppcspc_forward.12} parent=51 // pred_region
          %s351 = sand.u32 %s114, 1
          %s352 = scalar_lea.sflag [#allocation4], %s351
          %s353 = sand.u32 %s114, 1
          %s354 = smul.addr %s353, 8
          %s355 = scalar_lea.vmem [#allocation8], %s354
          %356 = dma.done %s352, 128
        $region56: #{sppcspc_forward.12} parent=51 // pred_fallthru
          _
      $region52: #{sppcspc_forward.12} parent=5 // pred_fallthru
        _
    $region6: #{sppcspc_forward.12} parent=1 // loop_footer
      %s20 = sadd.s32 1, %s16
    $region7: #{sppcspc_forward.12} parent=1 // loop_footer_branch
      %15 = sbr.rel target = $region3
    $region8: #{sppcspc_forward.12} parent=1 // loop_exit
      _
    %357 = vsyncpa [#allocation3], 1
    %s358 = scalar_lea.sflag [#allocation3], 1
    %359 = vsyncpa %s358, 1
    %360 = vsyncpa [#allocation6], 1
    %361 = vsyncpa [#allocation4], 1
    %s362 = scalar_lea.sflag [#allocation4], 1
    %363 = vsyncpa %s362, 1

// kernel: sppcspc_forward.15
$region0: #{sppcspc_forward.15}
  #allocation0 [shape = 'u32[]', space=smem, size = 0x4, offset = 0x4, fixed_abs, tag = 'smem constant byte address 0x4 - core index']
  #allocation1 [shape = 'u32[144,128]{1,0:T(1,128)}', space=vmem, size = 0x12000, scoped, tag = 'internal scratch']
  %s0 = inlined_call_operand.hbm [shape: bf16[2,8,256], index: 0, kind: input, shape index: {}]
  %s1 = inlined_call_operand.hbm [shape: bf16[2,8,256], index: 1, kind: input, shape index: {}]
  %s2 = inlined_call_operand.hbm [shape: bf16[8,8], index: 2, kind: input, shape index: {}]
  %s3 = inlined_call_operand.hbm [shape: bf16[8,8], index: 3, kind: input, shape index: {}]
  %s4 = inlined_call_operand.hbm [shape: f32[8,1], index: 4, kind: input, shape index: {}]
  %s5 = inlined_call_operand.hbm [shape: bf16[2,8,256], index: 5, kind: output, shape index: {}]
  %s6 = sld [smem:[#allocation0]]
  $region73: #{sppcspc_forward.15} parent=0
    _
  %s8 = ssub.s32 1, %s6
  %s9 = scalar_select 0, %s8, %s6
  $region1: #{sppcspc_forward.15} parent=0
    #allocation2 [shape = 'u8[8192]{0}', space=vmem, size = 0x2000, scoped, tag = 'input window, operand 0']
    #allocation3 [shape = 's32[2]{0}', space=sflag, size = 0x8, scoped, tag = 'scoped memory for sppcspc_forward.15']
    #allocation4 [shape = 's32[2]{0}', space=sflag, size = 0x8, scoped, tag = 'scoped memory for sppcspc_forward.15']
    #allocation5 [shape = 'u8[8192]{0}', space=vmem, size = 0x2000, scoped, tag = 'input window, operand 1']
    #allocation6 [shape = 's32[2]{0}', space=sflag, size = 0x8, scoped, tag = 'scoped memory for sppcspc_forward.15']
    #allocation7 [shape = 'u8[2048]{0}', space=vmem, size = 0x800, scoped, tag = 'input window, operand 2, single buffered']
    #allocation8 [shape = 'u8[2048]{0}', space=vmem, size = 0x800, scoped, tag = 'input window, operand 3, single buffered']
    #allocation9 [shape = 's32[1]{0}', space=sflag, size = 0x4, scoped, tag = 'scoped memory for sppcspc_forward.15']
    #allocation10 [shape = 'u8[4096]{0}', space=vmem, size = 0x1000, scoped, tag = 'input window, operand 4, single buffered']
    #allocation11 [shape = 'u8[8192]{0}', space=vmem, size = 0x2000, scoped, tag = 'output window, operand 0']
    %10 = vsyncpa [#allocation3], 0
    %s11 = scalar_lea.sflag [#allocation3], 1
    %12 = vsyncpa %s11, 0
    %13 = vsyncpa [#allocation6], 0
    %s14 = scalar_lea.sflag [#allocation6], 1
    %15 = vsyncpa %s14, 0
    %16 = vsyncpa [#allocation9], 0
    %17 = vsyncpa [#allocation4], 0
    %s18 = scalar_lea.sflag [#allocation4], 1
    %19 = vsyncpa %s18, 0
    loop: start=0, step=1, limit=4
    $region2: #{sppcspc_forward.15} parent=1 // loop_pre_header
      _
    $region3: #{sppcspc_forward.15} parent=1 // loop_header
      %s21 = sphi 0, %s25
      %p22 = scmp.ge.s32.totalorder %s21, 4
      %s28 = sphi 0, %s40
      %s29 = sphi 0, %s36
      %s30 = sphi 0, %s28
      %s31 = sphi 0, %s29
      %s32 = sphi 0, %s30
      %s33 = sphi 0, %s31
      %s45 = sphi 0, %s47
      %s48 = sphi 0, %s45
      %s49 = sphi 0, %s48
      %s65 = sphi 0, %s49
      %s73 = sphi 0, %s75
      %s76 = sphi 0, %s73
      %s77 = sphi 0, %s76
      %s93 = sphi 0, %s77
      %s97 = sphi 0, %s97
      %s99 = sphi 0, %s97
      %s100 = sphi 0, %s99
      %s114 = sphi 0, %s100
      %s118 = sphi 0, %s118
      %s120 = sphi 0, %s118
      %s121 = sphi 0, %s120
      %s135 = sphi 0, %s121
      %s139 = sphi 0, %s139
      %s141 = sphi 0, %s139
      %s142 = sphi 0, %s141
      %s156 = sphi 0, %s142
      %s164 = sphi 0, %s166
      %s167 = sphi 0, %s164
      %s168 = sphi 0, %s167
      %s184 = sphi 0, %s168
    $region4: #{sppcspc_forward.15} parent=1 // loop_header_branch
      %24 = sbr.rel (%p22) target = $region8
    $region5: #{sppcspc_forward.15} parent=1 // loop_body
      %s26 = ssub.s32 %s21, 1
      %s27 = ssub.s32 %s21, 2
      %s34 = sadd.s32 1, %s29
      %p35 = scmp.ge.s32.totalorder %s34, 1
      %s36 = scalar_select %p35, 0, %s34
      %s37 = sadd.s32 1, %s28
      %s38 = scalar_select %p35, %s37, %s28
      %p39 = scmp.ge.s32.totalorder %s38, 2
      %s40 = scalar_select %p39, 0, %s38
      %s41 = ssub.s32 %s28, %s40
      %s42 = ssub.s32 %s29, %s36
      %s43 = sor.u32 %s41, %s42
      %p44 = scmp.eq.s32.totalorder %s43, 0
      %s46 = sadd.s32 %s45, 1
      %s47 = scalar_select %p44, %s45, %s46
      %p50 = pneg %p44
      %p51 = scmp.eq.s32.totalorder %s21, 1
      %p52 = por %p50, %p51
      %p53 = scmp.ne.s32.totalorder %s45, %s48
      %p54 = scmp.eq.s32.totalorder %s21, 0
      %p55 = por %p53, %p54
      %p56 = scmp.ne.s32.totalorder %s45, %s48
      %p57 = scmp.eq.s32.totalorder %s26, 1
      %p58 = por %p56, %p57
      %p59 = scmp.ne.s32.totalorder %s48, %s49
      %p60 = scmp.eq.s32.totalorder %s26, 0
      %p61 = por %p59, %p60
      %p62 = scmp.ne.s32.totalorder %s48, %s49
      %p63 = scmp.eq.s32.totalorder %s27, 1
      %p64 = por %p62, %p63
      %p66 = scmp.ne.s32.totalorder %s49, %s65
      %p67 = scmp.eq.s32.totalorder %s27, 0
      %p68 = por %p66, %p67
      %s69 = ssub.s32 %s28, %s40
      %s70 = ssub.s32 %s29, %s36
      %s71 = sor.u32 %s69, %s70
      %p72 = scmp.eq.s32.totalorder %s71, 0
      %s74 = sadd.s32 %s73, 1
      %s75 = scalar_select %p72, %s73, %s74
      %p78 = pneg %p72
      %p79 = scmp.eq.s32.totalorder %s21, 1
      %p80 = por %p78, %p79
      %p81 = scmp.ne.s32.totalorder %s73, %s76
      %p82 = scmp.eq.s32.totalorder %s21, 0
      %p83 = por %p81, %p82
      %p84 = scmp.ne.s32.totalorder %s73, %s76
      %p85 = scmp.eq.s32.totalorder %s26, 1
      %p86 = por %p84, %p85
      %p87 = scmp.ne.s32.totalorder %s76, %s77
      %p88 = scmp.eq.s32.totalorder %s26, 0
      %p89 = por %p87, %p88
      %p90 = scmp.ne.s32.totalorder %s76, %s77
      %p91 = scmp.eq.s32.totalorder %s27, 1
      %p92 = por %p90, %p91
      %p94 = scmp.ne.s32.totalorder %s77, %s93
      %p95 = scmp.eq.s32.totalorder %s27, 0
      %p96 = por %p94, %p95
      %s98 = sadd.s32 %s97, 1
      %p101 = scmp.eq.s32.totalorder %s21, 1
      %p102 = scmp.ne.s32.totalorder %s97, %s99
      %p103 = scmp.eq.s32.totalorder %s21, 0
      %p104 = por %p102, %p103
      %p105 = scmp.ne.s32.totalorder %s97, %s99
      %p106 = scmp.eq.s32.totalorder %s26, 1
      %p107 = por %p105, %p106
      %p108 = scmp.ne.s32.totalorder %s99, %s100
      %p109 = scmp.eq.s32.totalorder %s26, 0
      %p110 = por %p108, %p109
      %p111 = scmp.ne.s32.totalorder %s99, %s100
      %p112 = scmp.eq.s32.totalorder %s27, 1
      %p113 = por %p111, %p112
      %p115 = scmp.ne.s32.totalorder %s100, %s114
      %p116 = scmp.eq.s32.totalorder %s27, 0
      %p117 = por %p115, %p116
      %s119 = sadd.s32 %s118, 1
      %p122 = scmp.eq.s32.totalorder %s21, 1
      %p123 = scmp.ne.s32.totalorder %s118, %s120
      %p124 = scmp.eq.s32.totalorder %s21, 0
      %p125 = por %p123, %p124
      %p126 = scmp.ne.s32.totalorder %s118, %s120
      %p127 = scmp.eq.s32.totalorder %s26, 1
      %p128 = por %p126, %p127
      %p129 = scmp.ne.s32.totalorder %s120, %s121
      %p130 = scmp.eq.s32.totalorder %s26, 0
      %p131 = por %p129, %p130
      %p132 = scmp.ne.s32.totalorder %s120, %s121
      %p133 = scmp.eq.s32.totalorder %s27, 1
      %p134 = por %p132, %p133
      %p136 = scmp.ne.s32.totalorder %s121, %s135
      %p137 = scmp.eq.s32.totalorder %s27, 0
      %p138 = por %p136, %p137
      %s140 = sadd.s32 %s139, 1
      %p143 = scmp.eq.s32.totalorder %s21, 1
      %p144 = scmp.ne.s32.totalorder %s139, %s141
      %p145 = scmp.eq.s32.totalorder %s21, 0
      %p146 = por %p144, %p145
      %p147 = scmp.ne.s32.totalorder %s139, %s141
      %p148 = scmp.eq.s32.totalorder %s26, 1
      %p149 = por %p147, %p148
      %p150 = scmp.ne.s32.totalorder %s141, %s142
      %p151 = scmp.eq.s32.totalorder %s26, 0
      %p152 = por %p150, %p151
      %p153 = scmp.ne.s32.totalorder %s141, %s142
      %p154 = scmp.eq.s32.totalorder %s27, 1
      %p155 = por %p153, %p154
      %p157 = scmp.ne.s32.totalorder %s142, %s156
      %p158 = scmp.eq.s32.totalorder %s27, 0
      %p159 = por %p157, %p158
      %s160 = ssub.s32 %s28, %s40
      %s161 = ssub.s32 %s29, %s36
      %s162 = sor.u32 %s160, %s161
      %p163 = scmp.eq.s32.totalorder %s162, 0
      %s165 = sadd.s32 %s164, 1
      %s166 = scalar_select %p163, %s164, %s165
      %p169 = pneg %p163
      %p170 = scmp.eq.s32.totalorder %s21, 1
      %p171 = por %p169, %p170
      %p172 = scmp.ne.s32.totalorder %s164, %s167
      %p173 = scmp.eq.s32.totalorder %s21, 0
      %p174 = por %p172, %p173
      %p175 = scmp.ne.s32.totalorder %s164, %s167
      %p176 = scmp.eq.s32.totalorder %s26, 1
      %p177 = por %p175, %p176
      %p178 = scmp.ne.s32.totalorder %s167, %s168
      %p179 = scmp.eq.s32.totalorder %s26, 0
      %p180 = por %p178, %p179
      %p181 = scmp.ne.s32.totalorder %s167, %s168
      %p182 = scmp.eq.s32.totalorder %s27, 1
      %p183 = por %p181, %p182
      %p185 = scmp.ne.s32.totalorder %s168, %s184
      %p186 = scmp.eq.s32.totalorder %s27, 0
      %p187 = por %p185, %p186
      %p188 = scmp.le.s32.totalorder 1, %s21
      %p189 = scmp.lt.s32.totalorder %s21, 3
      %p190 = pnand %p188, %p189
      %p191 = pneg %p190
      // Predicated region
      $region9: #{sppcspc_forward.15} parent=5 // pred_check
        _
      $region10: #{sppcspc_forward.15} parent=5 // pred_check_branch
        %193 = sbr.rel (%p190) target = $region12
      $region11: #{sppcspc_forward.15} parent=5 // pred_region
        %s194 = ssub.s32 %s21, 1
        // Predicated region
        $region13: #{sppcspc_forward.15} parent=11 // pred_check
          %p195 = pneg %p110
        $region14: #{sppcspc_forward.15} parent=11 // pred_check_branch
          %197 = sbr.rel (%p195) target = $region16
        $region15: #{sppcspc_forward.15} parent=11 // pred_region
          %s199 = ssub.s32 64, 64
          %200 = vsyncadd [#allocation6], %s199
          %s202 = sshll.u32 [#allocation7], 4
          %s203 = int_to_ptr.vmem [resolvable:$true] %s202
          %205 = dma.hbm_to_vmem [thread:$0]  %s2, 64, %s203, [#allocation6]
        $region16: #{sppcspc_forward.15} parent=11 // pred_fallthru
          _
        // Predicated region
        $region17: #{sppcspc_forward.15} parent=11 // pred_check
          %p206 = pneg %p131
        $region18: #{sppcspc_forward.15} parent=11 // pred_check_branch
          %208 = sbr.rel (%p206) target = $region20
        $region19: #{sppcspc_forward.15} parent=11 // pred_region
          %s210 = ssub.s32 64, 64
          %211 = vsyncadd [#allocation9], %s210
          %s213 = sshll.u32 [#allocation8], 4
          %s214 = int_to_ptr.vmem [resolvable:$true] %s213
          %216 = dma.hbm_to_vmem [thread:$0]  %s3, 64, %s214, [#allocation9]
        $region20: #{sppcspc_forward.15} parent=11 // pred_fallthru
          _
        // Predicated region
        $region21: #{sppcspc_forward.15} parent=11 // pred_check
          %p217 = pneg %p152
        $region22: #{sppcspc_forward.15} parent=11 // pred_check_branch
          %219 = sbr.rel (%p217) target = $region24
        $region23: #{sppcspc_forward.15} parent=11 // pred_region
          %s221 = ssub.s32 128, 128
          %222 = vsyncadd [#allocation9], %s221
          %s224 = sshll.u32 [#allocation10], 4
          %s225 = int_to_ptr.vmem [resolvable:$true] %s224
          %227 = dma.hbm_to_vmem [thread:$0]  %s4, 128, %s225, [#allocation9]
        $region24: #{sppcspc_forward.15} parent=11 // pred_fallthru
          _
      $region12: #{sppcspc_forward.15} parent=5 // pred_fallthru
        _
      %p228 = scmp.lt.s32.totalorder %s21, 2
      // Predicated region
      $region25: #{sppcspc_forward.15} parent=5 // pred_check
        %p229 = pneg %p228
      $region26: #{sppcspc_forward.15} parent=5 // pred_check_branch
        %231 = sbr.rel (%p229) target = $region28
      $region27: #{sppcspc_forward.15} parent=5 // pred_region
        // Predicated region
        $region29: #{sppcspc_forward.15} parent=27 // pred_check
          %p232 = pneg %p55
        $region30: #{sppcspc_forward.15} parent=27 // pred_check_branch
          %234 = sbr.rel (%p232) target = $region32
        $region31: #{sppcspc_forward.15} parent=27 // pred_region
          %s235 = sand.u32 %s45, 1
          %s236 = scalar_lea.sflag [#allocation3], %s235
          %s237 = sand.u32 %s45, 1
          %s238 = smul.addr %s237, 8
          %s239 = scalar_lea.vmem [#allocation2], %s238
          %s240 = smul.u32 2, %s29
          %s242 = ssub.s32 128, 128
          %243 = vsyncadd %s236, %s242
          %s244 = smul.addr %s28, 2
          %s245 = sadd.s32 %s240, %s244
          %s246 = smul.addr %s245, 64
          %s247 = scalar_lea.hbm %s0, %s246
          %s249 = sshll.u32 %s239, 4
          %s250 = int_to_ptr.vmem [resolvable:$true] %s249
          %252 = dma.hbm_to_vmem [thread:$0]  %s247, 128, %s250, %s236
        $region32: #{sppcspc_forward.15} parent=27 // pred_fallthru
          _
        // Predicated region
        $region33: #{sppcspc_forward.15} parent=27 // pred_check
          %p253 = pneg %p83
        $region34: #{sppcspc_forward.15} parent=27 // pred_check_branch
          %255 = sbr.rel (%p253) target = $region36
        $region35: #{sppcspc_forward.15} parent=27 // pred_region
          %s256 = sand.u32 %s21, 1
          %s257 = scalar_lea.sflag [#allocation6], %s256
          %s258 = sand.u32 %s73, 1
          %s259 = smul.addr %s258, 8
          %s260 = scalar_lea.vmem [#allocation5], %s259
          %s261 = smul.u32 2, %s29
          %s263 = ssub.s32 128, 128
          %264 = vsyncadd %s257, %s263
          %s265 = smul.addr %s28, 2
          %s266 = sadd.s32 %s261, %s265
          %s267 = smul.addr %s266, 64
          %s268 = scalar_lea.hbm %s1, %s267
          %s270 = sshll.u32 %s260, 4
          %s271 = int_to_ptr.vmem [resolvable:$true] %s270
          %273 = dma.hbm_to_vmem [thread:$0]  %s268, 128, %s271, %s257
        $region36: #{sppcspc_forward.15} parent=27 // pred_fallthru
          _
      $region28: #{sppcspc_forward.15} parent=5 // pred_fallthru
        _
      %p274 = scmp.le.s32.totalorder 1, %s21
      %p275 = scmp.lt.s32.totalorder %s21, 3
      %p276 = pnand %p274, %p275
      %p277 = pneg %p276
      // Predicated region
      $region37: #{sppcspc_forward.15} parent=5 // pred_check
        _
      $region38: #{sppcspc_forward.15} parent=5 // pred_check_branch
        %279 = sbr.rel (%p276) target = $region40
      $region39: #{sppcspc_forward.15} parent=5 // pred_region
        %s280 = ssub.s32 %s21, 1
        %s281 = sand.u32 %s48, 1
        %s282 = scalar_lea.sflag [#allocation3], %s281
        %s283 = sand.u32 %s48, 1
        %s284 = smul.addr %s283, 8
        %s285 = scalar_lea.vmem [#allocation2], %s284
        // Predicated region
        $region41: #{sppcspc_forward.15} parent=39 // pred_check
          %p286 = pneg %p61
        $region42: #{sppcspc_forward.15} parent=39 // pred_check_branch
          %288 = sbr.rel (%p286) target = $region44
        $region43: #{sppcspc_forward.15} parent=39 // pred_region
          %289 = dma.done %s282, 128
        $region44: #{sppcspc_forward.15} parent=39 // pred_fallthru
          _
        %s290 = sand.u32 %s26, 1
        %s291 = scalar_lea.sflag [#allocation6], %s290
        %s292 = sand.u32 %s76, 1
        %s293 = smul.addr %s292, 8
        %s294 = scalar_lea.vmem [#allocation5], %s293
        // Predicated region
        $region45: #{sppcspc_forward.15} parent=39 // pred_check
          %p295 = pneg %p89
        $region46: #{sppcspc_forward.15} parent=39 // pred_check_branch
          %297 = sbr.rel (%p295) target = $region48
        $region47: #{sppcspc_forward.15} parent=39 // pred_region
          %298 = dma.done %s291, 128
        $region48: #{sppcspc_forward.15} parent=39 // pred_fallthru
          _
        // Predicated region
        $region49: #{sppcspc_forward.15} parent=39 // pred_check
          %p299 = pneg %p110
        $region50: #{sppcspc_forward.15} parent=39 // pred_check_branch
          %301 = sbr.rel (%p299) target = $region52
        $region51: #{sppcspc_forward.15} parent=39 // pred_region
          %302 = dma.done [#allocation6], 64
        $region52: #{sppcspc_forward.15} parent=39 // pred_fallthru
          _
        // Predicated region
        $region53: #{sppcspc_forward.15} parent=39 // pred_check
          %p303 = pneg %p131
        $region54: #{sppcspc_forward.15} parent=39 // pred_check_branch
          %305 = sbr.rel (%p303) target = $region56
        $region55: #{sppcspc_forward.15} parent=39 // pred_region
          %306 = dma.done [#allocation9], 64
        $region56: #{sppcspc_forward.15} parent=39 // pred_fallthru
          _
        // Predicated region
        $region57: #{sppcspc_forward.15} parent=39 // pred_check
          %p307 = pneg %p152
        $region58: #{sppcspc_forward.15} parent=39 // pred_check_branch
          %309 = sbr.rel (%p307) target = $region60
        $region59: #{sppcspc_forward.15} parent=39 // pred_region
          %310 = dma.done [#allocation9], 128
        $region60: #{sppcspc_forward.15} parent=39 // pred_fallthru
          _
        %s311 = sand.u32 %s48, 1
        %s312 = scalar_lea.sflag [#allocation3], %s311
        %s313 = sand.u32 %s48, 1
        %s314 = smul.addr %s313, 8
        %s315 = scalar_lea.vmem [#allocation2], %s314
        %p316 = pneg %p61
        %p317 = pneg %p58
        %s318 = sand.u32 %s26, 1
        %s319 = scalar_lea.sflag [#allocation6], %s318
        %s320 = sand.u32 %s76, 1
        %s321 = smul.addr %s320, 8
        %s322 = scalar_lea.vmem [#allocation5], %s321
        %p323 = pneg %p89
        %p324 = pneg %p86
        %p325 = pneg %p110
        %p326 = pneg %p107
        %p327 = pneg %p131
        %p328 = pneg %p128
        %p329 = pneg %p152
        %p330 = pneg %p149
        %p331 = pneg %p180
        %p332 = pneg %p177
        %s333 = sand.u32 %s167, 1
        %s334 = scalar_lea.sflag [#allocation4], %s333
        %s335 = sand.u32 %s167, 1
        %s336 = smul.addr %s335, 8
        %s337 = scalar_lea.vmem [#allocation11], %s336
        %s338 = smul.u32 2, %s31
        %s339 = smul.u32 2, %s31
        %s340 = smul.u32 2, %s31
        %v342 = vld [vmem:[#allocation7] sm:$0xf]
        %v343 = vld [vmem:[%s285] sm:$0xff]
        %v344 = vld [vmem:[#allocation8] sm:$0xf]
        %v345 = vld [vmem:[%s294] sm:$0xff]
        %v347 = vunpack.c.l.b16 %v345
        %v348 = vunpack.c.h.b16 %v345
        %v349 = vpack.c.b16 %v347, %v347
        %v350 = vpack.c.b16 %v348, %v348
        %vm351 = vcmask 64512
        %v353 = vsel %vm351, %v344, 0
        %vm355 = vcmask 1043456
        %v357 = vsel %vm355, %v349, 0
        %v360 = vsel %vm355, %v350, 0
        %362 = vmatprep.subr.bf16.mxu0 %v360
        %363 = vmatpush1.bf16.msra.mxu0 %v357
        %364 = vmatprep.subr.bf16.mxu0 0
        %365 = vmatpush1.bf16.msra.mxu0 0
        %366 = vmatprep.subr.bf16.mxu0 0
        %367 = vmatpush1.bf16.msra.mxu0 0
        %368 = vmatprep.subr.bf16.mxu0 0
        %369 = vmatpush1.bf16.msra.mxu0 0
        %370 = vmatprep.subr.bf16.mxu0 0
        %371 = vmatpush1.bf16.msra.mxu0 0
        %372 = vmatprep.subr.bf16.mxu0 0
        %373 = vmatpush1.bf16.msra.mxu0 0
        %374 = vmatprep.subr.bf16.mxu0 0
        %375 = vmatpush1.bf16.msra.mxu0 0
        %376 = vmatprep.subr.bf16.mxu0 0
        %377 = vmatpush1.bf16.msra.mxu0 0
        %378 = vmatprep.subr.bf16.mxu0 0
        %379 = vmatpush1.bf16.msra.mxu0 0
        %380 = vmatprep.subr.bf16.mxu0 0
        %381 = vmatpush1.bf16.msra.mxu0 0
        %382 = vmatprep.subr.bf16.mxu0 0
        %383 = vmatpush1.bf16.msra.mxu0 0
        %384 = vmatprep.subr.bf16.mxu0 0
        %385 = vmatpush1.bf16.msra.mxu0 0
        %386 = vmatprep.subr.bf16.mxu0 0
        %387 = vmatpush1.bf16.msra.mxu0 0
        %388 = vmatprep.subr.bf16.mxu0 0
        %389 = vmatpush1.bf16.msra.mxu0 0
        %390 = vmatprep.subr.bf16.mxu0 0
        %391 = vmatpush1.bf16.msra.mxu0 0
        %392 = vmatprep.subr.bf16.mxu0 0
        %393 = vmatpush1.bf16.msra.mxu0 0
        %394 = vmatprep.mubr.bf16.mxu0 0
        %395 = vmatmul.mubr.bf16.gmra.mrb[0].mxu0 %v353
        %v396 = vpop.f32.mrb[0].mxu0
        %v397 = vadd.f32 0.0, %v396
        %v398 = vpop.f32.mrb[0].mxu0
        %v399 = vadd.f32 0.0, %v398
        %v400 = vpop.f32.mrb[0].mxu0
        %v401 = vpop.f32.mrb[0].mxu0
        %402 = vdwg.mxu0
        %v404 = vunpack.c.l.b16 %v343
        %v405 = vunpack.c.h.b16 %v343
        %v406 = vpack.c.b16 %v404, %v404
        %v407 = vpack.c.b16 %v405, %v405
        %v409 = vsel %vm351, %v342, 0
        %v412 = vsel %vm355, %v406, 0
        %v415 = vsel %vm355, %v407, 0
        %417 = vmatprep.subr.bf16.mxu0 %v415
        %418 = vmatpush1.bf16.msra.mxu0 %v412
        %419 = vmatprep.subr.bf16.mxu0 0
        %420 = vmatpush1.bf16.msra.mxu0 0
        %421 = vmatprep.subr.bf16.mxu0 0
        %422 = vmatpush1.bf16.msra.mxu0 0
        %423 = vmatprep.subr.bf16.mxu0 0
        %424 = vmatpush1.bf16.msra.mxu0 0
        %425 = vmatprep.subr.bf16.mxu0 0
        %426 = vmatpush1.bf16.msra.mxu0 0
        %427 = vmatprep.subr.bf16.mxu0 0
        %428 = vmatpush1.bf16.msra.mxu0 0
        %429 = vmatprep.subr.bf16.mxu0 0
        %430 = vmatpush1.bf16.msra.mxu0 0
        %431 = vmatprep.subr.bf16.mxu0 0
        %432 = vmatpush1.bf16.msra.mxu0 0
        %433 = vmatprep.subr.bf16.mxu0 0
        %434 = vmatpush1.bf16.msra.mxu0 0
        %435 = vmatprep.subr.bf16.mxu0 0
        %436 = vmatpush1.bf16.msra.mxu0 0
        %437 = vmatprep.subr.bf16.mxu0 0
        %438 = vmatpush1.bf16.msra.mxu0 0
        %439 = vmatprep.subr.bf16.mxu0 0
        %440 = vmatpush1.bf16.msra.mxu0 0
        %441 = vmatprep.subr.bf16.mxu0 0
        %442 = vmatpush1.bf16.msra.mxu0 0
        %443 = vmatprep.subr.bf16.mxu0 0
        %444 = vmatpush1.bf16.msra.mxu0 0
        %445 = vmatprep.subr.bf16.mxu0 0
        %446 = vmatpush1.bf16.msra.mxu0 0
        %447 = vmatprep.subr.bf16.mxu0 0
        %448 = vmatpush1.bf16.msra.mxu0 0
        %449 = vmatprep.mubr.bf16.mxu0 0
        %450 = vmatmul.mubr.bf16.gmra.mrb[0].mxu0 %v409
        %v451 = vpop.f32.mrb[0].mxu0
        %v452 = vadd.f32 %v397, %v451
        %v453 = vpop.f32.mrb[0].mxu0
        %v454 = vadd.f32 %v399, %v453
        %v455 = vpop.f32.mrb[0].mxu0
        %v456 = vpop.f32.mrb[0].mxu0
        %457 = vdwg.mxu0
        %v458 = vld [vmem:[#allocation10] sm:$0xff]
        %460 = vset.pattern.permute.xlu0 0
        %461 = vperm.xlu0 %460, %v458
        %v462 = vpop.permute.xlu0 %461
        %v464 = vadd.f32 %v452, %v462
        %v465 = vadd.f32 %v454, %v462
        %v466 = vmax.f32 %v464, 0.0
        %v467 = vmax.f32 %v465, 0.0
        %v468 = vpack.c.bf16 %v466, %v466
        %v469 = vpack.c.bf16 %v467, %v467
        %v472 = vunpack.c.l.b16 %v468
        %v473 = vunpack.c.l.b16 %v469
        %v474 = vpack.c.b16 %v473, %v472
        %476 = vst [vmem:[%s337] sm:$0xff] %v474
        %s477 = sand.u32 %s167, 1
        %s478 = scalar_lea.sflag [#allocation4], %s477
        %s479 = sand.u32 %s167, 1
        %s480 = smul.addr %s479, 8
        %s481 = scalar_lea.vmem [#allocation11], %s480
        // Predicated region
        $region61: #{sppcspc_forward.15} parent=39 // pred_check
          %p482 = pneg %p177
        $region62: #{sppcspc_forward.15} parent=39 // pred_check_branch
          %484 = sbr.rel (%p482) target = $region64
        $region63: #{sppcspc_forward.15} parent=39 // pred_region
          %s485 = smul.u32 2, %s31
          %s487 = ssub.s32 128, 128
          %488 = vsyncadd %s478, %s487
          %s489 = smul.addr %s30, 2
          %s490 = sadd.s32 %s485, %s489
          %s491 = smul.addr %s490, 64
          %s492 = scalar_lea.hbm %s5, %s491
          %s494 = sshll.u32 %s481, 4
          %s495 = int_to_ptr.vmem [resolvable:$true] %s494
          %497 = dma.vmem_to_hbm [thread:$0]  %s495, 128, %s492, %s478
        $region64: #{sppcspc_forward.15} parent=39 // pred_fallthru
          _
      $region40: #{sppcspc_forward.15} parent=5 // pred_fallthru
        _
      %p498 = scmp.le.s32.totalorder 2, %s21
      // Predicated region
      $region65: #{sppcspc_forward.15} parent=5 // pred_check
        %p499 = pneg %p498
      $region66: #{sppcspc_forward.15} parent=5 // pred_check_branch
        %501 = sbr.rel (%p499) target = $region68
      $region67: #{sppcspc_forward.15} parent=5 // pred_region
        %s502 = ssub.s32 %s21, 2
        // Predicated region
        $region69: #{sppcspc_forward.15} parent=67 // pred_check
          %p503 = pneg %p183
        $region70: #{sppcspc_forward.15} parent=67 // pred_check_branch
          %505 = sbr.rel (%p503) target = $region72
        $region71: #{sppcspc_forward.15} parent=67 // pred_region
          %s506 = sand.u32 %s168, 1
          %s507 = scalar_lea.sflag [#allocation4], %s506
          %s508 = sand.u32 %s168, 1
          %s509 = smul.addr %s508, 8
          %s510 = scalar_lea.vmem [#allocation11], %s509
          %511 = dma.done %s507, 128
        $region72: #{sppcspc_forward.15} parent=67 // pred_fallthru
          _
      $region68: #{sppcspc_forward.15} parent=5 // pred_fallthru
        _
    $region6: #{sppcspc_forward.15} parent=1 // loop_footer
      %s25 = sadd.s32 1, %s21
    $region7: #{sppcspc_forward.15} parent=1 // loop_footer_branch
      %20 = sbr.rel target = $region3
    $region8: #{sppcspc_forward.15} parent=1 // loop_exit
      _
    %512 = vsyncpa [#allocation3], 1
    %s513 = scalar_lea.sflag [#allocation3], 1
    %514 = vsyncpa %s513, 1
    %515 = vsyncpa [#allocation6], 1
    %s516 = scalar_lea.sflag [#allocation6], 1
    %517 = vsyncpa %s516, 1
    %518 = vsyncpa [#allocation9], 1
    %519 = vsyncpa [#allocation4], 1
    %s520 = scalar_lea.sflag [#allocation4], 1
    %521 = vsyncpa %s520, 1

</llo_original>
